<compile_context>
chip_gen: v7x
topology: tpu7x:2x2x1
jax: 0.10.0
libtpu: 0.0.40
codegen_flags: <defaults>
</compile_context>

<pallas_src>
import functools

import jax
import jax.numpy as jnp
from jax.experimental import pallas as pl
from jax.experimental.pallas import tpu as pltpu


# ----------------------------- Pallas kernels -----------------------------

def _linear_bias_kernel(x_ref, w_ref, b_ref, o_ref):
    # x: [rows, K], w: [K, N] (stored pre-transposed), b: [1, N] -> o: [rows, N]
    o_ref[...] = (jnp.dot(x_ref[...], w_ref[...], preferred_element_type=jnp.float32)
                  + b_ref[...])


def _mha_kernel(q_ref, k_ref, v_ref, o_ref):
    # One batch element per grid step: blocks are [NH, S, Dh]; all heads in one shot.
    q = q_ref[...]
    k = k_ref[...]
    v = v_ref[...]
    # scores = Q @ K^T per head; contract the last axes directly (no k.T materialization).
    s = jnp.einsum("hqd,hkd->hqk", q, k, preferred_element_type=jnp.float32)
    # Scaled_Dot_Product_Attention is called with scale=None -> no scaling.
    # softmax(dim=-1), stabilized with max subtraction; divide replaced by EUP reciprocal.
    s = s - jnp.max(s, axis=-1, keepdims=True)
    e = jnp.exp(s)
    inv = pl.reciprocal(jnp.sum(e, axis=-1, keepdims=True), approx=True)
    p = e * inv
    o_ref[...] = jnp.einsum("hqk,hkd->hqd", p, v, preferred_element_type=jnp.float32)


# ----------------------------- pallas_call wrappers -----------------------------

def linear(x, w, b, *, row_block):
    M, K = x.shape
    N = w.shape[1]
    return pl.pallas_call(
        _linear_bias_kernel,
        out_shape=jax.ShapeDtypeStruct((M, N), jnp.float32),
        grid=(M // row_block,),
        in_specs=[pl.BlockSpec((row_block, K), lambda i: (i, 0)),
                  pl.BlockSpec((K, N), lambda i: (0, 0)),
                  pl.BlockSpec((1, N), lambda i: (0, 0))],
        out_specs=pl.BlockSpec((row_block, N), lambda i: (i, 0)),
        compiler_params=pltpu.CompilerParams(dimension_semantics=("parallel",)),
    )(x, w, b)


def multi_head_attention(q_h, k_h, v_h, *, head_block):
    BH, S, Dh = q_h.shape
    spec = pl.BlockSpec((head_block, S, Dh), lambda i: (i, 0, 0))
    return pl.pallas_call(
        _mha_kernel,
        out_shape=jax.ShapeDtypeStruct((BH, S, Dh), jnp.float32),
        grid=(BH // head_block,),
        in_specs=[spec, spec, spec],
        out_specs=spec,
        compiler_params=pltpu.CompilerParams(dimension_semantics=("parallel",)),
    )(q_h, k_h, v_h)


# ----------------------------- Encoder forward -----------------------------

def encoder_forward(params, x):
    B, S, D = x.shape
    NH = params["num_head"]
    Dh = D // NH

    # row block = one batch element's rows when that keeps the sublane constraint happy
    row_block = S if (S % 8 == 0) else B * S

    x2 = x.reshape(B * S, D)
    # fused Q/K/V projection: one launch, one matmul with N = 3D (lane-dense)
    qkv = linear(x2, params["w_qkv"], params["b_qkv"], row_block=row_block)   # [B*S, 3D]
    q, k, v = jnp.split(qkv, 3, axis=-1)

    # PyTorch flat .view(B*num_head, -1, dim_head) == row-major reshape
    q_h = q.reshape(B * NH, S, Dh)
    k_h = k.reshape(B * NH, S, Dh)
    v_h = v.reshape(B * NH, S, Dh)

    ctx = multi_head_attention(q_h, k_h, v_h, head_block=NH)                  # [B*NH, S, Dh]

    # context.view(B, -1, num_head*dim_head) == row-major reshape back to lane-dense
    ctx2 = ctx.reshape(B * S, D)
    out = linear(ctx2, params["w_o"], params["b_o"], row_block=row_block)     # [B*S, D]
    return out.reshape(B, S, D)


# ----------------------------- params & reference -----------------------------

def init_params(key, dim_model, num_head):
    keys = jax.random.split(key, 8)
    bound = 1.0 / (float(dim_model) ** 0.5)

    def unif(k, shape):
        return jax.random.uniform(k, shape, jnp.float32, -bound, bound)

    # nn.Linear weights stored pre-transposed as [in, out]
    wq, wk, wv, wo = (unif(keys[i], (dim_model, dim_model)) for i in range(4))
    bq, bk, bv, bo = (unif(keys[4 + i], (1, dim_model)) for i in range(4))

    return dict(
        num_head=num_head,
        # fuse fc_Q / fc_K / fc_V into one [D, 3D] weight -> single QKV matmul
        w_qkv=jnp.concatenate([wq, wk, wv], axis=1),
        b_qkv=jnp.concatenate([bq, bk, bv], axis=1),
        w_o=wo, b_o=bo,
    )


def reference_forward(params, x, num_head):
    # pure-JAX replica of the PyTorch Encoder forward, for a correctness check
    B, S, D = x.shape
    Dh = D // num_head
    x2 = x.reshape(B * S, D)
    qkv = x2 @ params["w_qkv"] + params["b_qkv"]
    q, k, v = jnp.split(qkv, 3, axis=-1)
    q = q.reshape(B * num_head, S, Dh)
    k = k.reshape(B * num_head, S, Dh)
    v = v.reshape(B * num_head, S, Dh)
    att = jax.nn.softmax(jnp.einsum("hqd,hkd->hqk", q, k), axis=-1)
    ctx = jnp.einsum("hqk,hkd->hqd", att, v).reshape(B * S, D)
    return (ctx @ params["w_o"] + params["b_o"]).reshape(B, S, D)


if __name__ == "__main__":
    # small shapes consistent with the module: Encoder(dim_model=128, num_head=16, ...)
    B, S, D, NH = 2, 8, 128, 16

    key = jax.random.PRNGKey(0)
    kx, kp = jax.random.split(key)
    x = jax.random.normal(kx, (B, S, D), jnp.float32)
    params = init_params(kp, D, NH)

    fwd = jax.jit(functools.partial(encoder_forward, params))
    out = jax.block_until_ready(fwd(x))

    assert out.shape == (B, S, D), out.shape
    assert bool(jnp.all(jnp.isfinite(out)))

    ref = reference_forward(params, x, NH)
    # approx=True softmax reciprocal -> allow a loose (~1e-2) tolerance
    assert bool(jnp.allclose(out, ref, rtol=2e-2, atol=2e-2)), \
        float(jnp.max(jnp.abs(out - ref)))

    print("KERNEL_OK")
</pallas_src>

<mosaic_0001>
module attributes {stable_mosaic.version = 11 : i64} {
  func.func @_linear_bias_kernel(%arg0: i32, %arg1: memref<8x128xf32, #tpu.memory_space<vmem>>, %arg2: memref<128x384xf32, #tpu.memory_space<vmem>>, %arg3: memref<1x384xf32, #tpu.memory_space<vmem>>, %arg4: memref<8x384xf32, #tpu.memory_space<vmem>>) attributes {dimension_semantics = [#tpu.dimension_semantics<parallel>], iteration_bounds = array<i64: 2>, scalar_prefetch = 0 : i64, scratch_operands = 0 : i64, tpu.core_type = #tpu.core_type<tc>, window_params = [{transform_indices = @transform_0, window_bounds = array<i64: 8, 128>}, {pipeline_mode = #tpu.pipeline_mode<synchronous>, transform_indices = @transform_1, window_bounds = array<i64: 128, 384>}, {pipeline_mode = #tpu.pipeline_mode<synchronous>, transform_indices = @transform_2, window_bounds = array<i64: 1, 384>}, {transform_indices = @transform_3, window_bounds = array<i64: 8, 384>}]} {
    %c0 = arith.constant 0 : index
    %c0_0 = arith.constant 0 : index
    %0 = vector.load %arg1[%c0, %c0_0] : memref<8x128xf32, #tpu.memory_space<vmem>>, vector<8x128xf32>
    %c0_1 = arith.constant 0 : index
    %c0_2 = arith.constant 0 : index
    %1 = vector.load %arg2[%c0_1, %c0_2] : memref<128x384xf32, #tpu.memory_space<vmem>>, vector<128x384xf32>
    %cst = arith.constant dense<0.000000e+00> : vector<8x384xf32>
    %2 = tpu.matmul %0, %1, %cst {dimension_numbers = #tpu.dot_dimension_numbers<[1], [0], [0], [1], [0, 0, 1, 1], [], []>} : vector<8x128xf32>, vector<128x384xf32>, vector<8x384xf32> -> vector<8x384xf32>
    %c0_3 = arith.constant 0 : index
    %c0_4 = arith.constant 0 : index
    %3 = vector.load %arg3[%c0_3, %c0_4] : memref<1x384xf32, #tpu.memory_space<vmem>>, vector<1x384xf32>
    %4 = vector.broadcast %3 : vector<1x384xf32> to vector<8x384xf32>
    %5 = arith.addf %2, %4 : vector<8x384xf32>
    %c0_5 = arith.constant 0 : index
    %c0_6 = arith.constant 0 : index
    %6 = vector.load %arg4[%c0_5, %c0_6] : memref<8x384xf32, #tpu.memory_space<vmem>>, vector<8x384xf32>
    tpu.vector_store %arg4[%c0_5, %c0_6], %5 {strides = array<i32>} : memref<8x384xf32, #tpu.memory_space<vmem>>, vector<8x384xf32>,
    return
  }
  func.func @transform_0(%arg0: i32) -> (i32, i32) {
    %c0_i32 = arith.constant 0 : i32
    %c0_i32_0 = arith.constant 0 : i32
    return %arg0, %c0_i32 : i32, i32
  }
  func.func @transform_1(%arg0: i32) -> (i32, i32) {
    %c0_i32 = arith.constant 0 : i32
    %c0_i32_0 = arith.constant 0 : i32
    %c0_i32_1 = arith.constant 0 : i32
    return %c0_i32, %c0_i32_0 : i32, i32
  }
  func.func @transform_2(%arg0: i32) -> (i32, i32) {
    %c0_i32 = arith.constant 0 : i32
    %c0_i32_0 = arith.constant 0 : i32
    %c0_i32_1 = arith.constant 0 : i32
    return %c0_i32, %c0_i32_0 : i32, i32
  }
  func.func @transform_3(%arg0: i32) -> (i32, i32) {
    %c0_i32 = arith.constant 0 : i32
    %c0_i32_0 = arith.constant 0 : i32
    return %arg0, %c0_i32 : i32, i32
  }
}

module attributes {stable_mosaic.version = 11 : i64} {
  func.func @_mha_kernel(%arg0: i32, %arg1: memref<16x8x8xf32, #tpu.memory_space<vmem>>, %arg2: memref<16x8x8xf32, #tpu.memory_space<vmem>>, %arg3: memref<16x8x8xf32, #tpu.memory_space<vmem>>, %arg4: memref<16x8x8xf32, #tpu.memory_space<vmem>>) attributes {dimension_semantics = [#tpu.dimension_semantics<parallel>], iteration_bounds = array<i64: 2>, scalar_prefetch = 0 : i64, scratch_operands = 0 : i64, tpu.core_type = #tpu.core_type<tc>, window_params = [{transform_indices = @transform_0, window_bounds = array<i64: 16, 8, 8>}, {transform_indices = @transform_1, window_bounds = array<i64: 16, 8, 8>}, {transform_indices = @transform_2, window_bounds = array<i64: 16, 8, 8>}, {transform_indices = @transform_3, window_bounds = array<i64: 16, 8, 8>}]} {
    %c0 = arith.constant 0 : index
    %c0_0 = arith.constant 0 : index
    %c0_1 = arith.constant 0 : index
    %0 = vector.load %arg1[%c0, %c0_0, %c0_1] : memref<16x8x8xf32, #tpu.memory_space<vmem>>, vector<16x8x8xf32>
    %c0_2 = arith.constant 0 : index
    %c0_3 = arith.constant 0 : index
    %c0_4 = arith.constant 0 : index
    %1 = vector.load %arg2[%c0_2, %c0_3, %c0_4] : memref<16x8x8xf32, #tpu.memory_space<vmem>>, vector<16x8x8xf32>
    %c0_5 = arith.constant 0 : index
    %c0_6 = arith.constant 0 : index
    %c0_7 = arith.constant 0 : index
    %2 = vector.load %arg3[%c0_5, %c0_6, %c0_7] : memref<16x8x8xf32, #tpu.memory_space<vmem>>, vector<16x8x8xf32>
    "tpu.trace_start"() <{level = 10 : i32, message = "hqd,hkd->hqk"}> : () -> ()
    %cst = arith.constant dense<0.000000e+00> : vector<16x8x8xf32>
    %3 = tpu.matmul %0, %1, %cst {dimension_numbers = #tpu.dot_dimension_numbers<[2], [2], [1], [1], [0, 0, 0, 1, 1, 1], [0], [0]>} : vector<16x8x8xf32>, vector<16x8x8xf32>, vector<16x8x8xf32> -> vector<16x8x8xf32>
    "tpu.trace_stop"() : () -> ()
    %cst_8 = arith.constant dense<0xFF800000> : vector<16x8xf32>
    %4 = vector.multi_reduction <maximumf>, %3, %cst_8 [2] : vector<16x8x8xf32> to vector<16x8xf32>
    %5 = vector.shape_cast %4 : vector<16x8xf32> to vector<16x8x1xf32>
    %6 = vector.broadcast %5 : vector<16x8x1xf32> to vector<16x8x8xf32>
    %7 = arith.subf %3, %6 : vector<16x8x8xf32>
    %8 = math.exp %7 : vector<16x8x8xf32>
    %cst_9 = arith.constant dense<0.000000e+00> : vector<16x8xf32>
    %9 = vector.multi_reduction <add>, %8, %cst_9 [2] : vector<16x8x8xf32> to vector<16x8xf32>
    %10 = vector.shape_cast %9 : vector<16x8xf32> to vector<16x8x1xf32>
    %11 = tpu.reciprocal %10 {approx = true} : vector<16x8x1xf32> -> vector<16x8x1xf32>
    %12 = vector.broadcast %11 : vector<16x8x1xf32> to vector<16x8x8xf32>
    %13 = arith.mulf %8, %12 : vector<16x8x8xf32>
    "tpu.trace_start"() <{level = 10 : i32, message = "hqk,hkd->hqd"}> : () -> ()
    %cst_10 = arith.constant dense<0.000000e+00> : vector<16x8x8xf32>
    %14 = tpu.matmul %13, %2, %cst_10 {dimension_numbers = #tpu.dot_dimension_numbers<[2], [1], [1], [2], [0, 0, 0, 1, 1, 2], [0], [0]>} : vector<16x8x8xf32>, vector<16x8x8xf32>, vector<16x8x8xf32> -> vector<16x8x8xf32>
    "tpu.trace_stop"() : () -> ()
    %c0_11 = arith.constant 0 : index
    %c0_12 = arith.constant 0 : index
    %c0_13 = arith.constant 0 : index
    %15 = vector.load %arg4[%c0_11, %c0_12, %c0_13] : memref<16x8x8xf32, #tpu.memory_space<vmem>>, vector<16x8x8xf32>
    tpu.vector_store %arg4[%c0_11, %c0_12, %c0_13], %14 {strides = array<i32>} : memref<16x8x8xf32, #tpu.memory_space<vmem>>, vector<16x8x8xf32>,
    return
  }
  func.func @transform_0(%arg0: i32) -> (i32, i32, i32) {
    %c0_i32 = arith.constant 0 : i32
    %c0_i32_0 = arith.constant 0 : i32
    %c0_i32_1 = arith.constant 0 : i32
    return %arg0, %c0_i32, %c0_i32_0 : i32, i32, i32
  }
  func.func @transform_1(%arg0: i32) -> (i32, i32, i32) {
    %c0_i32 = arith.constant 0 : i32
    %c0_i32_0 = arith.constant 0 : i32
    %c0_i32_1 = arith.constant 0 : i32
    return %arg0, %c0_i32, %c0_i32_0 : i32, i32, i32
  }
  func.func @transform_2(%arg0: i32) -> (i32, i32, i32) {
    %c0_i32 = arith.constant 0 : i32
    %c0_i32_0 = arith.constant 0 : i32
    %c0_i32_1 = arith.constant 0 : i32
    return %arg0, %c0_i32, %c0_i32_0 : i32, i32, i32
  }
  func.func @transform_3(%arg0: i32) -> (i32, i32, i32) {
    %c0_i32 = arith.constant 0 : i32
    %c0_i32_0 = arith.constant 0 : i32
    %c0_i32_1 = arith.constant 0 : i32
    return %arg0, %c0_i32, %c0_i32_0 : i32, i32, i32
  }
}

module attributes {stable_mosaic.version = 11 : i64} {
  func.func @_linear_bias_kernel(%arg0: i32, %arg1: memref<8x128xf32, #tpu.memory_space<vmem>>, %arg2: memref<128x128xf32, #tpu.memory_space<vmem>>, %arg3: memref<1x128xf32, #tpu.memory_space<vmem>>, %arg4: memref<8x128xf32, #tpu.memory_space<vmem>>) attributes {dimension_semantics = [#tpu.dimension_semantics<parallel>], iteration_bounds = array<i64: 2>, scalar_prefetch = 0 : i64, scratch_operands = 0 : i64, tpu.core_type = #tpu.core_type<tc>, window_params = [{transform_indices = @transform_0, window_bounds = array<i64: 8, 128>}, {pipeline_mode = #tpu.pipeline_mode<synchronous>, transform_indices = @transform_1, window_bounds = array<i64: 128, 128>}, {pipeline_mode = #tpu.pipeline_mode<synchronous>, transform_indices = @transform_2, window_bounds = array<i64: 1, 128>}, {transform_indices = @transform_3, window_bounds = array<i64: 8, 128>}]} {
    %c0 = arith.constant 0 : index
    %c0_0 = arith.constant 0 : index
    %0 = vector.load %arg1[%c0, %c0_0] : memref<8x128xf32, #tpu.memory_space<vmem>>, vector<8x128xf32>
    %c0_1 = arith.constant 0 : index
    %c0_2 = arith.constant 0 : index
    %1 = vector.load %arg2[%c0_1, %c0_2] : memref<128x128xf32, #tpu.memory_space<vmem>>, vector<128x128xf32>
    %cst = arith.constant dense<0.000000e+00> : vector<8x128xf32>
    %2 = tpu.matmul %0, %1, %cst {dimension_numbers = #tpu.dot_dimension_numbers<[1], [0], [0], [1], [0, 0, 1, 1], [], []>} : vector<8x128xf32>, vector<128x128xf32>, vector<8x128xf32> -> vector<8x128xf32>
    %c0_3 = arith.constant 0 : index
    %c0_4 = arith.constant 0 : index
    %3 = vector.load %arg3[%c0_3, %c0_4] : memref<1x128xf32, #tpu.memory_space<vmem>>, vector<1x128xf32>
    %4 = vector.broadcast %3 : vector<1x128xf32> to vector<8x128xf32>
    %5 = arith.addf %2, %4 : vector<8x128xf32>
    %c0_5 = arith.constant 0 : index
    %c0_6 = arith.constant 0 : index
    %6 = vector.load %arg4[%c0_5, %c0_6] : memref<8x128xf32, #tpu.memory_space<vmem>>, vector<8x128xf32>
    tpu.vector_store %arg4[%c0_5, %c0_6], %5 {strides = array<i32>} : memref<8x128xf32, #tpu.memory_space<vmem>>, vector<8x128xf32>,
    return
  }
  func.func @transform_0(%arg0: i32) -> (i32, i32) {
    %c0_i32 = arith.constant 0 : i32
    %c0_i32_0 = arith.constant 0 : i32
    return %arg0, %c0_i32 : i32, i32
  }
  func.func @transform_1(%arg0: i32) -> (i32, i32) {
    %c0_i32 = arith.constant 0 : i32
    %c0_i32_0 = arith.constant 0 : i32
    %c0_i32_1 = arith.constant 0 : i32
    return %c0_i32, %c0_i32_0 : i32, i32
  }
  func.func @transform_2(%arg0: i32) -> (i32, i32) {
    %c0_i32 = arith.constant 0 : i32
    %c0_i32_0 = arith.constant 0 : i32
    %c0_i32_1 = arith.constant 0 : i32
    return %c0_i32, %c0_i32_0 : i32, i32
  }
  func.func @transform_3(%arg0: i32) -> (i32, i32) {
    %c0_i32 = arith.constant 0 : i32
    %c0_i32_0 = arith.constant 0 : i32
    return %arg0, %c0_i32 : i32, i32
  }
}

</mosaic_0001>

<llo_original>
// kernel: encoder_forward.5
$region0: #{encoder_forward.5}
  #allocation0 [shape = 'u32[]', space=smem, size = 0x4, offset = 0x4, fixed_abs, tag = 'smem constant byte address 0x4 - core index']
  #allocation1 [shape = 'u32[144,128]{1,0:T(1,128)}', space=vmem, size = 0x12000, scoped, tag = 'internal scratch']
  %s0 = inlined_call_operand.vmem [shape: f32[16,128], index: 0, kind: input, shape index: {}]
  %s1 = inlined_call_operand.vmem [shape: f32[128,128], index: 1, kind: input, shape index: {}]
  %s2 = inlined_call_operand.vmem [shape: f32[1,128], index: 2, kind: input, shape index: {}]
  %s3 = inlined_call_operand.hbm [shape: f32[16,128], index: 3, kind: output, shape index: {}]
  %s4 = sld [smem:[#allocation0]]
  $region45: #{encoder_forward.5} parent=0
    _
  %s6 = ssub.s32 1, %s4
  %s7 = scalar_select 0, %s6, %s4
  $region1: #{encoder_forward.5} parent=0
    #allocation2 [shape = 'u8[8192]{0}', space=vmem, size = 0x2000, scoped, tag = 'output window, operand 0']
    #allocation3 [shape = 's32[2]{0}', space=sflag, size = 0x8, scoped, tag = 'scoped memory for encoder_forward.5']
    %8 = vsyncpa [#allocation3], 0
    %s9 = scalar_lea.sflag [#allocation3], 1
    %10 = vsyncpa %s9, 0
    loop: start=0, step=1, limit=4
    $region2: #{encoder_forward.5} parent=1 // loop_pre_header
      _
    $region3: #{encoder_forward.5} parent=1 // loop_header
      %s12 = sphi 0, %s16
      %p13 = scmp.ge.s32.totalorder %s12, 4
      %s22 = sphi 0, %s24
      %s25 = sphi 0, %s22
      %s26 = sphi 0, %s25
      %s42 = sphi 0, %s26
      %s46 = sphi 0, %s46
      %s48 = sphi 0, %s46
      %s49 = sphi 0, %s48
      %s63 = sphi 0, %s49
      %s67 = sphi 0, %s67
      %s69 = sphi 0, %s67
      %s70 = sphi 0, %s69
      %s84 = sphi 0, %s70
      %s90 = sphi 0, %s92
      %s93 = sphi 0, %s90
      %s94 = sphi 0, %s93
      %s110 = sphi 0, %s94
    $region4: #{encoder_forward.5} parent=1 // loop_header_branch
      %15 = sbr.rel (%p13) target = $region8
    $region5: #{encoder_forward.5} parent=1 // loop_body
      %s17 = ssub.s32 %s12, 1
      %s18 = ssub.s32 %s12, 2
      %s19 = sadd.s32 %s12, 1
      %s20 = ssub.s32 %s12, %s19
      %p21 = scmp.eq.s32.totalorder %s20, 0
      %s23 = sadd.s32 %s22, 1
      %s24 = scalar_select %p21, %s22, %s23
      %p27 = pneg %p21
      %p28 = scmp.eq.s32.totalorder %s12, 1
      %p29 = por %p27, %p28
      %p30 = scmp.ne.s32.totalorder %s22, %s25
      %p31 = scmp.eq.s32.totalorder %s12, 0
      %p32 = por %p30, %p31
      %p33 = scmp.ne.s32.totalorder %s22, %s25
      %p34 = scmp.eq.s32.totalorder %s17, 1
      %p35 = por %p33, %p34
      %p36 = scmp.ne.s32.totalorder %s25, %s26
      %p37 = scmp.eq.s32.totalorder %s17, 0
      %p38 = por %p36, %p37
      %p39 = scmp.ne.s32.totalorder %s25, %s26
      %p40 = scmp.eq.s32.totalorder %s18, 1
      %p41 = por %p39, %p40
      %p43 = scmp.ne.s32.totalorder %s26, %s42
      %p44 = scmp.eq.s32.totalorder %s18, 0
      %p45 = por %p43, %p44
      %s47 = sadd.s32 %s46, 1
      %p50 = scmp.eq.s32.totalorder %s12, 1
      %p51 = scmp.ne.s32.totalorder %s46, %s48
      %p52 = scmp.eq.s32.totalorder %s12, 0
      %p53 = por %p51, %p52
      %p54 = scmp.ne.s32.totalorder %s46, %s48
      %p55 = scmp.eq.s32.totalorder %s17, 1
      %p56 = por %p54, %p55
      %p57 = scmp.ne.s32.totalorder %s48, %s49
      %p58 = scmp.eq.s32.totalorder %s17, 0
      %p59 = por %p57, %p58
      %p60 = scmp.ne.s32.totalorder %s48, %s49
      %p61 = scmp.eq.s32.totalorder %s18, 1
      %p62 = por %p60, %p61
      %p64 = scmp.ne.s32.totalorder %s49, %s63
      %p65 = scmp.eq.s32.totalorder %s18, 0
      %p66 = por %p64, %p65
      %s68 = sadd.s32 %s67, 1
      %p71 = scmp.eq.s32.totalorder %s12, 1
      %p72 = scmp.ne.s32.totalorder %s67, %s69
      %p73 = scmp.eq.s32.totalorder %s12, 0
      %p74 = por %p72, %p73
      %p75 = scmp.ne.s32.totalorder %s67, %s69
      %p76 = scmp.eq.s32.totalorder %s17, 1
      %p77 = por %p75, %p76
      %p78 = scmp.ne.s32.totalorder %s69, %s70
      %p79 = scmp.eq.s32.totalorder %s17, 0
      %p80 = por %p78, %p79
      %p81 = scmp.ne.s32.totalorder %s69, %s70
      %p82 = scmp.eq.s32.totalorder %s18, 1
      %p83 = por %p81, %p82
      %p85 = scmp.ne.s32.totalorder %s70, %s84
      %p86 = scmp.eq.s32.totalorder %s18, 0
      %p87 = por %p85, %p86
      %s88 = ssub.s32 %s12, %s19
      %p89 = scmp.eq.s32.totalorder %s88, 0
      %s91 = sadd.s32 %s90, 1
      %s92 = scalar_select %p89, %s90, %s91
      %p95 = pneg %p89
      %p96 = scmp.eq.s32.totalorder %s12, 1
      %p97 = por %p95, %p96
      %p98 = scmp.ne.s32.totalorder %s90, %s93
      %p99 = scmp.eq.s32.totalorder %s12, 0
      %p100 = por %p98, %p99
      %p101 = scmp.ne.s32.totalorder %s90, %s93
      %p102 = scmp.eq.s32.totalorder %s17, 1
      %p103 = por %p101, %p102
      %p104 = scmp.ne.s32.totalorder %s93, %s94
      %p105 = scmp.eq.s32.totalorder %s17, 0
      %p106 = por %p104, %p105
      %p107 = scmp.ne.s32.totalorder %s93, %s94
      %p108 = scmp.eq.s32.totalorder %s18, 1
      %p109 = por %p107, %p108
      %p111 = scmp.ne.s32.totalorder %s94, %s110
      %p112 = scmp.eq.s32.totalorder %s18, 0
      %p113 = por %p111, %p112
      %p114 = scmp.le.s32.totalorder 1, %s12
      %p115 = scmp.lt.s32.totalorder %s12, 3
      %p116 = pnand %p114, %p115
      %p117 = pneg %p116
      // Predicated region
      $region9: #{encoder_forward.5} parent=5 // pred_check
        _
      $region10: #{encoder_forward.5} parent=5 // pred_check_branch
        %119 = sbr.rel (%p116) target = $region12
      $region11: #{encoder_forward.5} parent=5 // pred_region
        %s120 = ssub.s32 %s12, 1
        // Predicated region
        $region13: #{encoder_forward.5} parent=11 // pred_check
          %p121 = pneg %p59
        $region14: #{encoder_forward.5} parent=11 // pred_check_branch
          %123 = sbr.rel (%p121) target = $region16
        $region15: #{encoder_forward.5} parent=11 // pred_region
          _
        $region16: #{encoder_forward.5} parent=11 // pred_fallthru
          _
        // Predicated region
        $region17: #{encoder_forward.5} parent=11 // pred_check
          %p124 = pneg %p80
        $region18: #{encoder_forward.5} parent=11 // pred_check_branch
          %126 = sbr.rel (%p124) target = $region20
        $region19: #{encoder_forward.5} parent=11 // pred_region
          _
        $region20: #{encoder_forward.5} parent=11 // pred_fallthru
          _
      $region12: #{encoder_forward.5} parent=5 // pred_fallthru
        _
      %p127 = scmp.lt.s32.totalorder %s12, 2
      // Predicated region
      $region21: #{encoder_forward.5} parent=5 // pred_check
        %p128 = pneg %p127
      $region22: #{encoder_forward.5} parent=5 // pred_check_branch
        %130 = sbr.rel (%p128) target = $region24
      $region23: #{encoder_forward.5} parent=5 // pred_region
        // Predicated region
        $region25: #{encoder_forward.5} parent=23 // pred_check
          %p131 = pneg %p32
        $region26: #{encoder_forward.5} parent=23 // pred_check_branch
          %133 = sbr.rel (%p131) target = $region28
        $region27: #{encoder_forward.5} parent=23 // pred_region
          %p134 = scmp.lt.s32.totalorder %s12, 1
          %s135 = scalar_select %p134, %s12, 1
          %s136 = smul.addr %s135, 8
          %s137 = scalar_lea.vmem %s0, %s136
        $region28: #{encoder_forward.5} parent=23 // pred_fallthru
          _
      $region24: #{encoder_forward.5} parent=5 // pred_fallthru
        _
      %p138 = scmp.le.s32.totalorder 1, %s12
      %p139 = scmp.lt.s32.totalorder %s12, 3
      %p140 = pnand %p138, %p139
      %p141 = pneg %p140
      // Predicated region
      $region29: #{encoder_forward.5} parent=5 // pred_check
        _
      $region30: #{encoder_forward.5} parent=5 // pred_check_branch
        %143 = sbr.rel (%p140) target = $region32
      $region31: #{encoder_forward.5} parent=5 // pred_region
        %s144 = ssub.s32 %s12, 1
        %p145 = scmp.lt.s32.totalorder %s17, 1
        %s146 = scalar_select %p145, %s17, 1
        %s147 = smul.addr %s146, 8
        %s148 = scalar_lea.vmem %s0, %s147
        %p149 = pneg %p38
        %p150 = pneg %p35
        %p151 = pneg %p59
        %p152 = pneg %p56
        %p153 = pneg %p80
        %p154 = pneg %p77
        %p155 = pneg %p106
        %p156 = pneg %p103
        %s157 = sand.u32 %s93, 1
        %s158 = scalar_lea.sflag [#allocation3], %s157
        %s159 = sand.u32 %s93, 1
        %s160 = smul.addr %s159, 8
        %s161 = scalar_lea.vmem [#allocation2], %s160
        %p162 = scmp.lt.s32.totalorder %s17, 1
        %s163 = scalar_select %p162, %s17, 1
        %s164 = smul.addr %s163, 8
        %s165 = scalar_lea.vmem %s0, %s164
        %v166 = vld [vmem:[%s165] sm:$0xff]
        %v167 = vld [vmem:[%s1] sm:$0xff]
        %v168 = vld [vmem:[%s1 + $0x8] sm:$0xff]
        %v169 = vld [vmem:[%s1 + $0x10] sm:$0xff]
        %v170 = vld [vmem:[%s1 + $0x18] sm:$0xff]
        %v171 = vld [vmem:[%s1 + $0x20] sm:$0xff]
        %v172 = vld [vmem:[%s1 + $0x28] sm:$0xff]
        %v173 = vld [vmem:[%s1 + $0x30] sm:$0xff]
        %v174 = vld [vmem:[%s1 + $0x38] sm:$0xff]
        %v175 = vld [vmem:[%s1 + $0x40] sm:$0xff]
        %v176 = vld [vmem:[%s1 + $0x48] sm:$0xff]
        %v177 = vld [vmem:[%s1 + $0x50] sm:$0xff]
        %v178 = vld [vmem:[%s1 + $0x58] sm:$0xff]
        %v179 = vld [vmem:[%s1 + $0x60] sm:$0xff]
        %v180 = vld [vmem:[%s1 + $0x68] sm:$0xff]
        %v181 = vld [vmem:[%s1 + $0x70] sm:$0xff]
        %v182 = vld [vmem:[%s1 + $0x78] sm:$0xff]
        %v183 = vld [vmem:[%s2] sm:$0x1]
        %v185 = vlaneseq
        %v186 = vshrl.u32 %v185, 7
        %v187 = vsub.s32 0, %v186
        %v188 = vrot.slane %v183, %v187
        %190 = vmatprep.subr.mxu0 0.0
        %191 = vmatpush1.msra.mxu0 %v167
        %192 = vmatprep.subr.mxu0 0.0
        %193 = vmatpush1.msra.mxu0 %v168
        %194 = vmatprep.subr.mxu0 0.0
        %195 = vmatpush1.msra.mxu0 %v169
        %196 = vmatprep.subr.mxu0 0.0
        %197 = vmatpush1.msra.mxu0 %v170
        %198 = vmatprep.subr.mxu0 0.0
        %199 = vmatpush1.msra.mxu0 %v171
        %200 = vmatprep.subr.mxu0 0.0
        %201 = vmatpush1.msra.mxu0 %v172
        %202 = vmatprep.subr.mxu0 0.0
        %203 = vmatpush1.msra.mxu0 %v173
        %204 = vmatprep.subr.mxu0 0.0
        %205 = vmatpush1.msra.mxu0 %v174
        %206 = vmatprep.subr.mxu0 0.0
        %207 = vmatpush1.msra.mxu0 %v175
        %208 = vmatprep.subr.mxu0 0.0
        %209 = vmatpush1.msra.mxu0 %v176
        %210 = vmatprep.subr.mxu0 0.0
        %211 = vmatpush1.msra.mxu0 %v177
        %212 = vmatprep.subr.mxu0 0.0
        %213 = vmatpush1.msra.mxu0 %v178
        %214 = vmatprep.subr.mxu0 0.0
        %215 = vmatpush1.msra.mxu0 %v179
        %216 = vmatprep.subr.mxu0 0.0
        %217 = vmatpush1.msra.mxu0 %v180
        %218 = vmatprep.subr.mxu0 0.0
        %219 = vmatpush1.msra.mxu0 %v181
        %220 = vmatprep.subr.mxu0 0.0
        %221 = vmatpush1.msra.mxu0 %v182
        %222 = vmatprep.subr.mxu0 0.0
        %223 = vmatpush1.msra.mxu0 0.0
        %224 = vmatprep.subr.mxu0 0.0
        %225 = vmatpush1.msra.mxu0 0.0
        %226 = vmatprep.subr.mxu0 0.0
        %227 = vmatpush1.msra.mxu0 0.0
        %228 = vmatprep.subr.mxu0 0.0
        %229 = vmatpush1.msra.mxu0 0.0
        %230 = vmatprep.subr.mxu0 0.0
        %231 = vmatpush1.msra.mxu0 0.0
        %232 = vmatprep.subr.mxu0 0.0
        %233 = vmatpush1.msra.mxu0 0.0
        %234 = vmatprep.subr.mxu0 0.0
        %235 = vmatpush1.msra.mxu0 0.0
        %236 = vmatprep.subr.mxu0 0.0
        %237 = vmatpush1.msra.mxu0 0.0
        %238 = vmatprep.subr.mxu0 0.0
        %239 = vmatpush1.msra.mxu0 0.0
        %240 = vmatprep.subr.mxu0 0.0
        %241 = vmatpush1.msra.mxu0 0.0
        %242 = vmatprep.subr.mxu0 0.0
        %243 = vmatpush1.msra.mxu0 0.0
        %244 = vmatprep.subr.mxu0 0.0
        %245 = vmatpush1.msra.mxu0 0.0
        %246 = vmatprep.subr.mxu0 0.0
        %247 = vmatpush1.msra.mxu0 0.0
        %248 = vmatprep.subr.mxu0 0.0
        %249 = vmatpush1.msra.mxu0 0.0
        %250 = vmatprep.subr.mxu0 0.0
        %251 = vmatpush1.msra.mxu0 0.0
        %252 = vmatprep.subr.mxu0 0.0
        %253 = vmatpush1.msra.mxu0 0.0
        %254 = vmatprep.mubr.f32.mxu0 0.0
        %255 = vmatmul.mubr.f32.gmra.mrb[0].mxu0 %v166
        %v256 = vpop.f32.mrb[0].mxu0
        %v257 = vadd.f32 %v188, %v256
        %v258 = vpop.f32.mrb[0].mxu0
        %259 = vdwg.mxu0
        %260 = vst [vmem:[%s161] sm:$0xff] %v257
        %s261 = sand.u32 %s93, 1
        %s262 = scalar_lea.sflag [#allocation3], %s261
        %s263 = sand.u32 %s93, 1
        %s264 = smul.addr %s263, 8
        %s265 = scalar_lea.vmem [#allocation2], %s264
        // Predicated region
        $region33: #{encoder_forward.5} parent=31 // pred_check
          %p266 = pneg %p103
        $region34: #{encoder_forward.5} parent=31 // pred_check_branch
          %268 = sbr.rel (%p266) target = $region36
        $region35: #{encoder_forward.5} parent=31 // pred_region
          %s270 = ssub.s32 128, 128
          %271 = vsyncadd %s262, %s270
          %s272 = smul.addr %s17, 128
          %s273 = scalar_lea.hbm %s3, %s272
          %s275 = sshll.u32 %s265, 4
          %s276 = int_to_ptr.vmem [resolvable:$true] %s275
          %278 = dma.vmem_to_hbm [thread:$0]  %s276, 128, %s273, %s262
        $region36: #{encoder_forward.5} parent=31 // pred_fallthru
          _
      $region32: #{encoder_forward.5} parent=5 // pred_fallthru
        _
      %p279 = scmp.le.s32.totalorder 2, %s12
      // Predicated region
      $region37: #{encoder_forward.5} parent=5 // pred_check
        %p280 = pneg %p279
      $region38: #{encoder_forward.5} parent=5 // pred_check_branch
        %282 = sbr.rel (%p280) target = $region40
      $region39: #{encoder_forward.5} parent=5 // pred_region
        %s283 = ssub.s32 %s12, 2
        // Predicated region
        $region41: #{encoder_forward.5} parent=39 // pred_check
          %p284 = pneg %p109
        $region42: #{encoder_forward.5} parent=39 // pred_check_branch
          %286 = sbr.rel (%p284) target = $region44
        $region43: #{encoder_forward.5} parent=39 // pred_region
          %s287 = sand.u32 %s94, 1
          %s288 = scalar_lea.sflag [#allocation3], %s287
          %s289 = sand.u32 %s94, 1
          %s290 = smul.addr %s289, 8
          %s291 = scalar_lea.vmem [#allocation2], %s290
          %292 = dma.done %s288, 128
        $region44: #{encoder_forward.5} parent=39 // pred_fallthru
          _
      $region40: #{encoder_forward.5} parent=5 // pred_fallthru
        _
    $region6: #{encoder_forward.5} parent=1 // loop_footer
      %s16 = sadd.s32 1, %s12
    $region7: #{encoder_forward.5} parent=1 // loop_footer_branch
      %11 = sbr.rel target = $region3
    $region8: #{encoder_forward.5} parent=1 // loop_exit
      _
    %293 = vsyncpa [#allocation3], 1
    %s294 = scalar_lea.sflag [#allocation3], 1
    %295 = vsyncpa %s294, 1

// kernel: encoder_forward.3
$region0: #{encoder_forward.3}
  #allocation0 [shape = 'u32[]', space=smem, size = 0x4, offset = 0x4, fixed_abs, tag = 'smem constant byte address 0x4 - core index']
  #allocation1 [shape = 'u32[144,128]{1,0:T(1,128)}', space=vmem, size = 0x12000, scoped, tag = 'internal scratch']
  %s0 = inlined_call_operand.hbm [shape: f32[16,128], index: 0, kind: input, shape index: {}]
  %s1 = inlined_call_operand.hbm [shape: f32[128,384], index: 1, kind: input, shape index: {}]
  %s2 = inlined_call_operand.vmem [shape: f32[1,384], index: 2, kind: input, shape index: {}]
  %s3 = inlined_call_operand.vmem [shape: f32[16,384], index: 3, kind: output, shape index: {}]
  %s4 = sld [smem:[#allocation0]]
  $region53: #{encoder_forward.3} parent=0
    _
  %s6 = ssub.s32 1, %s4
  %s7 = scalar_select 0, %s6, %s4
  $region1: #{encoder_forward.3} parent=0
    #allocation2 [shape = 'u8[8192]{0}', space=vmem, size = 0x2000, scoped, tag = 'input window, operand 0']
    #allocation3 [shape = 's32[2]{0}', space=sflag, size = 0x8, scoped, tag = 'scoped memory for encoder_forward.3']
    #allocation4 [shape = 'u8[196608]{0}', space=vmem, size = 0x30000, scoped, tag = 'input window, operand 1, single buffered']
    #allocation5 [shape = 's32[1]{0}', space=sflag, size = 0x4, scoped, tag = 'scoped memory for encoder_forward.3']
    %8 = vsyncpa [#allocation3], 0
    %s9 = scalar_lea.sflag [#allocation3], 1
    %10 = vsyncpa %s9, 0
    %11 = vsyncpa [#allocation5], 0
    loop: start=0, step=1, limit=4
    $region2: #{encoder_forward.3} parent=1 // loop_pre_header
      _
    $region3: #{encoder_forward.3} parent=1 // loop_header
      %s13 = sphi 0, %s17
      %p14 = scmp.ge.s32.totalorder %s13, 4
      %s23 = sphi 0, %s25
      %s26 = sphi 0, %s23
      %s27 = sphi 0, %s26
      %s43 = sphi 0, %s27
      %s47 = sphi 0, %s47
      %s49 = sphi 0, %s47
      %s50 = sphi 0, %s49
      %s64 = sphi 0, %s50
      %s68 = sphi 0, %s68
      %s70 = sphi 0, %s68
      %s71 = sphi 0, %s70
      %s85 = sphi 0, %s71
      %s91 = sphi 0, %s93
      %s94 = sphi 0, %s91
      %s95 = sphi 0, %s94
      %s111 = sphi 0, %s95
    $region4: #{encoder_forward.3} parent=1 // loop_header_branch
      %16 = sbr.rel (%p14) target = $region8
    $region5: #{encoder_forward.3} parent=1 // loop_body
      %s18 = ssub.s32 %s13, 1
      %s19 = ssub.s32 %s13, 2
      %s20 = sadd.s32 %s13, 1
      %s21 = ssub.s32 %s13, %s20
      %p22 = scmp.eq.s32.totalorder %s21, 0
      %s24 = sadd.s32 %s23, 1
      %s25 = scalar_select %p22, %s23, %s24
      %p28 = pneg %p22
      %p29 = scmp.eq.s32.totalorder %s13, 1
      %p30 = por %p28, %p29
      %p31 = scmp.ne.s32.totalorder %s23, %s26
      %p32 = scmp.eq.s32.totalorder %s13, 0
      %p33 = por %p31, %p32
      %p34 = scmp.ne.s32.totalorder %s23, %s26
      %p35 = scmp.eq.s32.totalorder %s18, 1
      %p36 = por %p34, %p35
      %p37 = scmp.ne.s32.totalorder %s26, %s27
      %p38 = scmp.eq.s32.totalorder %s18, 0
      %p39 = por %p37, %p38
      %p40 = scmp.ne.s32.totalorder %s26, %s27
      %p41 = scmp.eq.s32.totalorder %s19, 1
      %p42 = por %p40, %p41
      %p44 = scmp.ne.s32.totalorder %s27, %s43
      %p45 = scmp.eq.s32.totalorder %s19, 0
      %p46 = por %p44, %p45
      %s48 = sadd.s32 %s47, 1
      %p51 = scmp.eq.s32.totalorder %s13, 1
      %p52 = scmp.ne.s32.totalorder %s47, %s49
      %p53 = scmp.eq.s32.totalorder %s13, 0
      %p54 = por %p52, %p53
      %p55 = scmp.ne.s32.totalorder %s47, %s49
      %p56 = scmp.eq.s32.totalorder %s18, 1
      %p57 = por %p55, %p56
      %p58 = scmp.ne.s32.totalorder %s49, %s50
      %p59 = scmp.eq.s32.totalorder %s18, 0
      %p60 = por %p58, %p59
      %p61 = scmp.ne.s32.totalorder %s49, %s50
      %p62 = scmp.eq.s32.totalorder %s19, 1
      %p63 = por %p61, %p62
      %p65 = scmp.ne.s32.totalorder %s50, %s64
      %p66 = scmp.eq.s32.totalorder %s19, 0
      %p67 = por %p65, %p66
      %s69 = sadd.s32 %s68, 1
      %p72 = scmp.eq.s32.totalorder %s13, 1
      %p73 = scmp.ne.s32.totalorder %s68, %s70
      %p74 = scmp.eq.s32.totalorder %s13, 0
      %p75 = por %p73, %p74
      %p76 = scmp.ne.s32.totalorder %s68, %s70
      %p77 = scmp.eq.s32.totalorder %s18, 1
      %p78 = por %p76, %p77
      %p79 = scmp.ne.s32.totalorder %s70, %s71
      %p80 = scmp.eq.s32.totalorder %s18, 0
      %p81 = por %p79, %p80
      %p82 = scmp.ne.s32.totalorder %s70, %s71
      %p83 = scmp.eq.s32.totalorder %s19, 1
      %p84 = por %p82, %p83
      %p86 = scmp.ne.s32.totalorder %s71, %s85
      %p87 = scmp.eq.s32.totalorder %s19, 0
      %p88 = por %p86, %p87
      %s89 = ssub.s32 %s13, %s20
      %p90 = scmp.eq.s32.totalorder %s89, 0
      %s92 = sadd.s32 %s91, 1
      %s93 = scalar_select %p90, %s91, %s92
      %p96 = pneg %p90
      %p97 = scmp.eq.s32.totalorder %s13, 1
      %p98 = por %p96, %p97
      %p99 = scmp.ne.s32.totalorder %s91, %s94
      %p100 = scmp.eq.s32.totalorder %s13, 0
      %p101 = por %p99, %p100
      %p102 = scmp.ne.s32.totalorder %s91, %s94
      %p103 = scmp.eq.s32.totalorder %s18, 1
      %p104 = por %p102, %p103
      %p105 = scmp.ne.s32.totalorder %s94, %s95
      %p106 = scmp.eq.s32.totalorder %s18, 0
      %p107 = por %p105, %p106
      %p108 = scmp.ne.s32.totalorder %s94, %s95
      %p109 = scmp.eq.s32.totalorder %s19, 1
      %p110 = por %p108, %p109
      %p112 = scmp.ne.s32.totalorder %s95, %s111
      %p113 = scmp.eq.s32.totalorder %s19, 0
      %p114 = por %p112, %p113
      %p115 = scmp.le.s32.totalorder 1, %s13
      %p116 = scmp.lt.s32.totalorder %s13, 3
      %p117 = pnand %p115, %p116
      %p118 = pneg %p117
      // Predicated region
      $region9: #{encoder_forward.3} parent=5 // pred_check
        _
      $region10: #{encoder_forward.3} parent=5 // pred_check_branch
        %120 = sbr.rel (%p117) target = $region12
      $region11: #{encoder_forward.3} parent=5 // pred_region
        %s121 = ssub.s32 %s13, 1
        // Predicated region
        $region13: #{encoder_forward.3} parent=11 // pred_check
          %p122 = pneg %p60
        $region14: #{encoder_forward.3} parent=11 // pred_check_branch
          %124 = sbr.rel (%p122) target = $region16
        $region15: #{encoder_forward.3} parent=11 // pred_region
          %s126 = ssub.s32 6144, 6144
          %127 = vsyncadd [#allocation5], %s126
          %s128 = sshll.u32 [#allocation4], 4
          %s129 = int_to_ptr.vmem [resolvable:$true] %s128
          %134 = dma.hbm_to_vmem [thread:$0]  %s1, 6144, %s129, [#allocation5], 384, 384, 24
        $region16: #{encoder_forward.3} parent=11 // pred_fallthru
          _
        // Predicated region
        $region17: #{encoder_forward.3} parent=11 // pred_check
          %p135 = pneg %p81
        $region18: #{encoder_forward.3} parent=11 // pred_check_branch
          %137 = sbr.rel (%p135) target = $region20
        $region19: #{encoder_forward.3} parent=11 // pred_region
          _
        $region20: #{encoder_forward.3} parent=11 // pred_fallthru
          _
      $region12: #{encoder_forward.3} parent=5 // pred_fallthru
        _
      %p138 = scmp.lt.s32.totalorder %s13, 2
      // Predicated region
      $region21: #{encoder_forward.3} parent=5 // pred_check
        %p139 = pneg %p138
      $region22: #{encoder_forward.3} parent=5 // pred_check_branch
        %141 = sbr.rel (%p139) target = $region24
      $region23: #{encoder_forward.3} parent=5 // pred_region
        // Predicated region
        $region25: #{encoder_forward.3} parent=23 // pred_check
          %p142 = pneg %p33
        $region26: #{encoder_forward.3} parent=23 // pred_check_branch
          %144 = sbr.rel (%p142) target = $region28
        $region27: #{encoder_forward.3} parent=23 // pred_region
          %s145 = sand.u32 %s23, 1
          %s146 = scalar_lea.sflag [#allocation3], %s145
          %s147 = sand.u32 %s23, 1
          %s148 = smul.addr %s147, 8
          %s149 = scalar_lea.vmem [#allocation2], %s148
          %s151 = ssub.s32 128, 128
          %152 = vsyncadd %s146, %s151
          %s153 = smul.addr %s13, 128
          %s154 = scalar_lea.hbm %s0, %s153
          %s156 = sshll.u32 %s149, 4
          %s157 = int_to_ptr.vmem [resolvable:$true] %s156
          %159 = dma.hbm_to_vmem [thread:$0]  %s154, 128, %s157, %s146
        $region28: #{encoder_forward.3} parent=23 // pred_fallthru
          _
      $region24: #{encoder_forward.3} parent=5 // pred_fallthru
        _
      %p160 = scmp.le.s32.totalorder 1, %s13
      %p161 = scmp.lt.s32.totalorder %s13, 3
      %p162 = pnand %p160, %p161
      %p163 = pneg %p162
      // Predicated region
      $region29: #{encoder_forward.3} parent=5 // pred_check
        _
      $region30: #{encoder_forward.3} parent=5 // pred_check_branch
        %165 = sbr.rel (%p162) target = $region32
      $region31: #{encoder_forward.3} parent=5 // pred_region
        %s166 = ssub.s32 %s13, 1
        %s167 = sand.u32 %s26, 1
        %s168 = scalar_lea.sflag [#allocation3], %s167
        %s169 = sand.u32 %s26, 1
        %s170 = smul.addr %s169, 8
        %s171 = scalar_lea.vmem [#allocation2], %s170
        // Predicated region
        $region33: #{encoder_forward.3} parent=31 // pred_check
          %p172 = pneg %p39
        $region34: #{encoder_forward.3} parent=31 // pred_check_branch
          %174 = sbr.rel (%p172) target = $region36
        $region35: #{encoder_forward.3} parent=31 // pred_region
          %175 = dma.done %s168, 128
        $region36: #{encoder_forward.3} parent=31 // pred_fallthru
          _
        // Predicated region
        $region37: #{encoder_forward.3} parent=31 // pred_check
          %p176 = pneg %p60
        $region38: #{encoder_forward.3} parent=31 // pred_check_branch
          %178 = sbr.rel (%p176) target = $region40
        $region39: #{encoder_forward.3} parent=31 // pred_region
          %179 = dma.done [#allocation5], 6144
        $region40: #{encoder_forward.3} parent=31 // pred_fallthru
          _
        %s180 = sand.u32 %s26, 1
        %s181 = scalar_lea.sflag [#allocation3], %s180
        %s182 = sand.u32 %s26, 1
        %s183 = smul.addr %s182, 8
        %s184 = scalar_lea.vmem [#allocation2], %s183
        %p185 = pneg %p39
        %p186 = pneg %p36
        %p187 = pneg %p60
        %p188 = pneg %p57
        %p189 = pneg %p81
        %p190 = pneg %p78
        %p191 = pneg %p107
        %p192 = pneg %p104
        %p193 = scmp.lt.s32.totalorder %s18, 1
        %s194 = scalar_select %p193, %s18, 1
        %s195 = smul.addr %s194, 3
        %s196 = smul.addr %s195, 8
        %s197 = scalar_lea.vmem %s3, %s196
        %p198 = scmp.lt.s32.totalorder %s18, 1
        %s199 = scalar_select %p198, %s18, 1
        %s200 = smul.addr %s199, 3
        %s201 = smul.addr %s200, 8
        %s202 = scalar_lea.vmem %s3, %s201
        %v203 = vld [vmem:[%s171] sm:$0xff]
        %v204 = vld [vmem:[#allocation4] sm:$0xff]
        %v205 = vld [vmem:[#allocation4 + $0x8] sm:$0xff]
        %v206 = vld [vmem:[#allocation4 + $0x10] sm:$0xff]
        %v207 = vld [vmem:[#allocation4 + $0x18] sm:$0xff]
        %v208 = vld [vmem:[#allocation4 + $0x20] sm:$0xff]
        %v209 = vld [vmem:[#allocation4 + $0x28] sm:$0xff]
        %v210 = vld [vmem:[#allocation4 + $0x30] sm:$0xff]
        %v211 = vld [vmem:[#allocation4 + $0x38] sm:$0xff]
        %v212 = vld [vmem:[#allocation4 + $0x40] sm:$0xff]
        %v213 = vld [vmem:[#allocation4 + $0x48] sm:$0xff]
        %v214 = vld [vmem:[#allocation4 + $0x50] sm:$0xff]
        %v215 = vld [vmem:[#allocation4 + $0x58] sm:$0xff]
        %v216 = vld [vmem:[#allocation4 + $0x60] sm:$0xff]
        %v217 = vld [vmem:[#allocation4 + $0x68] sm:$0xff]
        %v218 = vld [vmem:[#allocation4 + $0x70] sm:$0xff]
        %v219 = vld [vmem:[#allocation4 + $0x78] sm:$0xff]
        %v220 = vld [vmem:[#allocation4 + $0x80] sm:$0xff]
        %v221 = vld [vmem:[#allocation4 + $0x88] sm:$0xff]
        %v222 = vld [vmem:[#allocation4 + $0x90] sm:$0xff]
        %v223 = vld [vmem:[#allocation4 + $0x98] sm:$0xff]
        %v224 = vld [vmem:[#allocation4 + $0xa0] sm:$0xff]
        %v225 = vld [vmem:[#allocation4 + $0xa8] sm:$0xff]
        %v226 = vld [vmem:[#allocation4 + $0xb0] sm:$0xff]
        %v227 = vld [vmem:[#allocation4 + $0xb8] sm:$0xff]
        %v228 = vld [vmem:[#allocation4 + $0xc0] sm:$0xff]
        %v229 = vld [vmem:[#allocation4 + $0xc8] sm:$0xff]
        %v230 = vld [vmem:[#allocation4 + $0xd0] sm:$0xff]
        %v231 = vld [vmem:[#allocation4 + $0xd8] sm:$0xff]
        %v232 = vld [vmem:[#allocation4 + $0xe0] sm:$0xff]
        %v233 = vld [vmem:[#allocation4 + $0xe8] sm:$0xff]
        %v234 = vld [vmem:[#allocation4 + $0xf0] sm:$0xff]
        %v235 = vld [vmem:[#allocation4 + $0xf8] sm:$0xff]
        %v236 = vld [vmem:[#allocation4 + $0x100] sm:$0xff]
        %v237 = vld [vmem:[#allocation4 + $0x108] sm:$0xff]
        %v238 = vld [vmem:[#allocation4 + $0x110] sm:$0xff]
        %v239 = vld [vmem:[#allocation4 + $0x118] sm:$0xff]
        %v240 = vld [vmem:[#allocation4 + $0x120] sm:$0xff]
        %v241 = vld [vmem:[#allocation4 + $0x128] sm:$0xff]
        %v242 = vld [vmem:[#allocation4 + $0x130] sm:$0xff]
        %v243 = vld [vmem:[#allocation4 + $0x138] sm:$0xff]
        %v244 = vld [vmem:[#allocation4 + $0x140] sm:$0xff]
        %v245 = vld [vmem:[#allocation4 + $0x148] sm:$0xff]
        %v246 = vld [vmem:[#allocation4 + $0x150] sm:$0xff]
        %v247 = vld [vmem:[#allocation4 + $0x158] sm:$0xff]
        %v248 = vld [vmem:[#allocation4 + $0x160] sm:$0xff]
        %v249 = vld [vmem:[#allocation4 + $0x168] sm:$0xff]
        %v250 = vld [vmem:[#allocation4 + $0x170] sm:$0xff]
        %v251 = vld [vmem:[#allocation4 + $0x178] sm:$0xff]
        %v252 = vld [vmem:[%s2] sm:$0x7]
        %v254 = vlaneseq
        %v255 = vshrl.u32 %v254, 7
        %v256 = vsub.s32 0, %v255
        %v257 = vrot.slane %v252, %v256
        %v258 = vlaneseq
        %v259 = vshrl.u32 %v258, 7
        %v260 = vsub.s32 1, %v259
        %v261 = vrot.slane %v252, %v260
        %v262 = vlaneseq
        %v263 = vshrl.u32 %v262, 7
        %v264 = vsub.s32 2, %v263
        %v265 = vrot.slane %v252, %v264
        %269 = vmatprep.subr.mxu0 %v205
        %270 = vmatpush1.msra.mxu0 %v204
        %271 = vmatprep.subr.mxu0 %v208
        %272 = vmatpush1.msra.mxu0 %v207
        %273 = vmatprep.subr.mxu0 %v211
        %274 = vmatpush1.msra.mxu0 %v210
        %275 = vmatprep.subr.mxu0 %v214
        %276 = vmatpush1.msra.mxu0 %v213
        %277 = vmatprep.subr.mxu0 %v217
        %278 = vmatpush1.msra.mxu0 %v216
        %279 = vmatprep.subr.mxu0 %v220
        %280 = vmatpush1.msra.mxu0 %v219
        %281 = vmatprep.subr.mxu0 %v223
        %282 = vmatpush1.msra.mxu0 %v222
        %283 = vmatprep.subr.mxu0 %v226
        %284 = vmatpush1.msra.mxu0 %v225
        %285 = vmatprep.subr.mxu0 %v229
        %286 = vmatpush1.msra.mxu0 %v228
        %287 = vmatprep.subr.mxu0 %v232
        %288 = vmatpush1.msra.mxu0 %v231
        %289 = vmatprep.subr.mxu0 %v235
        %290 = vmatpush1.msra.mxu0 %v234
        %291 = vmatprep.subr.mxu0 %v238
        %292 = vmatpush1.msra.mxu0 %v237
        %293 = vmatprep.subr.mxu0 %v241
        %294 = vmatpush1.msra.mxu0 %v240
        %295 = vmatprep.subr.mxu0 %v244
        %296 = vmatpush1.msra.mxu0 %v243
        %297 = vmatprep.subr.mxu0 %v247
        %298 = vmatpush1.msra.mxu0 %v246
        %299 = vmatprep.subr.mxu0 %v250
        %300 = vmatpush1.msra.mxu0 %v249
        %301 = vmatprep.subr.mxu0 0.0
        %302 = vmatpush1.msra.mxu0 0.0
        %303 = vmatprep.subr.mxu0 0.0
        %304 = vmatpush1.msra.mxu0 0.0
        %305 = vmatprep.subr.mxu0 0.0
        %306 = vmatpush1.msra.mxu0 0.0
        %307 = vmatprep.subr.mxu0 0.0
        %308 = vmatpush1.msra.mxu0 0.0
        %309 = vmatprep.subr.mxu0 0.0
        %310 = vmatpush1.msra.mxu0 0.0
        %311 = vmatprep.subr.mxu0 0.0
        %312 = vmatpush1.msra.mxu0 0.0
        %313 = vmatprep.subr.mxu0 0.0
        %314 = vmatpush1.msra.mxu0 0.0
        %315 = vmatprep.subr.mxu0 0.0
        %316 = vmatpush1.msra.mxu0 0.0
        %317 = vmatprep.subr.mxu0 0.0
        %318 = vmatpush1.msra.mxu0 0.0
        %319 = vmatprep.subr.mxu0 0.0
        %320 = vmatpush1.msra.mxu0 0.0
        %321 = vmatprep.subr.mxu0 0.0
        %322 = vmatpush1.msra.mxu0 0.0
        %323 = vmatprep.subr.mxu0 0.0
        %324 = vmatpush1.msra.mxu0 0.0
        %325 = vmatprep.subr.mxu0 0.0
        %326 = vmatpush1.msra.mxu0 0.0
        %327 = vmatprep.subr.mxu0 0.0
        %328 = vmatpush1.msra.mxu0 0.0
        %329 = vmatprep.subr.mxu0 0.0
        %330 = vmatpush1.msra.mxu0 0.0
        %331 = vmatprep.subr.mxu0 0.0
        %332 = vmatpush1.msra.mxu0 0.0
        %333 = vmatprep.mubr.f32.mxu0 0.0
        %334 = vmatmul.mubr.f32.gmra.mrb[0].mxu0 %v203
        %v335 = vpop.f32.mrb[0].mxu0
        %v336 = vadd.f32 %v257, %v335
        %v337 = vpop.f32.mrb[0].mxu0
        %v338 = vadd.f32 %v261, %v337
        %339 = vdwg.mxu0
        %340 = vmatprep.subr.mxu0 0.0
        %341 = vmatpush1.msra.mxu0 %v206
        %342 = vmatprep.subr.mxu0 0.0
        %343 = vmatpush1.msra.mxu0 %v209
        %344 = vmatprep.subr.mxu0 0.0
        %345 = vmatpush1.msra.mxu0 %v212
        %346 = vmatprep.subr.mxu0 0.0
        %347 = vmatpush1.msra.mxu0 %v215
        %348 = vmatprep.subr.mxu0 0.0
        %349 = vmatpush1.msra.mxu0 %v218
        %350 = vmatprep.subr.mxu0 0.0
        %351 = vmatpush1.msra.mxu0 %v221
        %352 = vmatprep.subr.mxu0 0.0
        %353 = vmatpush1.msra.mxu0 %v224
        %354 = vmatprep.subr.mxu0 0.0
        %355 = vmatpush1.msra.mxu0 %v227
        %356 = vmatprep.subr.mxu0 0.0
        %357 = vmatpush1.msra.mxu0 %v230
        %358 = vmatprep.subr.mxu0 0.0
        %359 = vmatpush1.msra.mxu0 %v233
        %360 = vmatprep.subr.mxu0 0.0
        %361 = vmatpush1.msra.mxu0 %v236
        %362 = vmatprep.subr.mxu0 0.0
        %363 = vmatpush1.msra.mxu0 %v239
        %364 = vmatprep.subr.mxu0 0.0
        %365 = vmatpush1.msra.mxu0 %v242
        %366 = vmatprep.subr.mxu0 0.0
        %367 = vmatpush1.msra.mxu0 %v245
        %368 = vmatprep.subr.mxu0 0.0
        %369 = vmatpush1.msra.mxu0 %v248
        %370 = vmatprep.subr.mxu0 0.0
        %371 = vmatpush1.msra.mxu0 %v251
        %372 = vmatprep.subr.mxu0 0.0
        %373 = vmatpush1.msra.mxu0 0.0
        %374 = vmatprep.subr.mxu0 0.0
        %375 = vmatpush1.msra.mxu0 0.0
        %376 = vmatprep.subr.mxu0 0.0
        %377 = vmatpush1.msra.mxu0 0.0
        %378 = vmatprep.subr.mxu0 0.0
        %379 = vmatpush1.msra.mxu0 0.0
        %380 = vmatprep.subr.mxu0 0.0
        %381 = vmatpush1.msra.mxu0 0.0
        %382 = vmatprep.subr.mxu0 0.0
        %383 = vmatpush1.msra.mxu0 0.0
        %384 = vmatprep.subr.mxu0 0.0
        %385 = vmatpush1.msra.mxu0 0.0
        %386 = vmatprep.subr.mxu0 0.0
        %387 = vmatpush1.msra.mxu0 0.0
        %388 = vmatprep.subr.mxu0 0.0
        %389 = vmatpush1.msra.mxu0 0.0
        %390 = vmatprep.subr.mxu0 0.0
        %391 = vmatpush1.msra.mxu0 0.0
        %392 = vmatprep.subr.mxu0 0.0
        %393 = vmatpush1.msra.mxu0 0.0
        %394 = vmatprep.subr.mxu0 0.0
        %395 = vmatpush1.msra.mxu0 0.0
        %396 = vmatprep.subr.mxu0 0.0
        %397 = vmatpush1.msra.mxu0 0.0
        %398 = vmatprep.subr.mxu0 0.0
        %399 = vmatpush1.msra.mxu0 0.0
        %400 = vmatprep.subr.mxu0 0.0
        %401 = vmatpush1.msra.mxu0 0.0
        %402 = vmatprep.subr.mxu0 0.0
        %403 = vmatpush1.msra.mxu0 0.0
        %404 = vmatprep.mubr.f32.mxu0 0.0
        %405 = vmatmul.mubr.f32.gmra.mrb[0].mxu0 %v203
        %v406 = vpop.f32.mrb[0].mxu0
        %v407 = vadd.f32 %v265, %v406
        %v408 = vpop.f32.mrb[0].mxu0
        %409 = vdwg.mxu0
        %410 = vst [vmem:[%s202] sm:$0xff] %v336
        %411 = vst [vmem:[%s202 + $0x8] sm:$0xff] %v338
        %412 = vst [vmem:[%s202 + $0x10] sm:$0xff] %v407
        %p413 = scmp.lt.s32.totalorder %s18, 1
        %s414 = scalar_select %p413, %s18, 1
        %s415 = smul.addr %s414, 3
        %s416 = smul.addr %s415, 8
        %s417 = scalar_lea.vmem %s3, %s416
        // Predicated region
        $region41: #{encoder_forward.3} parent=31 // pred_check
          %p418 = pneg %p104
        $region42: #{encoder_forward.3} parent=31 // pred_check_branch
          %420 = sbr.rel (%p418) target = $region44
        $region43: #{encoder_forward.3} parent=31 // pred_region
          _
        $region44: #{encoder_forward.3} parent=31 // pred_fallthru
          _
      $region32: #{encoder_forward.3} parent=5 // pred_fallthru
        _
      %p421 = scmp.le.s32.totalorder 2, %s13
      // Predicated region
      $region45: #{encoder_forward.3} parent=5 // pred_check
        %p422 = pneg %p421
      $region46: #{encoder_forward.3} parent=5 // pred_check_branch
        %424 = sbr.rel (%p422) target = $region48
      $region47: #{encoder_forward.3} parent=5 // pred_region
        %s425 = ssub.s32 %s13, 2
        // Predicated region
        $region49: #{encoder_forward.3} parent=47 // pred_check
          %p426 = pneg %p110
        $region50: #{encoder_forward.3} parent=47 // pred_check_branch
          %428 = sbr.rel (%p426) target = $region52
        $region51: #{encoder_forward.3} parent=47 // pred_region
          %p429 = scmp.lt.s32.totalorder %s19, 1
          %s430 = scalar_select %p429, %s19, 1
          %s431 = smul.addr %s430, 3
          %s432 = smul.addr %s431, 8
          %s433 = scalar_lea.vmem %s3, %s432
        $region52: #{encoder_forward.3} parent=47 // pred_fallthru
          _
      $region48: #{encoder_forward.3} parent=5 // pred_fallthru
        _
    $region6: #{encoder_forward.3} parent=1 // loop_footer
      %s17 = sadd.s32 1, %s13
    $region7: #{encoder_forward.3} parent=1 // loop_footer_branch
      %12 = sbr.rel target = $region3
    $region8: #{encoder_forward.3} parent=1 // loop_exit
      _
    %434 = vsyncpa [#allocation3], 1
    %s435 = scalar_lea.sflag [#allocation3], 1
    %436 = vsyncpa %s435, 1
    %437 = vsyncpa [#allocation5], 1

// kernel: encoder_forward.4
$region0: #{encoder_forward.4}
  #allocation0 [shape = 'u32[]', space=smem, size = 0x4, offset = 0x4, fixed_abs, tag = 'smem constant byte address 0x4 - core index']
  #allocation1 [shape = 'u32[144,128]{1,0:T(1,128)}', space=vmem, size = 0x12000, scoped, tag = 'internal scratch']
  %s0 = inlined_call_operand.vmem [shape: f32[32,8,8], index: 0, kind: input, shape index: {}]
  %s1 = inlined_call_operand.vmem [shape: f32[32,8,8], index: 1, kind: input, shape index: {}]
  %s2 = inlined_call_operand.vmem [shape: f32[32,8,8], index: 2, kind: input, shape index: {}]
  %s3 = inlined_call_operand.vmem [shape: f32[32,8,8], index: 3, kind: output, shape index: {}]
  %s4 = sld [smem:[#allocation0]]
  $region45: #{encoder_forward.4} parent=0
    _
  %s6 = ssub.s32 1, %s4
  %s7 = scalar_select 0, %s6, %s4
  loop: start=0, step=1, limit=4
  $region2: #{encoder_forward.4} parent=0 // loop_pre_header
    _
  $region3: #{encoder_forward.4} parent=0 // loop_header
    %s9 = sphi 0, %s13
    %p10 = scmp.ge.s32.totalorder %s9, 4
    %s19 = sphi 0, %s21
    %s22 = sphi 0, %s19
    %s23 = sphi 0, %s22
    %s39 = sphi 0, %s23
    %s45 = sphi 0, %s47
    %s48 = sphi 0, %s45
    %s49 = sphi 0, %s48
    %s65 = sphi 0, %s49
    %s71 = sphi 0, %s73
    %s74 = sphi 0, %s71
    %s75 = sphi 0, %s74
    %s91 = sphi 0, %s75
    %s97 = sphi 0, %s99
    %s100 = sphi 0, %s97
    %s101 = sphi 0, %s100
    %s117 = sphi 0, %s101
  $region4: #{encoder_forward.4} parent=0 // loop_header_branch
    %12 = sbr.rel (%p10) target = $region8
  $region5: #{encoder_forward.4} parent=0 // loop_body
    %s14 = ssub.s32 %s9, 1
    %s15 = ssub.s32 %s9, 2
    %s16 = sadd.s32 %s9, 1
    %s17 = ssub.s32 %s9, %s16
    %p18 = scmp.eq.s32.totalorder %s17, 0
    %s20 = sadd.s32 %s19, 1
    %s21 = scalar_select %p18, %s19, %s20
    %p24 = pneg %p18
    %p25 = scmp.eq.s32.totalorder %s9, 1
    %p26 = por %p24, %p25
    %p27 = scmp.ne.s32.totalorder %s19, %s22
    %p28 = scmp.eq.s32.totalorder %s9, 0
    %p29 = por %p27, %p28
    %p30 = scmp.ne.s32.totalorder %s19, %s22
    %p31 = scmp.eq.s32.totalorder %s14, 1
    %p32 = por %p30, %p31
    %p33 = scmp.ne.s32.totalorder %s22, %s23
    %p34 = scmp.eq.s32.totalorder %s14, 0
    %p35 = por %p33, %p34
    %p36 = scmp.ne.s32.totalorder %s22, %s23
    %p37 = scmp.eq.s32.totalorder %s15, 1
    %p38 = por %p36, %p37
    %p40 = scmp.ne.s32.totalorder %s23, %s39
    %p41 = scmp.eq.s32.totalorder %s15, 0
    %p42 = por %p40, %p41
    %s43 = ssub.s32 %s9, %s16
    %p44 = scmp.eq.s32.totalorder %s43, 0
    %s46 = sadd.s32 %s45, 1
    %s47 = scalar_select %p44, %s45, %s46
    %p50 = pneg %p44
    %p51 = scmp.eq.s32.totalorder %s9, 1
    %p52 = por %p50, %p51
    %p53 = scmp.ne.s32.totalorder %s45, %s48
    %p54 = scmp.eq.s32.totalorder %s9, 0
    %p55 = por %p53, %p54
    %p56 = scmp.ne.s32.totalorder %s45, %s48
    %p57 = scmp.eq.s32.totalorder %s14, 1
    %p58 = por %p56, %p57
    %p59 = scmp.ne.s32.totalorder %s48, %s49
    %p60 = scmp.eq.s32.totalorder %s14, 0
    %p61 = por %p59, %p60
    %p62 = scmp.ne.s32.totalorder %s48, %s49
    %p63 = scmp.eq.s32.totalorder %s15, 1
    %p64 = por %p62, %p63
    %p66 = scmp.ne.s32.totalorder %s49, %s65
    %p67 = scmp.eq.s32.totalorder %s15, 0
    %p68 = por %p66, %p67
    %s69 = ssub.s32 %s9, %s16
    %p70 = scmp.eq.s32.totalorder %s69, 0
    %s72 = sadd.s32 %s71, 1
    %s73 = scalar_select %p70, %s71, %s72
    %p76 = pneg %p70
    %p77 = scmp.eq.s32.totalorder %s9, 1
    %p78 = por %p76, %p77
    %p79 = scmp.ne.s32.totalorder %s71, %s74
    %p80 = scmp.eq.s32.totalorder %s9, 0
    %p81 = por %p79, %p80
    %p82 = scmp.ne.s32.totalorder %s71, %s74
    %p83 = scmp.eq.s32.totalorder %s14, 1
    %p84 = por %p82, %p83
    %p85 = scmp.ne.s32.totalorder %s74, %s75
    %p86 = scmp.eq.s32.totalorder %s14, 0
    %p87 = por %p85, %p86
    %p88 = scmp.ne.s32.totalorder %s74, %s75
    %p89 = scmp.eq.s32.totalorder %s15, 1
    %p90 = por %p88, %p89
    %p92 = scmp.ne.s32.totalorder %s75, %s91
    %p93 = scmp.eq.s32.totalorder %s15, 0
    %p94 = por %p92, %p93
    %s95 = ssub.s32 %s9, %s16
    %p96 = scmp.eq.s32.totalorder %s95, 0
    %s98 = sadd.s32 %s97, 1
    %s99 = scalar_select %p96, %s97, %s98
    %p102 = pneg %p96
    %p103 = scmp.eq.s32.totalorder %s9, 1
    %p104 = por %p102, %p103
    %p105 = scmp.ne.s32.totalorder %s97, %s100
    %p106 = scmp.eq.s32.totalorder %s9, 0
    %p107 = por %p105, %p106
    %p108 = scmp.ne.s32.totalorder %s97, %s100
    %p109 = scmp.eq.s32.totalorder %s14, 1
    %p110 = por %p108, %p109
    %p111 = scmp.ne.s32.totalorder %s100, %s101
    %p112 = scmp.eq.s32.totalorder %s14, 0
    %p113 = por %p111, %p112
    %p114 = scmp.ne.s32.totalorder %s100, %s101
    %p115 = scmp.eq.s32.totalorder %s15, 1
    %p116 = por %p114, %p115
    %p118 = scmp.ne.s32.totalorder %s101, %s117
    %p119 = scmp.eq.s32.totalorder %s15, 0
    %p120 = por %p118, %p119
    %p121 = scmp.le.s32.totalorder 1, %s9
    %p122 = scmp.lt.s32.totalorder %s9, 3
    %p123 = pnand %p121, %p122
    %p124 = pneg %p123
    // Predicated region
    $region9: #{encoder_forward.4} parent=5 // pred_check
      _
    $region10: #{encoder_forward.4} parent=5 // pred_check_branch
      %126 = sbr.rel (%p123) target = $region12
    $region11: #{encoder_forward.4} parent=5 // pred_region
      %s127 = ssub.s32 %s9, 1
    $region12: #{encoder_forward.4} parent=5 // pred_fallthru
      _
    %p128 = scmp.lt.s32.totalorder %s9, 2
    // Predicated region
    $region13: #{encoder_forward.4} parent=5 // pred_check
      %p129 = pneg %p128
    $region14: #{encoder_forward.4} parent=5 // pred_check_branch
      %131 = sbr.rel (%p129) target = $region16
    $region15: #{encoder_forward.4} parent=5 // pred_region
      // Predicated region
      $region17: #{encoder_forward.4} parent=15 // pred_check
        %p132 = pneg %p29
      $region18: #{encoder_forward.4} parent=15 // pred_check_branch
        %134 = sbr.rel (%p132) target = $region20
      $region19: #{encoder_forward.4} parent=15 // pred_region
        %s135 = smul.u32 16, %s9
        %p136 = scmp.lt.s32.totalorder %s135, 31
        %s137 = scalar_select %p136, %s135, 31
        %s138 = smul.addr %s137, 8
        %s139 = scalar_lea.vmem %s0, %s138
        %s140 = smul.u32 16, %s9
      $region20: #{encoder_forward.4} parent=15 // pred_fallthru
        _
      // Predicated region
      $region21: #{encoder_forward.4} parent=15 // pred_check
        %p141 = pneg %p55
      $region22: #{encoder_forward.4} parent=15 // pred_check_branch
        %143 = sbr.rel (%p141) target = $region24
      $region23: #{encoder_forward.4} parent=15 // pred_region
        %s144 = smul.u32 16, %s9
        %p145 = scmp.lt.s32.totalorder %s144, 31
        %s146 = scalar_select %p145, %s144, 31
        %s147 = smul.addr %s146, 8
        %s148 = scalar_lea.vmem %s1, %s147
        %s149 = smul.u32 16, %s9
      $region24: #{encoder_forward.4} parent=15 // pred_fallthru
        _
      // Predicated region
      $region25: #{encoder_forward.4} parent=15 // pred_check
        %p150 = pneg %p81
      $region26: #{encoder_forward.4} parent=15 // pred_check_branch
        %152 = sbr.rel (%p150) target = $region28
      $region27: #{encoder_forward.4} parent=15 // pred_region
        %s153 = smul.u32 16, %s9
        %p154 = scmp.lt.s32.totalorder %s153, 31
        %s155 = scalar_select %p154, %s153, 31
        %s156 = smul.addr %s155, 8
        %s157 = scalar_lea.vmem %s2, %s156
        %s158 = smul.u32 16, %s9
      $region28: #{encoder_forward.4} parent=15 // pred_fallthru
        _
    $region16: #{encoder_forward.4} parent=5 // pred_fallthru
      _
    %p159 = scmp.le.s32.totalorder 1, %s9
    %p160 = scmp.lt.s32.totalorder %s9, 3
    %p161 = pnand %p159, %p160
    %p162 = pneg %p161
    // Predicated region
    $region29: #{encoder_forward.4} parent=5 // pred_check
      _
    $region30: #{encoder_forward.4} parent=5 // pred_check_branch
      %164 = sbr.rel (%p161) target = $region32
    $region31: #{encoder_forward.4} parent=5 // pred_region
      %s165 = ssub.s32 %s9, 1
      %s166 = smul.u32 16, %s14
      %p167 = scmp.lt.s32.totalorder %s166, 31
      %s168 = scalar_select %p167, %s166, 31
      %s169 = smul.addr %s168, 8
      %s170 = scalar_lea.vmem %s0, %s169
      %p171 = pneg %p35
      %p172 = pneg %p32
      %s173 = smul.u32 16, %s14
      %p174 = scmp.lt.s32.totalorder %s173, 31
      %s175 = scalar_select %p174, %s173, 31
      %s176 = smul.addr %s175, 8
      %s177 = scalar_lea.vmem %s1, %s176
      %p178 = pneg %p61
      %p179 = pneg %p58
      %s180 = smul.u32 16, %s14
      %p181 = scmp.lt.s32.totalorder %s180, 31
      %s182 = scalar_select %p181, %s180, 31
      %s183 = smul.addr %s182, 8
      %s184 = scalar_lea.vmem %s2, %s183
      %p185 = pneg %p87
      %p186 = pneg %p84
      %p187 = pneg %p113
      %p188 = pneg %p110
      %s189 = smul.u32 16, %s14
      %p190 = scmp.lt.s32.totalorder %s189, 31
      %s191 = scalar_select %p190, %s189, 31
      %s192 = smul.addr %s191, 8
      %s193 = scalar_lea.vmem %s3, %s192
      %s194 = smul.u32 16, %s14
      %p195 = scmp.lt.s32.totalorder %s194, 31
      %s196 = scalar_select %p195, %s194, 31
      %s197 = smul.addr %s196, 8
      %s198 = scalar_lea.vmem %s0, %s197
      %s199 = smul.u32 16, %s14
      %s200 = smul.u32 16, %s14
      %p201 = scmp.lt.s32.totalorder %s200, 31
      %s202 = scalar_select %p201, %s200, 31
      %s203 = smul.addr %s202, 8
      %s204 = scalar_lea.vmem %s1, %s203
      %s205 = smul.u32 16, %s14
      %s206 = smul.u32 16, %s14
      %p207 = scmp.lt.s32.totalorder %s206, 31
      %s208 = scalar_select %p207, %s206, 31
      %s209 = smul.addr %s208, 8
      %s210 = scalar_lea.vmem %s2, %s209
      %s211 = smul.u32 16, %s14
      %s212 = smul.u32 16, %s14
      %p213 = scmp.lt.s32.totalorder %s212, 31
      %s214 = scalar_select %p213, %s212, 31
      %s215 = smul.addr %s214, 8
      %s216 = scalar_lea.vmem %s3, %s215
      %s217 = smul.u32 16, %s14
      %v218 = vld [vmem:[%s198] sm:$0xff]
      %v219 = vld [vmem:[%s198 + $0x8] sm:$0xff]
      %v220 = vld [vmem:[%s198 + $0x10] sm:$0xff]
      %v221 = vld [vmem:[%s198 + $0x18] sm:$0xff]
      %v222 = vld [vmem:[%s198 + $0x20] sm:$0xff]
      %v223 = vld [vmem:[%s198 + $0x28] sm:$0xff]
      %v224 = vld [vmem:[%s198 + $0x30] sm:$0xff]
      %v225 = vld [vmem:[%s198 + $0x38] sm:$0xff]
      %v226 = vld [vmem:[%s198 + $0x40] sm:$0xff]
      %v227 = vld [vmem:[%s198 + $0x48] sm:$0xff]
      %v228 = vld [vmem:[%s198 + $0x50] sm:$0xff]
      %v229 = vld [vmem:[%s198 + $0x58] sm:$0xff]
      %v230 = vld [vmem:[%s198 + $0x60] sm:$0xff]
      %v231 = vld [vmem:[%s198 + $0x68] sm:$0xff]
      %v232 = vld [vmem:[%s198 + $0x70] sm:$0xff]
      %v233 = vld [vmem:[%s198 + $0x78] sm:$0xff]
      %v234 = vld [vmem:[%s204] sm:$0xff]
      %v235 = vld [vmem:[%s204 + $0x8] sm:$0xff]
      %v236 = vld [vmem:[%s204 + $0x10] sm:$0xff]
      %v237 = vld [vmem:[%s204 + $0x18] sm:$0xff]
      %v238 = vld [vmem:[%s204 + $0x20] sm:$0xff]
      %v239 = vld [vmem:[%s204 + $0x28] sm:$0xff]
      %v240 = vld [vmem:[%s204 + $0x30] sm:$0xff]
      %v241 = vld [vmem:[%s204 + $0x38] sm:$0xff]
      %v242 = vld [vmem:[%s204 + $0x40] sm:$0xff]
      %v243 = vld [vmem:[%s204 + $0x48] sm:$0xff]
      %v244 = vld [vmem:[%s204 + $0x50] sm:$0xff]
      %v245 = vld [vmem:[%s204 + $0x58] sm:$0xff]
      %v246 = vld [vmem:[%s204 + $0x60] sm:$0xff]
      %v247 = vld [vmem:[%s204 + $0x68] sm:$0xff]
      %v248 = vld [vmem:[%s204 + $0x70] sm:$0xff]
      %v249 = vld [vmem:[%s204 + $0x78] sm:$0xff]
      %v250 = vld [vmem:[%s210] sm:$0xff]
      %v251 = vld [vmem:[%s210 + $0x8] sm:$0xff]
      %v252 = vld [vmem:[%s210 + $0x10] sm:$0xff]
      %v253 = vld [vmem:[%s210 + $0x18] sm:$0xff]
      %v254 = vld [vmem:[%s210 + $0x20] sm:$0xff]
      %v255 = vld [vmem:[%s210 + $0x28] sm:$0xff]
      %v256 = vld [vmem:[%s210 + $0x30] sm:$0xff]
      %v257 = vld [vmem:[%s210 + $0x38] sm:$0xff]
      %v258 = vld [vmem:[%s210 + $0x40] sm:$0xff]
      %v259 = vld [vmem:[%s210 + $0x48] sm:$0xff]
      %v260 = vld [vmem:[%s210 + $0x50] sm:$0xff]
      %v261 = vld [vmem:[%s210 + $0x58] sm:$0xff]
      %v262 = vld [vmem:[%s210 + $0x60] sm:$0xff]
      %v263 = vld [vmem:[%s210 + $0x68] sm:$0xff]
      %v264 = vld [vmem:[%s210 + $0x70] sm:$0xff]
      %v265 = vld [vmem:[%s210 + $0x78] sm:$0xff]
      %vm266 = vcmask 64512
      %v268 = vsel %vm266, %v218, 0
      %v271 = vsel %vm266, %v234, 0
      %273 = vmatprep.subr.mxu0 0.0
      %274 = vmatpush1.xpose.msra.mxu0 %v271
      %275 = vmatprep.subr.mxu0 0.0
      %276 = vmatpush1.xpose.msra.mxu0 0.0
      %277 = vmatprep.subr.mxu0 0.0
      %278 = vmatpush1.xpose.msra.mxu0 0.0
      %279 = vmatprep.subr.mxu0 0.0
      %280 = vmatpush1.xpose.msra.mxu0 0.0
      %281 = vmatprep.subr.mxu0 0.0
      %282 = vmatpush1.xpose.msra.mxu0 0.0
      %283 = vmatprep.subr.mxu0 0.0
      %284 = vmatpush1.xpose.msra.mxu0 0.0
      %285 = vmatprep.subr.mxu0 0.0
      %286 = vmatpush1.xpose.msra.mxu0 0.0
      %287 = vmatprep.subr.mxu0 0.0
      %288 = vmatpush1.xpose.msra.mxu0 0.0
      %289 = vmatprep.subr.mxu0 0.0
      %290 = vmatpush1.xpose.msra.mxu0 0.0
      %291 = vmatprep.subr.mxu0 0.0
      %292 = vmatpush1.xpose.msra.mxu0 0.0
      %293 = vmatprep.subr.mxu0 0.0
      %294 = vmatpush1.xpose.msra.mxu0 0.0
      %295 = vmatprep.subr.mxu0 0.0
      %296 = vmatpush1.xpose.msra.mxu0 0.0
      %297 = vmatprep.subr.mxu0 0.0
      %298 = vmatpush1.xpose.msra.mxu0 0.0
      %299 = vmatprep.subr.mxu0 0.0
      %300 = vmatpush1.xpose.msra.mxu0 0.0
      %301 = vmatprep.subr.mxu0 0.0
      %302 = vmatpush1.xpose.msra.mxu0 0.0
      %303 = vmatprep.subr.mxu0 0.0
      %304 = vmatpush1.xpose.msra.mxu0 0.0
      %305 = vmatprep.subr.mxu0 0.0
      %306 = vmatpush1.xpose.msra.mxu0 0.0
      %307 = vmatprep.subr.mxu0 0.0
      %308 = vmatpush1.xpose.msra.mxu0 0.0
      %309 = vmatprep.subr.mxu0 0.0
      %310 = vmatpush1.xpose.msra.mxu0 0.0
      %311 = vmatprep.subr.mxu0 0.0
      %312 = vmatpush1.xpose.msra.mxu0 0.0
      %313 = vmatprep.subr.mxu0 0.0
      %314 = vmatpush1.xpose.msra.mxu0 0.0
      %315 = vmatprep.subr.mxu0 0.0
      %316 = vmatpush1.xpose.msra.mxu0 0.0
      %317 = vmatprep.subr.mxu0 0.0
      %318 = vmatpush1.xpose.msra.mxu0 0.0
      %319 = vmatprep.subr.mxu0 0.0
      %320 = vmatpush1.xpose.msra.mxu0 0.0
      %321 = vmatprep.subr.mxu0 0.0
      %322 = vmatpush1.xpose.msra.mxu0 0.0
      %323 = vmatprep.subr.mxu0 0.0
      %324 = vmatpush1.xpose.msra.mxu0 0.0
      %325 = vmatprep.subr.mxu0 0.0
      %326 = vmatpush1.xpose.msra.mxu0 0.0
      %327 = vmatprep.subr.mxu0 0.0
      %328 = vmatpush1.xpose.msra.mxu0 0.0
      %329 = vmatprep.subr.mxu0 0.0
      %330 = vmatpush1.xpose.msra.mxu0 0.0
      %331 = vmatprep.subr.mxu0 0.0
      %332 = vmatpush1.xpose.msra.mxu0 0.0
      %333 = vmatprep.subr.mxu0 0.0
      %334 = vmatpush1.xpose.msra.mxu0 0.0
      %335 = vmatprep.subr.mxu0 0.0
      %336 = vmatpush1.xpose.msra.mxu0 0.0
      %337 = vmatprep.mubr.f32.mxu0 0.0
      %338 = vmatmul.mubr.f32.gmra.mrb[0].mxu0 %v268
      %v339 = vpop.f32.mrb[0].mxu0
      %v340 = vadd.f32 0.0, %v339
      %v341 = vpop.f32.mrb[0].mxu0
      %342 = vdwg.mxu0
      %v344 = vsel %vm266, %v219, 0
      %v347 = vsel %vm266, %v235, 0
      %349 = vmatprep.subr.mxu0 0.0
      %350 = vmatpush1.xpose.msra.mxu0 %v347
      %351 = vmatprep.subr.mxu0 0.0
      %352 = vmatpush1.xpose.msra.mxu0 0.0
      %353 = vmatprep.subr.mxu0 0.0
      %354 = vmatpush1.xpose.msra.mxu0 0.0
      %355 = vmatprep.subr.mxu0 0.0
      %356 = vmatpush1.xpose.msra.mxu0 0.0
      %357 = vmatprep.subr.mxu0 0.0
      %358 = vmatpush1.xpose.msra.mxu0 0.0
      %359 = vmatprep.subr.mxu0 0.0
      %360 = vmatpush1.xpose.msra.mxu0 0.0
      %361 = vmatprep.subr.mxu0 0.0
      %362 = vmatpush1.xpose.msra.mxu0 0.0
      %363 = vmatprep.subr.mxu0 0.0
      %364 = vmatpush1.xpose.msra.mxu0 0.0
      %365 = vmatprep.subr.mxu0 0.0
      %366 = vmatpush1.xpose.msra.mxu0 0.0
      %367 = vmatprep.subr.mxu0 0.0
      %368 = vmatpush1.xpose.msra.mxu0 0.0
      %369 = vmatprep.subr.mxu0 0.0
      %370 = vmatpush1.xpose.msra.mxu0 0.0
      %371 = vmatprep.subr.mxu0 0.0
      %372 = vmatpush1.xpose.msra.mxu0 0.0
      %373 = vmatprep.subr.mxu0 0.0
      %374 = vmatpush1.xpose.msra.mxu0 0.0
      %375 = vmatprep.subr.mxu0 0.0
      %376 = vmatpush1.xpose.msra.mxu0 0.0
      %377 = vmatprep.subr.mxu0 0.0
      %378 = vmatpush1.xpose.msra.mxu0 0.0
      %379 = vmatprep.subr.mxu0 0.0
      %380 = vmatpush1.xpose.msra.mxu0 0.0
      %381 = vmatprep.subr.mxu0 0.0
      %382 = vmatpush1.xpose.msra.mxu0 0.0
      %383 = vmatprep.subr.mxu0 0.0
      %384 = vmatpush1.xpose.msra.mxu0 0.0
      %385 = vmatprep.subr.mxu0 0.0
      %386 = vmatpush1.xpose.msra.mxu0 0.0
      %387 = vmatprep.subr.mxu0 0.0
      %388 = vmatpush1.xpose.msra.mxu0 0.0
      %389 = vmatprep.subr.mxu0 0.0
      %390 = vmatpush1.xpose.msra.mxu0 0.0
      %391 = vmatprep.subr.mxu0 0.0
      %392 = vmatpush1.xpose.msra.mxu0 0.0
      %393 = vmatprep.subr.mxu0 0.0
      %394 = vmatpush1.xpose.msra.mxu0 0.0
      %395 = vmatprep.subr.mxu0 0.0
      %396 = vmatpush1.xpose.msra.mxu0 0.0
      %397 = vmatprep.subr.mxu0 0.0
      %398 = vmatpush1.xpose.msra.mxu0 0.0
      %399 = vmatprep.subr.mxu0 0.0
      %400 = vmatpush1.xpose.msra.mxu0 0.0
      %401 = vmatprep.subr.mxu0 0.0
      %402 = vmatpush1.xpose.msra.mxu0 0.0
      %403 = vmatprep.subr.mxu0 0.0
      %404 = vmatpush1.xpose.msra.mxu0 0.0
      %405 = vmatprep.subr.mxu0 0.0
      %406 = vmatpush1.xpose.msra.mxu0 0.0
      %407 = vmatprep.subr.mxu0 0.0
      %408 = vmatpush1.xpose.msra.mxu0 0.0
      %409 = vmatprep.subr.mxu0 0.0
      %410 = vmatpush1.xpose.msra.mxu0 0.0
      %411 = vmatprep.subr.mxu0 0.0
      %412 = vmatpush1.xpose.msra.mxu0 0.0
      %413 = vmatprep.mubr.f32.mxu0 0.0
      %414 = vmatmul.mubr.f32.gmra.mrb[0].mxu0 %v344
      %v415 = vpop.f32.mrb[0].mxu0
      %v416 = vadd.f32 0.0, %v415
      %v417 = vpop.f32.mrb[0].mxu0
      %418 = vdwg.mxu0
      %v420 = vsel %vm266, %v220, 0
      %v423 = vsel %vm266, %v236, 0
      %425 = vmatprep.subr.mxu0 0.0
      %426 = vmatpush1.xpose.msra.mxu0 %v423
      %427 = vmatprep.subr.mxu0 0.0
      %428 = vmatpush1.xpose.msra.mxu0 0.0
      %429 = vmatprep.subr.mxu0 0.0
      %430 = vmatpush1.xpose.msra.mxu0 0.0
      %431 = vmatprep.subr.mxu0 0.0
      %432 = vmatpush1.xpose.msra.mxu0 0.0
      %433 = vmatprep.subr.mxu0 0.0
      %434 = vmatpush1.xpose.msra.mxu0 0.0
      %435 = vmatprep.subr.mxu0 0.0
      %436 = vmatpush1.xpose.msra.mxu0 0.0
      %437 = vmatprep.subr.mxu0 0.0
      %438 = vmatpush1.xpose.msra.mxu0 0.0
      %439 = vmatprep.subr.mxu0 0.0
      %440 = vmatpush1.xpose.msra.mxu0 0.0
      %441 = vmatprep.subr.mxu0 0.0
      %442 = vmatpush1.xpose.msra.mxu0 0.0
      %443 = vmatprep.subr.mxu0 0.0
      %444 = vmatpush1.xpose.msra.mxu0 0.0
      %445 = vmatprep.subr.mxu0 0.0
      %446 = vmatpush1.xpose.msra.mxu0 0.0
      %447 = vmatprep.subr.mxu0 0.0
      %448 = vmatpush1.xpose.msra.mxu0 0.0
      %449 = vmatprep.subr.mxu0 0.0
      %450 = vmatpush1.xpose.msra.mxu0 0.0
      %451 = vmatprep.subr.mxu0 0.0
      %452 = vmatpush1.xpose.msra.mxu0 0.0
      %453 = vmatprep.subr.mxu0 0.0
      %454 = vmatpush1.xpose.msra.mxu0 0.0
      %455 = vmatprep.subr.mxu0 0.0
      %456 = vmatpush1.xpose.msra.mxu0 0.0
      %457 = vmatprep.subr.mxu0 0.0
      %458 = vmatpush1.xpose.msra.mxu0 0.0
      %459 = vmatprep.subr.mxu0 0.0
      %460 = vmatpush1.xpose.msra.mxu0 0.0
      %461 = vmatprep.subr.mxu0 0.0
      %462 = vmatpush1.xpose.msra.mxu0 0.0
      %463 = vmatprep.subr.mxu0 0.0
      %464 = vmatpush1.xpose.msra.mxu0 0.0
      %465 = vmatprep.subr.mxu0 0.0
      %466 = vmatpush1.xpose.msra.mxu0 0.0
      %467 = vmatprep.subr.mxu0 0.0
      %468 = vmatpush1.xpose.msra.mxu0 0.0
      %469 = vmatprep.subr.mxu0 0.0
      %470 = vmatpush1.xpose.msra.mxu0 0.0
      %471 = vmatprep.subr.mxu0 0.0
      %472 = vmatpush1.xpose.msra.mxu0 0.0
      %473 = vmatprep.subr.mxu0 0.0
      %474 = vmatpush1.xpose.msra.mxu0 0.0
      %475 = vmatprep.subr.mxu0 0.0
      %476 = vmatpush1.xpose.msra.mxu0 0.0
      %477 = vmatprep.subr.mxu0 0.0
      %478 = vmatpush1.xpose.msra.mxu0 0.0
      %479 = vmatprep.subr.mxu0 0.0
      %480 = vmatpush1.xpose.msra.mxu0 0.0
      %481 = vmatprep.subr.mxu0 0.0
      %482 = vmatpush1.xpose.msra.mxu0 0.0
      %483 = vmatprep.subr.mxu0 0.0
      %484 = vmatpush1.xpose.msra.mxu0 0.0
      %485 = vmatprep.subr.mxu0 0.0
      %486 = vmatpush1.xpose.msra.mxu0 0.0
      %487 = vmatprep.subr.mxu0 0.0
      %488 = vmatpush1.xpose.msra.mxu0 0.0
      %489 = vmatprep.mubr.f32.mxu0 0.0
      %490 = vmatmul.mubr.f32.gmra.mrb[0].mxu0 %v420
      %v491 = vpop.f32.mrb[0].mxu0
      %v492 = vadd.f32 0.0, %v491
      %v493 = vpop.f32.mrb[0].mxu0
      %494 = vdwg.mxu0
      %v496 = vsel %vm266, %v221, 0
      %v499 = vsel %vm266, %v237, 0
      %501 = vmatprep.subr.mxu0 0.0
      %502 = vmatpush1.xpose.msra.mxu0 %v499
      %503 = vmatprep.subr.mxu0 0.0
      %504 = vmatpush1.xpose.msra.mxu0 0.0
      %505 = vmatprep.subr.mxu0 0.0
      %506 = vmatpush1.xpose.msra.mxu0 0.0
      %507 = vmatprep.subr.mxu0 0.0
      %508 = vmatpush1.xpose.msra.mxu0 0.0
      %509 = vmatprep.subr.mxu0 0.0
      %510 = vmatpush1.xpose.msra.mxu0 0.0
      %511 = vmatprep.subr.mxu0 0.0
      %512 = vmatpush1.xpose.msra.mxu0 0.0
      %513 = vmatprep.subr.mxu0 0.0
      %514 = vmatpush1.xpose.msra.mxu0 0.0
      %515 = vmatprep.subr.mxu0 0.0
      %516 = vmatpush1.xpose.msra.mxu0 0.0
      %517 = vmatprep.subr.mxu0 0.0
      %518 = vmatpush1.xpose.msra.mxu0 0.0
      %519 = vmatprep.subr.mxu0 0.0
      %520 = vmatpush1.xpose.msra.mxu0 0.0
      %521 = vmatprep.subr.mxu0 0.0
      %522 = vmatpush1.xpose.msra.mxu0 0.0
      %523 = vmatprep.subr.mxu0 0.0
      %524 = vmatpush1.xpose.msra.mxu0 0.0
      %525 = vmatprep.subr.mxu0 0.0
      %526 = vmatpush1.xpose.msra.mxu0 0.0
      %527 = vmatprep.subr.mxu0 0.0
      %528 = vmatpush1.xpose.msra.mxu0 0.0
      %529 = vmatprep.subr.mxu0 0.0
      %530 = vmatpush1.xpose.msra.mxu0 0.0
      %531 = vmatprep.subr.mxu0 0.0
      %532 = vmatpush1.xpose.msra.mxu0 0.0
      %533 = vmatprep.subr.mxu0 0.0
      %534 = vmatpush1.xpose.msra.mxu0 0.0
      %535 = vmatprep.subr.mxu0 0.0
      %536 = vmatpush1.xpose.msra.mxu0 0.0
      %537 = vmatprep.subr.mxu0 0.0
      %538 = vmatpush1.xpose.msra.mxu0 0.0
      %539 = vmatprep.subr.mxu0 0.0
      %540 = vmatpush1.xpose.msra.mxu0 0.0
      %541 = vmatprep.subr.mxu0 0.0
      %542 = vmatpush1.xpose.msra.mxu0 0.0
      %543 = vmatprep.subr.mxu0 0.0
      %544 = vmatpush1.xpose.msra.mxu0 0.0
      %545 = vmatprep.subr.mxu0 0.0
      %546 = vmatpush1.xpose.msra.mxu0 0.0
      %547 = vmatprep.subr.mxu0 0.0
      %548 = vmatpush1.xpose.msra.mxu0 0.0
      %549 = vmatprep.subr.mxu0 0.0
      %550 = vmatpush1.xpose.msra.mxu0 0.0
      %551 = vmatprep.subr.mxu0 0.0
      %552 = vmatpush1.xpose.msra.mxu0 0.0
      %553 = vmatprep.subr.mxu0 0.0
      %554 = vmatpush1.xpose.msra.mxu0 0.0
      %555 = vmatprep.subr.mxu0 0.0
      %556 = vmatpush1.xpose.msra.mxu0 0.0
      %557 = vmatprep.subr.mxu0 0.0
      %558 = vmatpush1.xpose.msra.mxu0 0.0
      %559 = vmatprep.subr.mxu0 0.0
      %560 = vmatpush1.xpose.msra.mxu0 0.0
      %561 = vmatprep.subr.mxu0 0.0
      %562 = vmatpush1.xpose.msra.mxu0 0.0
      %563 = vmatprep.subr.mxu0 0.0
      %564 = vmatpush1.xpose.msra.mxu0 0.0
      %565 = vmatprep.mubr.f32.mxu0 0.0
      %566 = vmatmul.mubr.f32.gmra.mrb[0].mxu0 %v496
      %v567 = vpop.f32.mrb[0].mxu0
      %v568 = vadd.f32 0.0, %v567
      %v569 = vpop.f32.mrb[0].mxu0
      %570 = vdwg.mxu0
      %v572 = vsel %vm266, %v222, 0
      %v575 = vsel %vm266, %v238, 0
      %577 = vmatprep.subr.mxu0 0.0
      %578 = vmatpush1.xpose.msra.mxu0 %v575
      %579 = vmatprep.subr.mxu0 0.0
      %580 = vmatpush1.xpose.msra.mxu0 0.0
      %581 = vmatprep.subr.mxu0 0.0
      %582 = vmatpush1.xpose.msra.mxu0 0.0
      %583 = vmatprep.subr.mxu0 0.0
      %584 = vmatpush1.xpose.msra.mxu0 0.0
      %585 = vmatprep.subr.mxu0 0.0
      %586 = vmatpush1.xpose.msra.mxu0 0.0
      %587 = vmatprep.subr.mxu0 0.0
      %588 = vmatpush1.xpose.msra.mxu0 0.0
      %589 = vmatprep.subr.mxu0 0.0
      %590 = vmatpush1.xpose.msra.mxu0 0.0
      %591 = vmatprep.subr.mxu0 0.0
      %592 = vmatpush1.xpose.msra.mxu0 0.0
      %593 = vmatprep.subr.mxu0 0.0
      %594 = vmatpush1.xpose.msra.mxu0 0.0
      %595 = vmatprep.subr.mxu0 0.0
      %596 = vmatpush1.xpose.msra.mxu0 0.0
      %597 = vmatprep.subr.mxu0 0.0
      %598 = vmatpush1.xpose.msra.mxu0 0.0
      %599 = vmatprep.subr.mxu0 0.0
      %600 = vmatpush1.xpose.msra.mxu0 0.0
      %601 = vmatprep.subr.mxu0 0.0
      %602 = vmatpush1.xpose.msra.mxu0 0.0
      %603 = vmatprep.subr.mxu0 0.0
      %604 = vmatpush1.xpose.msra.mxu0 0.0
      %605 = vmatprep.subr.mxu0 0.0
      %606 = vmatpush1.xpose.msra.mxu0 0.0
      %607 = vmatprep.subr.mxu0 0.0
      %608 = vmatpush1.xpose.msra.mxu0 0.0
      %609 = vmatprep.subr.mxu0 0.0
      %610 = vmatpush1.xpose.msra.mxu0 0.0
      %611 = vmatprep.subr.mxu0 0.0
      %612 = vmatpush1.xpose.msra.mxu0 0.0
      %613 = vmatprep.subr.mxu0 0.0
      %614 = vmatpush1.xpose.msra.mxu0 0.0
      %615 = vmatprep.subr.mxu0 0.0
      %616 = vmatpush1.xpose.msra.mxu0 0.0
      %617 = vmatprep.subr.mxu0 0.0
      %618 = vmatpush1.xpose.msra.mxu0 0.0
      %619 = vmatprep.subr.mxu0 0.0
      %620 = vmatpush1.xpose.msra.mxu0 0.0
      %621 = vmatprep.subr.mxu0 0.0
      %622 = vmatpush1.xpose.msra.mxu0 0.0
      %623 = vmatprep.subr.mxu0 0.0
      %624 = vmatpush1.xpose.msra.mxu0 0.0
      %625 = vmatprep.subr.mxu0 0.0
      %626 = vmatpush1.xpose.msra.mxu0 0.0
      %627 = vmatprep.subr.mxu0 0.0
      %628 = vmatpush1.xpose.msra.mxu0 0.0
      %629 = vmatprep.subr.mxu0 0.0
      %630 = vmatpush1.xpose.msra.mxu0 0.0
      %631 = vmatprep.subr.mxu0 0.0
      %632 = vmatpush1.xpose.msra.mxu0 0.0
      %633 = vmatprep.subr.mxu0 0.0
      %634 = vmatpush1.xpose.msra.mxu0 0.0
      %635 = vmatprep.subr.mxu0 0.0
      %636 = vmatpush1.xpose.msra.mxu0 0.0
      %637 = vmatprep.subr.mxu0 0.0
      %638 = vmatpush1.xpose.msra.mxu0 0.0
      %639 = vmatprep.subr.mxu0 0.0
      %640 = vmatpush1.xpose.msra.mxu0 0.0
      %641 = vmatprep.mubr.f32.mxu0 0.0
      %642 = vmatmul.mubr.f32.gmra.mrb[0].mxu0 %v572
      %v643 = vpop.f32.mrb[0].mxu0
      %v644 = vadd.f32 0.0, %v643
      %v645 = vpop.f32.mrb[0].mxu0
      %646 = vdwg.mxu0
      %v648 = vsel %vm266, %v223, 0
      %v651 = vsel %vm266, %v239, 0
      %653 = vmatprep.subr.mxu0 0.0
      %654 = vmatpush1.xpose.msra.mxu0 %v651
      %655 = vmatprep.subr.mxu0 0.0
      %656 = vmatpush1.xpose.msra.mxu0 0.0
      %657 = vmatprep.subr.mxu0 0.0
      %658 = vmatpush1.xpose.msra.mxu0 0.0
      %659 = vmatprep.subr.mxu0 0.0
      %660 = vmatpush1.xpose.msra.mxu0 0.0
      %661 = vmatprep.subr.mxu0 0.0
      %662 = vmatpush1.xpose.msra.mxu0 0.0
      %663 = vmatprep.subr.mxu0 0.0
      %664 = vmatpush1.xpose.msra.mxu0 0.0
      %665 = vmatprep.subr.mxu0 0.0
      %666 = vmatpush1.xpose.msra.mxu0 0.0
      %667 = vmatprep.subr.mxu0 0.0
      %668 = vmatpush1.xpose.msra.mxu0 0.0
      %669 = vmatprep.subr.mxu0 0.0
      %670 = vmatpush1.xpose.msra.mxu0 0.0
      %671 = vmatprep.subr.mxu0 0.0
      %672 = vmatpush1.xpose.msra.mxu0 0.0
      %673 = vmatprep.subr.mxu0 0.0
      %674 = vmatpush1.xpose.msra.mxu0 0.0
      %675 = vmatprep.subr.mxu0 0.0
      %676 = vmatpush1.xpose.msra.mxu0 0.0
      %677 = vmatprep.subr.mxu0 0.0
      %678 = vmatpush1.xpose.msra.mxu0 0.0
      %679 = vmatprep.subr.mxu0 0.0
      %680 = vmatpush1.xpose.msra.mxu0 0.0
      %681 = vmatprep.subr.mxu0 0.0
      %682 = vmatpush1.xpose.msra.mxu0 0.0
      %683 = vmatprep.subr.mxu0 0.0
      %684 = vmatpush1.xpose.msra.mxu0 0.0
      %685 = vmatprep.subr.mxu0 0.0
      %686 = vmatpush1.xpose.msra.mxu0 0.0
      %687 = vmatprep.subr.mxu0 0.0
      %688 = vmatpush1.xpose.msra.mxu0 0.0
      %689 = vmatprep.subr.mxu0 0.0
      %690 = vmatpush1.xpose.msra.mxu0 0.0
      %691 = vmatprep.subr.mxu0 0.0
      %692 = vmatpush1.xpose.msra.mxu0 0.0
      %693 = vmatprep.subr.mxu0 0.0
      %694 = vmatpush1.xpose.msra.mxu0 0.0
      %695 = vmatprep.subr.mxu0 0.0
      %696 = vmatpush1.xpose.msra.mxu0 0.0
      %697 = vmatprep.subr.mxu0 0.0
      %698 = vmatpush1.xpose.msra.mxu0 0.0
      %699 = vmatprep.subr.mxu0 0.0
      %700 = vmatpush1.xpose.msra.mxu0 0.0
      %701 = vmatprep.subr.mxu0 0.0
      %702 = vmatpush1.xpose.msra.mxu0 0.0
      %703 = vmatprep.subr.mxu0 0.0
      %704 = vmatpush1.xpose.msra.mxu0 0.0
      %705 = vmatprep.subr.mxu0 0.0
      %706 = vmatpush1.xpose.msra.mxu0 0.0
      %707 = vmatprep.subr.mxu0 0.0
      %708 = vmatpush1.xpose.msra.mxu0 0.0
      %709 = vmatprep.subr.mxu0 0.0
      %710 = vmatpush1.xpose.msra.mxu0 0.0
      %711 = vmatprep.subr.mxu0 0.0
      %712 = vmatpush1.xpose.msra.mxu0 0.0
      %713 = vmatprep.subr.mxu0 0.0
      %714 = vmatpush1.xpose.msra.mxu0 0.0
      %715 = vmatprep.subr.mxu0 0.0
      %716 = vmatpush1.xpose.msra.mxu0 0.0
      %717 = vmatprep.mubr.f32.mxu0 0.0
      %718 = vmatmul.mubr.f32.gmra.mrb[0].mxu0 %v648
      %v719 = vpop.f32.mrb[0].mxu0
      %v720 = vadd.f32 0.0, %v719
      %v721 = vpop.f32.mrb[0].mxu0
      %722 = vdwg.mxu0
      %v724 = vsel %vm266, %v224, 0
      %v727 = vsel %vm266, %v240, 0
      %729 = vmatprep.subr.mxu0 0.0
      %730 = vmatpush1.xpose.msra.mxu0 %v727
      %731 = vmatprep.subr.mxu0 0.0
      %732 = vmatpush1.xpose.msra.mxu0 0.0
      %733 = vmatprep.subr.mxu0 0.0
      %734 = vmatpush1.xpose.msra.mxu0 0.0
      %735 = vmatprep.subr.mxu0 0.0
      %736 = vmatpush1.xpose.msra.mxu0 0.0
      %737 = vmatprep.subr.mxu0 0.0
      %738 = vmatpush1.xpose.msra.mxu0 0.0
      %739 = vmatprep.subr.mxu0 0.0
      %740 = vmatpush1.xpose.msra.mxu0 0.0
      %741 = vmatprep.subr.mxu0 0.0
      %742 = vmatpush1.xpose.msra.mxu0 0.0
      %743 = vmatprep.subr.mxu0 0.0
      %744 = vmatpush1.xpose.msra.mxu0 0.0
      %745 = vmatprep.subr.mxu0 0.0
      %746 = vmatpush1.xpose.msra.mxu0 0.0
      %747 = vmatprep.subr.mxu0 0.0
      %748 = vmatpush1.xpose.msra.mxu0 0.0
      %749 = vmatprep.subr.mxu0 0.0
      %750 = vmatpush1.xpose.msra.mxu0 0.0
      %751 = vmatprep.subr.mxu0 0.0
      %752 = vmatpush1.xpose.msra.mxu0 0.0
      %753 = vmatprep.subr.mxu0 0.0
      %754 = vmatpush1.xpose.msra.mxu0 0.0
      %755 = vmatprep.subr.mxu0 0.0
      %756 = vmatpush1.xpose.msra.mxu0 0.0
      %757 = vmatprep.subr.mxu0 0.0
      %758 = vmatpush1.xpose.msra.mxu0 0.0
      %759 = vmatprep.subr.mxu0 0.0
      %760 = vmatpush1.xpose.msra.mxu0 0.0
      %761 = vmatprep.subr.mxu0 0.0
      %762 = vmatpush1.xpose.msra.mxu0 0.0
      %763 = vmatprep.subr.mxu0 0.0
      %764 = vmatpush1.xpose.msra.mxu0 0.0
      %765 = vmatprep.subr.mxu0 0.0
      %766 = vmatpush1.xpose.msra.mxu0 0.0
      %767 = vmatprep.subr.mxu0 0.0
      %768 = vmatpush1.xpose.msra.mxu0 0.0
      %769 = vmatprep.subr.mxu0 0.0
      %770 = vmatpush1.xpose.msra.mxu0 0.0
      %771 = vmatprep.subr.mxu0 0.0
      %772 = vmatpush1.xpose.msra.mxu0 0.0
      %773 = vmatprep.subr.mxu0 0.0
      %774 = vmatpush1.xpose.msra.mxu0 0.0
      %775 = vmatprep.subr.mxu0 0.0
      %776 = vmatpush1.xpose.msra.mxu0 0.0
      %777 = vmatprep.subr.mxu0 0.0
      %778 = vmatpush1.xpose.msra.mxu0 0.0
      %779 = vmatprep.subr.mxu0 0.0
      %780 = vmatpush1.xpose.msra.mxu0 0.0
      %781 = vmatprep.subr.mxu0 0.0
      %782 = vmatpush1.xpose.msra.mxu0 0.0
      %783 = vmatprep.subr.mxu0 0.0
      %784 = vmatpush1.xpose.msra.mxu0 0.0
      %785 = vmatprep.subr.mxu0 0.0
      %786 = vmatpush1.xpose.msra.mxu0 0.0
      %787 = vmatprep.subr.mxu0 0.0
      %788 = vmatpush1.xpose.msra.mxu0 0.0
      %789 = vmatprep.subr.mxu0 0.0
      %790 = vmatpush1.xpose.msra.mxu0 0.0
      %791 = vmatprep.subr.mxu0 0.0
      %792 = vmatpush1.xpose.msra.mxu0 0.0
      %793 = vmatprep.mubr.f32.mxu0 0.0
      %794 = vmatmul.mubr.f32.gmra.mrb[0].mxu0 %v724
      %v795 = vpop.f32.mrb[0].mxu0
      %v796 = vadd.f32 0.0, %v795
      %v797 = vpop.f32.mrb[0].mxu0
      %798 = vdwg.mxu0
      %v800 = vsel %vm266, %v225, 0
      %v803 = vsel %vm266, %v241, 0
      %805 = vmatprep.subr.mxu0 0.0
      %806 = vmatpush1.xpose.msra.mxu0 %v803
      %807 = vmatprep.subr.mxu0 0.0
      %808 = vmatpush1.xpose.msra.mxu0 0.0
      %809 = vmatprep.subr.mxu0 0.0
      %810 = vmatpush1.xpose.msra.mxu0 0.0
      %811 = vmatprep.subr.mxu0 0.0
      %812 = vmatpush1.xpose.msra.mxu0 0.0
      %813 = vmatprep.subr.mxu0 0.0
      %814 = vmatpush1.xpose.msra.mxu0 0.0
      %815 = vmatprep.subr.mxu0 0.0
      %816 = vmatpush1.xpose.msra.mxu0 0.0
      %817 = vmatprep.subr.mxu0 0.0
      %818 = vmatpush1.xpose.msra.mxu0 0.0
      %819 = vmatprep.subr.mxu0 0.0
      %820 = vmatpush1.xpose.msra.mxu0 0.0
      %821 = vmatprep.subr.mxu0 0.0
      %822 = vmatpush1.xpose.msra.mxu0 0.0
      %823 = vmatprep.subr.mxu0 0.0
      %824 = vmatpush1.xpose.msra.mxu0 0.0
      %825 = vmatprep.subr.mxu0 0.0
      %826 = vmatpush1.xpose.msra.mxu0 0.0
      %827 = vmatprep.subr.mxu0 0.0
      %828 = vmatpush1.xpose.msra.mxu0 0.0
      %829 = vmatprep.subr.mxu0 0.0
      %830 = vmatpush1.xpose.msra.mxu0 0.0
      %831 = vmatprep.subr.mxu0 0.0
      %832 = vmatpush1.xpose.msra.mxu0 0.0
      %833 = vmatprep.subr.mxu0 0.0
      %834 = vmatpush1.xpose.msra.mxu0 0.0
      %835 = vmatprep.subr.mxu0 0.0
      %836 = vmatpush1.xpose.msra.mxu0 0.0
      %837 = vmatprep.subr.mxu0 0.0
      %838 = vmatpush1.xpose.msra.mxu0 0.0
      %839 = vmatprep.subr.mxu0 0.0
      %840 = vmatpush1.xpose.msra.mxu0 0.0
      %841 = vmatprep.subr.mxu0 0.0
      %842 = vmatpush1.xpose.msra.mxu0 0.0
      %843 = vmatprep.subr.mxu0 0.0
      %844 = vmatpush1.xpose.msra.mxu0 0.0
      %845 = vmatprep.subr.mxu0 0.0
      %846 = vmatpush1.xpose.msra.mxu0 0.0
      %847 = vmatprep.subr.mxu0 0.0
      %848 = vmatpush1.xpose.msra.mxu0 0.0
      %849 = vmatprep.subr.mxu0 0.0
      %850 = vmatpush1.xpose.msra.mxu0 0.0
      %851 = vmatprep.subr.mxu0 0.0
      %852 = vmatpush1.xpose.msra.mxu0 0.0
      %853 = vmatprep.subr.mxu0 0.0
      %854 = vmatpush1.xpose.msra.mxu0 0.0
      %855 = vmatprep.subr.mxu0 0.0
      %856 = vmatpush1.xpose.msra.mxu0 0.0
      %857 = vmatprep.subr.mxu0 0.0
      %858 = vmatpush1.xpose.msra.mxu0 0.0
      %859 = vmatprep.subr.mxu0 0.0
      %860 = vmatpush1.xpose.msra.mxu0 0.0
      %861 = vmatprep.subr.mxu0 0.0
      %862 = vmatpush1.xpose.msra.mxu0 0.0
      %863 = vmatprep.subr.mxu0 0.0
      %864 = vmatpush1.xpose.msra.mxu0 0.0
      %865 = vmatprep.subr.mxu0 0.0
      %866 = vmatpush1.xpose.msra.mxu0 0.0
      %867 = vmatprep.subr.mxu0 0.0
      %868 = vmatpush1.xpose.msra.mxu0 0.0
      %869 = vmatprep.mubr.f32.mxu0 0.0
      %870 = vmatmul.mubr.f32.gmra.mrb[0].mxu0 %v800
      %v871 = vpop.f32.mrb[0].mxu0
      %v872 = vadd.f32 0.0, %v871
      %v873 = vpop.f32.mrb[0].mxu0
      %874 = vdwg.mxu0
      %v876 = vsel %vm266, %v226, 0
      %v879 = vsel %vm266, %v242, 0
      %881 = vmatprep.subr.mxu0 0.0
      %882 = vmatpush1.xpose.msra.mxu0 %v879
      %883 = vmatprep.subr.mxu0 0.0
      %884 = vmatpush1.xpose.msra.mxu0 0.0
      %885 = vmatprep.subr.mxu0 0.0
      %886 = vmatpush1.xpose.msra.mxu0 0.0
      %887 = vmatprep.subr.mxu0 0.0
      %888 = vmatpush1.xpose.msra.mxu0 0.0
      %889 = vmatprep.subr.mxu0 0.0
      %890 = vmatpush1.xpose.msra.mxu0 0.0
      %891 = vmatprep.subr.mxu0 0.0
      %892 = vmatpush1.xpose.msra.mxu0 0.0
      %893 = vmatprep.subr.mxu0 0.0
      %894 = vmatpush1.xpose.msra.mxu0 0.0
      %895 = vmatprep.subr.mxu0 0.0
      %896 = vmatpush1.xpose.msra.mxu0 0.0
      %897 = vmatprep.subr.mxu0 0.0
      %898 = vmatpush1.xpose.msra.mxu0 0.0
      %899 = vmatprep.subr.mxu0 0.0
      %900 = vmatpush1.xpose.msra.mxu0 0.0
      %901 = vmatprep.subr.mxu0 0.0
      %902 = vmatpush1.xpose.msra.mxu0 0.0
      %903 = vmatprep.subr.mxu0 0.0
      %904 = vmatpush1.xpose.msra.mxu0 0.0
      %905 = vmatprep.subr.mxu0 0.0
      %906 = vmatpush1.xpose.msra.mxu0 0.0
      %907 = vmatprep.subr.mxu0 0.0
      %908 = vmatpush1.xpose.msra.mxu0 0.0
      %909 = vmatprep.subr.mxu0 0.0
      %910 = vmatpush1.xpose.msra.mxu0 0.0
      %911 = vmatprep.subr.mxu0 0.0
      %912 = vmatpush1.xpose.msra.mxu0 0.0
      %913 = vmatprep.subr.mxu0 0.0
      %914 = vmatpush1.xpose.msra.mxu0 0.0
      %915 = vmatprep.subr.mxu0 0.0
      %916 = vmatpush1.xpose.msra.mxu0 0.0
      %917 = vmatprep.subr.mxu0 0.0
      %918 = vmatpush1.xpose.msra.mxu0 0.0
      %919 = vmatprep.subr.mxu0 0.0
      %920 = vmatpush1.xpose.msra.mxu0 0.0
      %921 = vmatprep.subr.mxu0 0.0
      %922 = vmatpush1.xpose.msra.mxu0 0.0
      %923 = vmatprep.subr.mxu0 0.0
      %924 = vmatpush1.xpose.msra.mxu0 0.0
      %925 = vmatprep.subr.mxu0 0.0
      %926 = vmatpush1.xpose.msra.mxu0 0.0
      %927 = vmatprep.subr.mxu0 0.0
      %928 = vmatpush1.xpose.msra.mxu0 0.0
      %929 = vmatprep.subr.mxu0 0.0
      %930 = vmatpush1.xpose.msra.mxu0 0.0
      %931 = vmatprep.subr.mxu0 0.0
      %932 = vmatpush1.xpose.msra.mxu0 0.0
      %933 = vmatprep.subr.mxu0 0.0
      %934 = vmatpush1.xpose.msra.mxu0 0.0
      %935 = vmatprep.subr.mxu0 0.0
      %936 = vmatpush1.xpose.msra.mxu0 0.0
      %937 = vmatprep.subr.mxu0 0.0
      %938 = vmatpush1.xpose.msra.mxu0 0.0
      %939 = vmatprep.subr.mxu0 0.0
      %940 = vmatpush1.xpose.msra.mxu0 0.0
      %941 = vmatprep.subr.mxu0 0.0
      %942 = vmatpush1.xpose.msra.mxu0 0.0
      %943 = vmatprep.subr.mxu0 0.0
      %944 = vmatpush1.xpose.msra.mxu0 0.0
      %945 = vmatprep.mubr.f32.mxu0 0.0
      %946 = vmatmul.mubr.f32.gmra.mrb[0].mxu0 %v876
      %v947 = vpop.f32.mrb[0].mxu0
      %v948 = vadd.f32 0.0, %v947
      %v949 = vpop.f32.mrb[0].mxu0
      %950 = vdwg.mxu0
      %v952 = vsel %vm266, %v227, 0
      %v955 = vsel %vm266, %v243, 0
      %957 = vmatprep.subr.mxu0 0.0
      %958 = vmatpush1.xpose.msra.mxu0 %v955
      %959 = vmatprep.subr.mxu0 0.0
      %960 = vmatpush1.xpose.msra.mxu0 0.0
      %961 = vmatprep.subr.mxu0 0.0
      %962 = vmatpush1.xpose.msra.mxu0 0.0
      %963 = vmatprep.subr.mxu0 0.0
      %964 = vmatpush1.xpose.msra.mxu0 0.0
      %965 = vmatprep.subr.mxu0 0.0
      %966 = vmatpush1.xpose.msra.mxu0 0.0
      %967 = vmatprep.subr.mxu0 0.0
      %968 = vmatpush1.xpose.msra.mxu0 0.0
      %969 = vmatprep.subr.mxu0 0.0
      %970 = vmatpush1.xpose.msra.mxu0 0.0
      %971 = vmatprep.subr.mxu0 0.0
      %972 = vmatpush1.xpose.msra.mxu0 0.0
      %973 = vmatprep.subr.mxu0 0.0
      %974 = vmatpush1.xpose.msra.mxu0 0.0
      %975 = vmatprep.subr.mxu0 0.0
      %976 = vmatpush1.xpose.msra.mxu0 0.0
      %977 = vmatprep.subr.mxu0 0.0
      %978 = vmatpush1.xpose.msra.mxu0 0.0
      %979 = vmatprep.subr.mxu0 0.0
      %980 = vmatpush1.xpose.msra.mxu0 0.0
      %981 = vmatprep.subr.mxu0 0.0
      %982 = vmatpush1.xpose.msra.mxu0 0.0
      %983 = vmatprep.subr.mxu0 0.0
      %984 = vmatpush1.xpose.msra.mxu0 0.0
      %985 = vmatprep.subr.mxu0 0.0
      %986 = vmatpush1.xpose.msra.mxu0 0.0
      %987 = vmatprep.subr.mxu0 0.0
      %988 = vmatpush1.xpose.msra.mxu0 0.0
      %989 = vmatprep.subr.mxu0 0.0
      %990 = vmatpush1.xpose.msra.mxu0 0.0
      %991 = vmatprep.subr.mxu0 0.0
      %992 = vmatpush1.xpose.msra.mxu0 0.0
      %993 = vmatprep.subr.mxu0 0.0
      %994 = vmatpush1.xpose.msra.mxu0 0.0
      %995 = vmatprep.subr.mxu0 0.0
      %996 = vmatpush1.xpose.msra.mxu0 0.0
      %997 = vmatprep.subr.mxu0 0.0
      %998 = vmatpush1.xpose.msra.mxu0 0.0
      %999 = vmatprep.subr.mxu0 0.0
      %1000 = vmatpush1.xpose.msra.mxu0 0.0
      %1001 = vmatprep.subr.mxu0 0.0
      %1002 = vmatpush1.xpose.msra.mxu0 0.0
      %1003 = vmatprep.subr.mxu0 0.0
      %1004 = vmatpush1.xpose.msra.mxu0 0.0
      %1005 = vmatprep.subr.mxu0 0.0
      %1006 = vmatpush1.xpose.msra.mxu0 0.0
      %1007 = vmatprep.subr.mxu0 0.0
      %1008 = vmatpush1.xpose.msra.mxu0 0.0
      %1009 = vmatprep.subr.mxu0 0.0
      %1010 = vmatpush1.xpose.msra.mxu0 0.0
      %1011 = vmatprep.subr.mxu0 0.0
      %1012 = vmatpush1.xpose.msra.mxu0 0.0
      %1013 = vmatprep.subr.mxu0 0.0
      %1014 = vmatpush1.xpose.msra.mxu0 0.0
      %1015 = vmatprep.subr.mxu0 0.0
      %1016 = vmatpush1.xpose.msra.mxu0 0.0
      %1017 = vmatprep.subr.mxu0 0.0
      %1018 = vmatpush1.xpose.msra.mxu0 0.0
      %1019 = vmatprep.subr.mxu0 0.0
      %1020 = vmatpush1.xpose.msra.mxu0 0.0
      %1021 = vmatprep.mubr.f32.mxu0 0.0
      %1022 = vmatmul.mubr.f32.gmra.mrb[0].mxu0 %v952
      %v1023 = vpop.f32.mrb[0].mxu0
      %v1024 = vadd.f32 0.0, %v1023
      %v1025 = vpop.f32.mrb[0].mxu0
      %1026 = vdwg.mxu0
      %v1028 = vsel %vm266, %v228, 0
      %v1031 = vsel %vm266, %v244, 0
      %1033 = vmatprep.subr.mxu0 0.0
      %1034 = vmatpush1.xpose.msra.mxu0 %v1031
      %1035 = vmatprep.subr.mxu0 0.0
      %1036 = vmatpush1.xpose.msra.mxu0 0.0
      %1037 = vmatprep.subr.mxu0 0.0
      %1038 = vmatpush1.xpose.msra.mxu0 0.0
      %1039 = vmatprep.subr.mxu0 0.0
      %1040 = vmatpush1.xpose.msra.mxu0 0.0
      %1041 = vmatprep.subr.mxu0 0.0
      %1042 = vmatpush1.xpose.msra.mxu0 0.0
      %1043 = vmatprep.subr.mxu0 0.0
      %1044 = vmatpush1.xpose.msra.mxu0 0.0
      %1045 = vmatprep.subr.mxu0 0.0
      %1046 = vmatpush1.xpose.msra.mxu0 0.0
      %1047 = vmatprep.subr.mxu0 0.0
      %1048 = vmatpush1.xpose.msra.mxu0 0.0
      %1049 = vmatprep.subr.mxu0 0.0
      %1050 = vmatpush1.xpose.msra.mxu0 0.0
      %1051 = vmatprep.subr.mxu0 0.0
      %1052 = vmatpush1.xpose.msra.mxu0 0.0
      %1053 = vmatprep.subr.mxu0 0.0
      %1054 = vmatpush1.xpose.msra.mxu0 0.0
      %1055 = vmatprep.subr.mxu0 0.0
      %1056 = vmatpush1.xpose.msra.mxu0 0.0
      %1057 = vmatprep.subr.mxu0 0.0
      %1058 = vmatpush1.xpose.msra.mxu0 0.0
      %1059 = vmatprep.subr.mxu0 0.0
      %1060 = vmatpush1.xpose.msra.mxu0 0.0
      %1061 = vmatprep.subr.mxu0 0.0
      %1062 = vmatpush1.xpose.msra.mxu0 0.0
      %1063 = vmatprep.subr.mxu0 0.0
      %1064 = vmatpush1.xpose.msra.mxu0 0.0
      %1065 = vmatprep.subr.mxu0 0.0
      %1066 = vmatpush1.xpose.msra.mxu0 0.0
      %1067 = vmatprep.subr.mxu0 0.0
      %1068 = vmatpush1.xpose.msra.mxu0 0.0
      %1069 = vmatprep.subr.mxu0 0.0
      %1070 = vmatpush1.xpose.msra.mxu0 0.0
      %1071 = vmatprep.subr.mxu0 0.0
      %1072 = vmatpush1.xpose.msra.mxu0 0.0
      %1073 = vmatprep.subr.mxu0 0.0
      %1074 = vmatpush1.xpose.msra.mxu0 0.0
      %1075 = vmatprep.subr.mxu0 0.0
      %1076 = vmatpush1.xpose.msra.mxu0 0.0
      %1077 = vmatprep.subr.mxu0 0.0
      %1078 = vmatpush1.xpose.msra.mxu0 0.0
      %1079 = vmatprep.subr.mxu0 0.0
      %1080 = vmatpush1.xpose.msra.mxu0 0.0
      %1081 = vmatprep.subr.mxu0 0.0
      %1082 = vmatpush1.xpose.msra.mxu0 0.0
      %1083 = vmatprep.subr.mxu0 0.0
      %1084 = vmatpush1.xpose.msra.mxu0 0.0
      %1085 = vmatprep.subr.mxu0 0.0
      %1086 = vmatpush1.xpose.msra.mxu0 0.0
      %1087 = vmatprep.subr.mxu0 0.0
      %1088 = vmatpush1.xpose.msra.mxu0 0.0
      %1089 = vmatprep.subr.mxu0 0.0
      %1090 = vmatpush1.xpose.msra.mxu0 0.0
      %1091 = vmatprep.subr.mxu0 0.0
      %1092 = vmatpush1.xpose.msra.mxu0 0.0
      %1093 = vmatprep.subr.mxu0 0.0
      %1094 = vmatpush1.xpose.msra.mxu0 0.0
      %1095 = vmatprep.subr.mxu0 0.0
      %1096 = vmatpush1.xpose.msra.mxu0 0.0
      %1097 = vmatprep.mubr.f32.mxu0 0.0
      %1098 = vmatmul.mubr.f32.gmra.mrb[0].mxu0 %v1028
      %v1099 = vpop.f32.mrb[0].mxu0
      %v1100 = vadd.f32 0.0, %v1099
      %v1101 = vpop.f32.mrb[0].mxu0
      %1102 = vdwg.mxu0
      %v1104 = vsel %vm266, %v229, 0
      %v1107 = vsel %vm266, %v245, 0
      %1109 = vmatprep.subr.mxu0 0.0
      %1110 = vmatpush1.xpose.msra.mxu0 %v1107
      %1111 = vmatprep.subr.mxu0 0.0
      %1112 = vmatpush1.xpose.msra.mxu0 0.0
      %1113 = vmatprep.subr.mxu0 0.0
      %1114 = vmatpush1.xpose.msra.mxu0 0.0
      %1115 = vmatprep.subr.mxu0 0.0
      %1116 = vmatpush1.xpose.msra.mxu0 0.0
      %1117 = vmatprep.subr.mxu0 0.0
      %1118 = vmatpush1.xpose.msra.mxu0 0.0
      %1119 = vmatprep.subr.mxu0 0.0
      %1120 = vmatpush1.xpose.msra.mxu0 0.0
      %1121 = vmatprep.subr.mxu0 0.0
      %1122 = vmatpush1.xpose.msra.mxu0 0.0
      %1123 = vmatprep.subr.mxu0 0.0
      %1124 = vmatpush1.xpose.msra.mxu0 0.0
      %1125 = vmatprep.subr.mxu0 0.0
      %1126 = vmatpush1.xpose.msra.mxu0 0.0
      %1127 = vmatprep.subr.mxu0 0.0
      %1128 = vmatpush1.xpose.msra.mxu0 0.0
      %1129 = vmatprep.subr.mxu0 0.0
      %1130 = vmatpush1.xpose.msra.mxu0 0.0
      %1131 = vmatprep.subr.mxu0 0.0
      %1132 = vmatpush1.xpose.msra.mxu0 0.0
      %1133 = vmatprep.subr.mxu0 0.0
      %1134 = vmatpush1.xpose.msra.mxu0 0.0
      %1135 = vmatprep.subr.mxu0 0.0
      %1136 = vmatpush1.xpose.msra.mxu0 0.0
      %1137 = vmatprep.subr.mxu0 0.0
      %1138 = vmatpush1.xpose.msra.mxu0 0.0
      %1139 = vmatprep.subr.mxu0 0.0
      %1140 = vmatpush1.xpose.msra.mxu0 0.0
      %1141 = vmatprep.subr.mxu0 0.0
      %1142 = vmatpush1.xpose.msra.mxu0 0.0
      %1143 = vmatprep.subr.mxu0 0.0
      %1144 = vmatpush1.xpose.msra.mxu0 0.0
      %1145 = vmatprep.subr.mxu0 0.0
      %1146 = vmatpush1.xpose.msra.mxu0 0.0
      %1147 = vmatprep.subr.mxu0 0.0
      %1148 = vmatpush1.xpose.msra.mxu0 0.0
      %1149 = vmatprep.subr.mxu0 0.0
      %1150 = vmatpush1.xpose.msra.mxu0 0.0
      %1151 = vmatprep.subr.mxu0 0.0
      %1152 = vmatpush1.xpose.msra.mxu0 0.0
      %1153 = vmatprep.subr.mxu0 0.0
      %1154 = vmatpush1.xpose.msra.mxu0 0.0
      %1155 = vmatprep.subr.mxu0 0.0
      %1156 = vmatpush1.xpose.msra.mxu0 0.0
      %1157 = vmatprep.subr.mxu0 0.0
      %1158 = vmatpush1.xpose.msra.mxu0 0.0
      %1159 = vmatprep.subr.mxu0 0.0
      %1160 = vmatpush1.xpose.msra.mxu0 0.0
      %1161 = vmatprep.subr.mxu0 0.0
      %1162 = vmatpush1.xpose.msra.mxu0 0.0
      %1163 = vmatprep.subr.mxu0 0.0
      %1164 = vmatpush1.xpose.msra.mxu0 0.0
      %1165 = vmatprep.subr.mxu0 0.0
      %1166 = vmatpush1.xpose.msra.mxu0 0.0
      %1167 = vmatprep.subr.mxu0 0.0
      %1168 = vmatpush1.xpose.msra.mxu0 0.0
      %1169 = vmatprep.subr.mxu0 0.0
      %1170 = vmatpush1.xpose.msra.mxu0 0.0
      %1171 = vmatprep.subr.mxu0 0.0
      %1172 = vmatpush1.xpose.msra.mxu0 0.0
      %1173 = vmatprep.mubr.f32.mxu0 0.0
      %1174 = vmatmul.mubr.f32.gmra.mrb[0].mxu0 %v1104
      %v1175 = vpop.f32.mrb[0].mxu0
      %v1176 = vadd.f32 0.0, %v1175
      %v1177 = vpop.f32.mrb[0].mxu0
      %1178 = vdwg.mxu0
      %v1180 = vsel %vm266, %v230, 0
      %v1183 = vsel %vm266, %v246, 0
      %1185 = vmatprep.subr.mxu0 0.0
      %1186 = vmatpush1.xpose.msra.mxu0 %v1183
      %1187 = vmatprep.subr.mxu0 0.0
      %1188 = vmatpush1.xpose.msra.mxu0 0.0
      %1189 = vmatprep.subr.mxu0 0.0
      %1190 = vmatpush1.xpose.msra.mxu0 0.0
      %1191 = vmatprep.subr.mxu0 0.0
      %1192 = vmatpush1.xpose.msra.mxu0 0.0
      %1193 = vmatprep.subr.mxu0 0.0
      %1194 = vmatpush1.xpose.msra.mxu0 0.0
      %1195 = vmatprep.subr.mxu0 0.0
      %1196 = vmatpush1.xpose.msra.mxu0 0.0
      %1197 = vmatprep.subr.mxu0 0.0
      %1198 = vmatpush1.xpose.msra.mxu0 0.0
      %1199 = vmatprep.subr.mxu0 0.0
      %1200 = vmatpush1.xpose.msra.mxu0 0.0
      %1201 = vmatprep.subr.mxu0 0.0
      %1202 = vmatpush1.xpose.msra.mxu0 0.0
      %1203 = vmatprep.subr.mxu0 0.0
      %1204 = vmatpush1.xpose.msra.mxu0 0.0
      %1205 = vmatprep.subr.mxu0 0.0
      %1206 = vmatpush1.xpose.msra.mxu0 0.0
      %1207 = vmatprep.subr.mxu0 0.0
      %1208 = vmatpush1.xpose.msra.mxu0 0.0
      %1209 = vmatprep.subr.mxu0 0.0
      %1210 = vmatpush1.xpose.msra.mxu0 0.0
      %1211 = vmatprep.subr.mxu0 0.0
      %1212 = vmatpush1.xpose.msra.mxu0 0.0
      %1213 = vmatprep.subr.mxu0 0.0
      %1214 = vmatpush1.xpose.msra.mxu0 0.0
      %1215 = vmatprep.subr.mxu0 0.0
      %1216 = vmatpush1.xpose.msra.mxu0 0.0
      %1217 = vmatprep.subr.mxu0 0.0
      %1218 = vmatpush1.xpose.msra.mxu0 0.0
      %1219 = vmatprep.subr.mxu0 0.0
      %1220 = vmatpush1.xpose.msra.mxu0 0.0
      %1221 = vmatprep.subr.mxu0 0.0
      %1222 = vmatpush1.xpose.msra.mxu0 0.0
      %1223 = vmatprep.subr.mxu0 0.0
      %1224 = vmatpush1.xpose.msra.mxu0 0.0
      %1225 = vmatprep.subr.mxu0 0.0
      %1226 = vmatpush1.xpose.msra.mxu0 0.0
      %1227 = vmatprep.subr.mxu0 0.0
      %1228 = vmatpush1.xpose.msra.mxu0 0.0
      %1229 = vmatprep.subr.mxu0 0.0
      %1230 = vmatpush1.xpose.msra.mxu0 0.0
      %1231 = vmatprep.subr.mxu0 0.0
      %1232 = vmatpush1.xpose.msra.mxu0 0.0
      %1233 = vmatprep.subr.mxu0 0.0
      %1234 = vmatpush1.xpose.msra.mxu0 0.0
      %1235 = vmatprep.subr.mxu0 0.0
      %1236 = vmatpush1.xpose.msra.mxu0 0.0
      %1237 = vmatprep.subr.mxu0 0.0
      %1238 = vmatpush1.xpose.msra.mxu0 0.0
      %1239 = vmatprep.subr.mxu0 0.0
      %1240 = vmatpush1.xpose.msra.mxu0 0.0
      %1241 = vmatprep.subr.mxu0 0.0
      %1242 = vmatpush1.xpose.msra.mxu0 0.0
      %1243 = vmatprep.subr.mxu0 0.0
      %1244 = vmatpush1.xpose.msra.mxu0 0.0
      %1245 = vmatprep.subr.mxu0 0.0
      %1246 = vmatpush1.xpose.msra.mxu0 0.0
      %1247 = vmatprep.subr.mxu0 0.0
      %1248 = vmatpush1.xpose.msra.mxu0 0.0
      %1249 = vmatprep.mubr.f32.mxu0 0.0
      %1250 = vmatmul.mubr.f32.gmra.mrb[0].mxu0 %v1180
      %v1251 = vpop.f32.mrb[0].mxu0
      %v1252 = vadd.f32 0.0, %v1251
      %v1253 = vpop.f32.mrb[0].mxu0
      %1254 = vdwg.mxu0
      %v1256 = vsel %vm266, %v231, 0
      %v1259 = vsel %vm266, %v247, 0
      %1261 = vmatprep.subr.mxu0 0.0
      %1262 = vmatpush1.xpose.msra.mxu0 %v1259
      %1263 = vmatprep.subr.mxu0 0.0
      %1264 = vmatpush1.xpose.msra.mxu0 0.0
      %1265 = vmatprep.subr.mxu0 0.0
      %1266 = vmatpush1.xpose.msra.mxu0 0.0
      %1267 = vmatprep.subr.mxu0 0.0
      %1268 = vmatpush1.xpose.msra.mxu0 0.0
      %1269 = vmatprep.subr.mxu0 0.0
      %1270 = vmatpush1.xpose.msra.mxu0 0.0
      %1271 = vmatprep.subr.mxu0 0.0
      %1272 = vmatpush1.xpose.msra.mxu0 0.0
      %1273 = vmatprep.subr.mxu0 0.0
      %1274 = vmatpush1.xpose.msra.mxu0 0.0
      %1275 = vmatprep.subr.mxu0 0.0
      %1276 = vmatpush1.xpose.msra.mxu0 0.0
      %1277 = vmatprep.subr.mxu0 0.0
      %1278 = vmatpush1.xpose.msra.mxu0 0.0
      %1279 = vmatprep.subr.mxu0 0.0
      %1280 = vmatpush1.xpose.msra.mxu0 0.0
      %1281 = vmatprep.subr.mxu0 0.0
      %1282 = vmatpush1.xpose.msra.mxu0 0.0
      %1283 = vmatprep.subr.mxu0 0.0
      %1284 = vmatpush1.xpose.msra.mxu0 0.0
      %1285 = vmatprep.subr.mxu0 0.0
      %1286 = vmatpush1.xpose.msra.mxu0 0.0
      %1287 = vmatprep.subr.mxu0 0.0
      %1288 = vmatpush1.xpose.msra.mxu0 0.0
      %1289 = vmatprep.subr.mxu0 0.0
      %1290 = vmatpush1.xpose.msra.mxu0 0.0
      %1291 = vmatprep.subr.mxu0 0.0
      %1292 = vmatpush1.xpose.msra.mxu0 0.0
      %1293 = vmatprep.subr.mxu0 0.0
      %1294 = vmatpush1.xpose.msra.mxu0 0.0
      %1295 = vmatprep.subr.mxu0 0.0
      %1296 = vmatpush1.xpose.msra.mxu0 0.0
      %1297 = vmatprep.subr.mxu0 0.0
      %1298 = vmatpush1.xpose.msra.mxu0 0.0
      %1299 = vmatprep.subr.mxu0 0.0
      %1300 = vmatpush1.xpose.msra.mxu0 0.0
      %1301 = vmatprep.subr.mxu0 0.0
      %1302 = vmatpush1.xpose.msra.mxu0 0.0
      %1303 = vmatprep.subr.mxu0 0.0
      %1304 = vmatpush1.xpose.msra.mxu0 0.0
      %1305 = vmatprep.subr.mxu0 0.0
      %1306 = vmatpush1.xpose.msra.mxu0 0.0
      %1307 = vmatprep.subr.mxu0 0.0
      %1308 = vmatpush1.xpose.msra.mxu0 0.0
      %1309 = vmatprep.subr.mxu0 0.0
      %1310 = vmatpush1.xpose.msra.mxu0 0.0
      %1311 = vmatprep.subr.mxu0 0.0
      %1312 = vmatpush1.xpose.msra.mxu0 0.0
      %1313 = vmatprep.subr.mxu0 0.0
      %1314 = vmatpush1.xpose.msra.mxu0 0.0
      %1315 = vmatprep.subr.mxu0 0.0
      %1316 = vmatpush1.xpose.msra.mxu0 0.0
      %1317 = vmatprep.subr.mxu0 0.0
      %1318 = vmatpush1.xpose.msra.mxu0 0.0
      %1319 = vmatprep.subr.mxu0 0.0
      %1320 = vmatpush1.xpose.msra.mxu0 0.0
      %1321 = vmatprep.subr.mxu0 0.0
      %1322 = vmatpush1.xpose.msra.mxu0 0.0
      %1323 = vmatprep.subr.mxu0 0.0
      %1324 = vmatpush1.xpose.msra.mxu0 0.0
      %1325 = vmatprep.mubr.f32.mxu0 0.0
      %1326 = vmatmul.mubr.f32.gmra.mrb[0].mxu0 %v1256
      %v1327 = vpop.f32.mrb[0].mxu0
      %v1328 = vadd.f32 0.0, %v1327
      %v1329 = vpop.f32.mrb[0].mxu0
      %1330 = vdwg.mxu0
      %v1332 = vsel %vm266, %v232, 0
      %v1335 = vsel %vm266, %v248, 0
      %1337 = vmatprep.subr.mxu0 0.0
      %1338 = vmatpush1.xpose.msra.mxu0 %v1335
      %1339 = vmatprep.subr.mxu0 0.0
      %1340 = vmatpush1.xpose.msra.mxu0 0.0
      %1341 = vmatprep.subr.mxu0 0.0
      %1342 = vmatpush1.xpose.msra.mxu0 0.0
      %1343 = vmatprep.subr.mxu0 0.0
      %1344 = vmatpush1.xpose.msra.mxu0 0.0
      %1345 = vmatprep.subr.mxu0 0.0
      %1346 = vmatpush1.xpose.msra.mxu0 0.0
      %1347 = vmatprep.subr.mxu0 0.0
      %1348 = vmatpush1.xpose.msra.mxu0 0.0
      %1349 = vmatprep.subr.mxu0 0.0
      %1350 = vmatpush1.xpose.msra.mxu0 0.0
      %1351 = vmatprep.subr.mxu0 0.0
      %1352 = vmatpush1.xpose.msra.mxu0 0.0
      %1353 = vmatprep.subr.mxu0 0.0
      %1354 = vmatpush1.xpose.msra.mxu0 0.0
      %1355 = vmatprep.subr.mxu0 0.0
      %1356 = vmatpush1.xpose.msra.mxu0 0.0
      %1357 = vmatprep.subr.mxu0 0.0
      %1358 = vmatpush1.xpose.msra.mxu0 0.0
      %1359 = vmatprep.subr.mxu0 0.0
      %1360 = vmatpush1.xpose.msra.mxu0 0.0
      %1361 = vmatprep.subr.mxu0 0.0
      %1362 = vmatpush1.xpose.msra.mxu0 0.0
      %1363 = vmatprep.subr.mxu0 0.0
      %1364 = vmatpush1.xpose.msra.mxu0 0.0
      %1365 = vmatprep.subr.mxu0 0.0
      %1366 = vmatpush1.xpose.msra.mxu0 0.0
      %1367 = vmatprep.subr.mxu0 0.0
      %1368 = vmatpush1.xpose.msra.mxu0 0.0
      %1369 = vmatprep.subr.mxu0 0.0
      %1370 = vmatpush1.xpose.msra.mxu0 0.0
      %1371 = vmatprep.subr.mxu0 0.0
      %1372 = vmatpush1.xpose.msra.mxu0 0.0
      %1373 = vmatprep.subr.mxu0 0.0
      %1374 = vmatpush1.xpose.msra.mxu0 0.0
      %1375 = vmatprep.subr.mxu0 0.0
      %1376 = vmatpush1.xpose.msra.mxu0 0.0
      %1377 = vmatprep.subr.mxu0 0.0
      %1378 = vmatpush1.xpose.msra.mxu0 0.0
      %1379 = vmatprep.subr.mxu0 0.0
      %1380 = vmatpush1.xpose.msra.mxu0 0.0
      %1381 = vmatprep.subr.mxu0 0.0
      %1382 = vmatpush1.xpose.msra.mxu0 0.0
      %1383 = vmatprep.subr.mxu0 0.0
      %1384 = vmatpush1.xpose.msra.mxu0 0.0
      %1385 = vmatprep.subr.mxu0 0.0
      %1386 = vmatpush1.xpose.msra.mxu0 0.0
      %1387 = vmatprep.subr.mxu0 0.0
      %1388 = vmatpush1.xpose.msra.mxu0 0.0
      %1389 = vmatprep.subr.mxu0 0.0
      %1390 = vmatpush1.xpose.msra.mxu0 0.0
      %1391 = vmatprep.subr.mxu0 0.0
      %1392 = vmatpush1.xpose.msra.mxu0 0.0
      %1393 = vmatprep.subr.mxu0 0.0
      %1394 = vmatpush1.xpose.msra.mxu0 0.0
      %1395 = vmatprep.subr.mxu0 0.0
      %1396 = vmatpush1.xpose.msra.mxu0 0.0
      %1397 = vmatprep.subr.mxu0 0.0
      %1398 = vmatpush1.xpose.msra.mxu0 0.0
      %1399 = vmatprep.subr.mxu0 0.0
      %1400 = vmatpush1.xpose.msra.mxu0 0.0
      %1401 = vmatprep.mubr.f32.mxu0 0.0
      %1402 = vmatmul.mubr.f32.gmra.mrb[0].mxu0 %v1332
      %v1403 = vpop.f32.mrb[0].mxu0
      %v1404 = vadd.f32 0.0, %v1403
      %v1405 = vpop.f32.mrb[0].mxu0
      %1406 = vdwg.mxu0
      %v1408 = vsel %vm266, %v233, 0
      %v1411 = vsel %vm266, %v249, 0
      %1413 = vmatprep.subr.mxu0 0.0
      %1414 = vmatpush1.xpose.msra.mxu0 %v1411
      %1415 = vmatprep.subr.mxu0 0.0
      %1416 = vmatpush1.xpose.msra.mxu0 0.0
      %1417 = vmatprep.subr.mxu0 0.0
      %1418 = vmatpush1.xpose.msra.mxu0 0.0
      %1419 = vmatprep.subr.mxu0 0.0
      %1420 = vmatpush1.xpose.msra.mxu0 0.0
      %1421 = vmatprep.subr.mxu0 0.0
      %1422 = vmatpush1.xpose.msra.mxu0 0.0
      %1423 = vmatprep.subr.mxu0 0.0
      %1424 = vmatpush1.xpose.msra.mxu0 0.0
      %1425 = vmatprep.subr.mxu0 0.0
      %1426 = vmatpush1.xpose.msra.mxu0 0.0
      %1427 = vmatprep.subr.mxu0 0.0
      %1428 = vmatpush1.xpose.msra.mxu0 0.0
      %1429 = vmatprep.subr.mxu0 0.0
      %1430 = vmatpush1.xpose.msra.mxu0 0.0
      %1431 = vmatprep.subr.mxu0 0.0
      %1432 = vmatpush1.xpose.msra.mxu0 0.0
      %1433 = vmatprep.subr.mxu0 0.0
      %1434 = vmatpush1.xpose.msra.mxu0 0.0
      %1435 = vmatprep.subr.mxu0 0.0
      %1436 = vmatpush1.xpose.msra.mxu0 0.0
      %1437 = vmatprep.subr.mxu0 0.0
      %1438 = vmatpush1.xpose.msra.mxu0 0.0
      %1439 = vmatprep.subr.mxu0 0.0
      %1440 = vmatpush1.xpose.msra.mxu0 0.0
      %1441 = vmatprep.subr.mxu0 0.0
      %1442 = vmatpush1.xpose.msra.mxu0 0.0
      %1443 = vmatprep.subr.mxu0 0.0
      %1444 = vmatpush1.xpose.msra.mxu0 0.0
      %1445 = vmatprep.subr.mxu0 0.0
      %1446 = vmatpush1.xpose.msra.mxu0 0.0
      %1447 = vmatprep.subr.mxu0 0.0
      %1448 = vmatpush1.xpose.msra.mxu0 0.0
      %1449 = vmatprep.subr.mxu0 0.0
      %1450 = vmatpush1.xpose.msra.mxu0 0.0
      %1451 = vmatprep.subr.mxu0 0.0
      %1452 = vmatpush1.xpose.msra.mxu0 0.0
      %1453 = vmatprep.subr.mxu0 0.0
      %1454 = vmatpush1.xpose.msra.mxu0 0.0
      %1455 = vmatprep.subr.mxu0 0.0
      %1456 = vmatpush1.xpose.msra.mxu0 0.0
      %1457 = vmatprep.subr.mxu0 0.0
      %1458 = vmatpush1.xpose.msra.mxu0 0.0
      %1459 = vmatprep.subr.mxu0 0.0
      %1460 = vmatpush1.xpose.msra.mxu0 0.0
      %1461 = vmatprep.subr.mxu0 0.0
      %1462 = vmatpush1.xpose.msra.mxu0 0.0
      %1463 = vmatprep.subr.mxu0 0.0
      %1464 = vmatpush1.xpose.msra.mxu0 0.0
      %1465 = vmatprep.subr.mxu0 0.0
      %1466 = vmatpush1.xpose.msra.mxu0 0.0
      %1467 = vmatprep.subr.mxu0 0.0
      %1468 = vmatpush1.xpose.msra.mxu0 0.0
      %1469 = vmatprep.subr.mxu0 0.0
      %1470 = vmatpush1.xpose.msra.mxu0 0.0
      %1471 = vmatprep.subr.mxu0 0.0
      %1472 = vmatpush1.xpose.msra.mxu0 0.0
      %1473 = vmatprep.subr.mxu0 0.0
      %1474 = vmatpush1.xpose.msra.mxu0 0.0
      %1475 = vmatprep.subr.mxu0 0.0
      %1476 = vmatpush1.xpose.msra.mxu0 0.0
      %1477 = vmatprep.mubr.f32.mxu0 0.0
      %1478 = vmatmul.mubr.f32.gmra.mrb[0].mxu0 %v1408
      %v1479 = vpop.f32.mrb[0].mxu0
      %v1480 = vadd.f32 0.0, %v1479
      %v1481 = vpop.f32.mrb[0].mxu0
      %1482 = vdwg.mxu0
      %v1483 = vsel %vm266, %v340, -inf
      %1484 = vmax.xlane.f32.xlu0 %v1483
      %v1485 = vpop.xlane.xlu0 %1484
      %v1486 = vsel %vm266, %v416, -inf
      %1487 = vmax.xlane.f32.xlu0 %v1486
      %v1488 = vpop.xlane.xlu0 %1487
      %v1489 = vsel %vm266, %v492, -inf
      %1490 = vmax.xlane.f32.xlu0 %v1489
      %v1491 = vpop.xlane.xlu0 %1490
      %v1492 = vsel %vm266, %v568, -inf
      %1493 = vmax.xlane.f32.xlu0 %v1492
      %v1494 = vpop.xlane.xlu0 %1493
      %v1495 = vsel %vm266, %v644, -inf
      %1496 = vmax.xlane.f32.xlu0 %v1495
      %v1497 = vpop.xlane.xlu0 %1496
      %v1498 = vsel %vm266, %v720, -inf
      %1499 = vmax.xlane.f32.xlu0 %v1498
      %v1500 = vpop.xlane.xlu0 %1499
      %v1501 = vsel %vm266, %v796, -inf
      %1502 = vmax.xlane.f32.xlu0 %v1501
      %v1503 = vpop.xlane.xlu0 %1502
      %v1504 = vsel %vm266, %v872, -inf
      %1505 = vmax.xlane.f32.xlu0 %v1504
      %v1506 = vpop.xlane.xlu0 %1505
      %v1507 = vsel %vm266, %v948, -inf
      %1508 = vmax.xlane.f32.xlu0 %v1507
      %v1509 = vpop.xlane.xlu0 %1508
      %v1510 = vsel %vm266, %v1024, -inf
      %1511 = vmax.xlane.f32.xlu0 %v1510
      %v1512 = vpop.xlane.xlu0 %1511
      %v1513 = vsel %vm266, %v1100, -inf
      %1514 = vmax.xlane.f32.xlu0 %v1513
      %v1515 = vpop.xlane.xlu0 %1514
      %v1516 = vsel %vm266, %v1176, -inf
      %1517 = vmax.xlane.f32.xlu0 %v1516
      %v1518 = vpop.xlane.xlu0 %1517
      %v1519 = vsel %vm266, %v1252, -inf
      %1520 = vmax.xlane.f32.xlu0 %v1519
      %v1521 = vpop.xlane.xlu0 %1520
      %v1522 = vsel %vm266, %v1328, -inf
      %1523 = vmax.xlane.f32.xlu0 %v1522
      %v1524 = vpop.xlane.xlu0 %1523
      %v1525 = vsel %vm266, %v1404, -inf
      %1526 = vmax.xlane.f32.xlu0 %v1525
      %v1527 = vpop.xlane.xlu0 %1526
      %v1528 = vsel %vm266, %v1480, -inf
      %1529 = vmax.xlane.f32.xlu0 %v1528
      %v1530 = vpop.xlane.xlu0 %1529
      %v1531 = vsub.f32 %v340, %v1485
      %v1532 = vsub.f32 %v416, %v1488
      %v1533 = vsub.f32 %v492, %v1491
      %v1534 = vsub.f32 %v568, %v1494
      %v1535 = vsub.f32 %v644, %v1497
      %v1536 = vsub.f32 %v720, %v1500
      %v1537 = vsub.f32 %v796, %v1503
      %v1538 = vsub.f32 %v872, %v1506
      %v1539 = vsub.f32 %v948, %v1509
      %v1540 = vsub.f32 %v1024, %v1512
      %v1541 = vsub.f32 %v1100, %v1515
      %v1542 = vsub.f32 %v1176, %v1518
      %v1543 = vsub.f32 %v1252, %v1521
      %v1544 = vsub.f32 %v1328, %v1524
      %v1545 = vsub.f32 %v1404, %v1527
      %v1546 = vsub.f32 %v1480, %v1530
      %v1547 = vmul.f32 %v1531, 1.442695
      %v1548 = vpow.pop %v1547
      %v1549 = vmul.f32 %v1532, 1.442695
      %v1550 = vpow.pop %v1549
      %v1551 = vmul.f32 %v1533, 1.442695
      %v1552 = vpow.pop %v1551
      %v1553 = vmul.f32 %v1534, 1.442695
      %v1554 = vpow.pop %v1553
      %v1555 = vmul.f32 %v1535, 1.442695
      %v1556 = vpow.pop %v1555
      %v1557 = vmul.f32 %v1536, 1.442695
      %v1558 = vpow.pop %v1557
      %v1559 = vmul.f32 %v1537, 1.442695
      %v1560 = vpow.pop %v1559
      %v1561 = vmul.f32 %v1538, 1.442695
      %v1562 = vpow.pop %v1561
      %v1563 = vmul.f32 %v1539, 1.442695
      %v1564 = vpow.pop %v1563
      %v1565 = vmul.f32 %v1540, 1.442695
      %v1566 = vpow.pop %v1565
      %v1567 = vmul.f32 %v1541, 1.442695
      %v1568 = vpow.pop %v1567
      %v1569 = vmul.f32 %v1542, 1.442695
      %v1570 = vpow.pop %v1569
      %v1571 = vmul.f32 %v1543, 1.442695
      %v1572 = vpow.pop %v1571
      %v1573 = vmul.f32 %v1544, 1.442695
      %v1574 = vpow.pop %v1573
      %v1575 = vmul.f32 %v1545, 1.442695
      %v1576 = vpow.pop %v1575
      %v1577 = vmul.f32 %v1546, 1.442695
      %v1578 = vpow.pop %v1577
      %v1579 = vsel %vm266, %v1548, 0.0
      %1580 = vadd.xlane.f32.xlu0 %v1579
      %v1581 = vpop.xlane.xlu0 %1580
      %v1582 = vsel %vm266, %v1550, 0.0
      %1583 = vadd.xlane.f32.xlu0 %v1582
      %v1584 = vpop.xlane.xlu0 %1583
      %v1585 = vsel %vm266, %v1552, 0.0
      %1586 = vadd.xlane.f32.xlu0 %v1585
      %v1587 = vpop.xlane.xlu0 %1586
      %v1588 = vsel %vm266, %v1554, 0.0
      %1589 = vadd.xlane.f32.xlu0 %v1588
      %v1590 = vpop.xlane.xlu0 %1589
      %v1591 = vsel %vm266, %v1556, 0.0
      %1592 = vadd.xlane.f32.xlu0 %v1591
      %v1593 = vpop.xlane.xlu0 %1592
      %v1594 = vsel %vm266, %v1558, 0.0
      %1595 = vadd.xlane.f32.xlu0 %v1594
      %v1596 = vpop.xlane.xlu0 %1595
      %v1597 = vsel %vm266, %v1560, 0.0
      %1598 = vadd.xlane.f32.xlu0 %v1597
      %v1599 = vpop.xlane.xlu0 %1598
      %v1600 = vsel %vm266, %v1562, 0.0
      %1601 = vadd.xlane.f32.xlu0 %v1600
      %v1602 = vpop.xlane.xlu0 %1601
      %v1603 = vsel %vm266, %v1564, 0.0
      %1604 = vadd.xlane.f32.xlu0 %v1603
      %v1605 = vpop.xlane.xlu0 %1604
      %v1606 = vsel %vm266, %v1566, 0.0
      %1607 = vadd.xlane.f32.xlu0 %v1606
      %v1608 = vpop.xlane.xlu0 %1607
      %v1609 = vsel %vm266, %v1568, 0.0
      %1610 = vadd.xlane.f32.xlu0 %v1609
      %v1611 = vpop.xlane.xlu0 %1610
      %v1612 = vsel %vm266, %v1570, 0.0
      %1613 = vadd.xlane.f32.xlu0 %v1612
      %v1614 = vpop.xlane.xlu0 %1613
      %v1615 = vsel %vm266, %v1572, 0.0
      %1616 = vadd.xlane.f32.xlu0 %v1615
      %v1617 = vpop.xlane.xlu0 %1616
      %v1618 = vsel %vm266, %v1574, 0.0
      %1619 = vadd.xlane.f32.xlu0 %v1618
      %v1620 = vpop.xlane.xlu0 %1619
      %v1621 = vsel %vm266, %v1576, 0.0
      %1622 = vadd.xlane.f32.xlu0 %v1621
      %v1623 = vpop.xlane.xlu0 %1622
      %v1624 = vsel %vm266, %v1578, 0.0
      %1625 = vadd.xlane.f32.xlu0 %v1624
      %v1626 = vpop.xlane.xlu0 %1625
      %v1627 = vrcp.pop %v1581
      %v1628 = vrcp.pop %v1584
      %v1629 = vrcp.pop %v1587
      %v1630 = vrcp.pop %v1590
      %v1631 = vrcp.pop %v1593
      %v1632 = vrcp.pop %v1596
      %v1633 = vrcp.pop %v1599
      %v1634 = vrcp.pop %v1602
      %v1635 = vrcp.pop %v1605
      %v1636 = vrcp.pop %v1608
      %v1637 = vrcp.pop %v1611
      %v1638 = vrcp.pop %v1614
      %v1639 = vrcp.pop %v1617
      %v1640 = vrcp.pop %v1620
      %v1641 = vrcp.pop %v1623
      %v1642 = vrcp.pop %v1626
      %v1643 = vmul.f32 %v1548, %v1627
      %v1644 = vmul.f32 %v1550, %v1628
      %v1645 = vmul.f32 %v1552, %v1629
      %v1646 = vmul.f32 %v1554, %v1630
      %v1647 = vmul.f32 %v1556, %v1631
      %v1648 = vmul.f32 %v1558, %v1632
      %v1649 = vmul.f32 %v1560, %v1633
      %v1650 = vmul.f32 %v1562, %v1634
      %v1651 = vmul.f32 %v1564, %v1635
      %v1652 = vmul.f32 %v1566, %v1636
      %v1653 = vmul.f32 %v1568, %v1637
      %v1654 = vmul.f32 %v1570, %v1638
      %v1655 = vmul.f32 %v1572, %v1639
      %v1656 = vmul.f32 %v1574, %v1640
      %v1657 = vmul.f32 %v1576, %v1641
      %v1658 = vmul.f32 %v1578, %v1642
      %v1660 = vsel %vm266, %v1643, 0
      %1662 = vmatprep.subr.mxu0 0.0
      %1663 = vmatpush1.msra.mxu0 %v250
      %1664 = vmatprep.subr.mxu0 0.0
      %1665 = vmatpush1.msra.mxu0 0.0
      %1666 = vmatprep.subr.mxu0 0.0
      %1667 = vmatpush1.msra.mxu0 0.0
      %1668 = vmatprep.subr.mxu0 0.0
      %1669 = vmatpush1.msra.mxu0 0.0
      %1670 = vmatprep.subr.mxu0 0.0
      %1671 = vmatpush1.msra.mxu0 0.0
      %1672 = vmatprep.subr.mxu0 0.0
      %1673 = vmatpush1.msra.mxu0 0.0
      %1674 = vmatprep.subr.mxu0 0.0
      %1675 = vmatpush1.msra.mxu0 0.0
      %1676 = vmatprep.subr.mxu0 0.0
      %1677 = vmatpush1.msra.mxu0 0.0
      %1678 = vmatprep.subr.mxu0 0.0
      %1679 = vmatpush1.msra.mxu0 0.0
      %1680 = vmatprep.subr.mxu0 0.0
      %1681 = vmatpush1.msra.mxu0 0.0
      %1682 = vmatprep.subr.mxu0 0.0
      %1683 = vmatpush1.msra.mxu0 0.0
      %1684 = vmatprep.subr.mxu0 0.0
      %1685 = vmatpush1.msra.mxu0 0.0
      %1686 = vmatprep.subr.mxu0 0.0
      %1687 = vmatpush1.msra.mxu0 0.0
      %1688 = vmatprep.subr.mxu0 0.0
      %1689 = vmatpush1.msra.mxu0 0.0
      %1690 = vmatprep.subr.mxu0 0.0
      %1691 = vmatpush1.msra.mxu0 0.0
      %1692 = vmatprep.subr.mxu0 0.0
      %1693 = vmatpush1.msra.mxu0 0.0
      %1694 = vmatprep.subr.mxu0 0.0
      %1695 = vmatpush1.msra.mxu0 0.0
      %1696 = vmatprep.subr.mxu0 0.0
      %1697 = vmatpush1.msra.mxu0 0.0
      %1698 = vmatprep.subr.mxu0 0.0
      %1699 = vmatpush1.msra.mxu0 0.0
      %1700 = vmatprep.subr.mxu0 0.0
      %1701 = vmatpush1.msra.mxu0 0.0
      %1702 = vmatprep.subr.mxu0 0.0
      %1703 = vmatpush1.msra.mxu0 0.0
      %1704 = vmatprep.subr.mxu0 0.0
      %1705 = vmatpush1.msra.mxu0 0.0
      %1706 = vmatprep.subr.mxu0 0.0
      %1707 = vmatpush1.msra.mxu0 0.0
      %1708 = vmatprep.subr.mxu0 0.0
      %1709 = vmatpush1.msra.mxu0 0.0
      %1710 = vmatprep.subr.mxu0 0.0
      %1711 = vmatpush1.msra.mxu0 0.0
      %1712 = vmatprep.subr.mxu0 0.0
      %1713 = vmatpush1.msra.mxu0 0.0
      %1714 = vmatprep.subr.mxu0 0.0
      %1715 = vmatpush1.msra.mxu0 0.0
      %1716 = vmatprep.subr.mxu0 0.0
      %1717 = vmatpush1.msra.mxu0 0.0
      %1718 = vmatprep.subr.mxu0 0.0
      %1719 = vmatpush1.msra.mxu0 0.0
      %1720 = vmatprep.subr.mxu0 0.0
      %1721 = vmatpush1.msra.mxu0 0.0
      %1722 = vmatprep.subr.mxu0 0.0
      %1723 = vmatpush1.msra.mxu0 0.0
      %1724 = vmatprep.subr.mxu0 0.0
      %1725 = vmatpush1.msra.mxu0 0.0
      %1726 = vmatprep.mubr.f32.mxu0 0.0
      %1727 = vmatmul.mubr.f32.gmra.mrb[0].mxu0 %v1660
      %v1728 = vpop.f32.mrb[0].mxu0
      %v1729 = vadd.f32 0.0, %v1728
      %v1730 = vpop.f32.mrb[0].mxu0
      %1731 = vdwg.mxu0
      %v1733 = vsel %vm266, %v1644, 0
      %1735 = vmatprep.subr.mxu0 0.0
      %1736 = vmatpush1.msra.mxu0 %v251
      %1737 = vmatprep.subr.mxu0 0.0
      %1738 = vmatpush1.msra.mxu0 0.0
      %1739 = vmatprep.subr.mxu0 0.0
      %1740 = vmatpush1.msra.mxu0 0.0
      %1741 = vmatprep.subr.mxu0 0.0
      %1742 = vmatpush1.msra.mxu0 0.0
      %1743 = vmatprep.subr.mxu0 0.0
      %1744 = vmatpush1.msra.mxu0 0.0
      %1745 = vmatprep.subr.mxu0 0.0
      %1746 = vmatpush1.msra.mxu0 0.0
      %1747 = vmatprep.subr.mxu0 0.0
      %1748 = vmatpush1.msra.mxu0 0.0
      %1749 = vmatprep.subr.mxu0 0.0
      %1750 = vmatpush1.msra.mxu0 0.0
      %1751 = vmatprep.subr.mxu0 0.0
      %1752 = vmatpush1.msra.mxu0 0.0
      %1753 = vmatprep.subr.mxu0 0.0
      %1754 = vmatpush1.msra.mxu0 0.0
      %1755 = vmatprep.subr.mxu0 0.0
      %1756 = vmatpush1.msra.mxu0 0.0
      %1757 = vmatprep.subr.mxu0 0.0
      %1758 = vmatpush1.msra.mxu0 0.0
      %1759 = vmatprep.subr.mxu0 0.0
      %1760 = vmatpush1.msra.mxu0 0.0
      %1761 = vmatprep.subr.mxu0 0.0
      %1762 = vmatpush1.msra.mxu0 0.0
      %1763 = vmatprep.subr.mxu0 0.0
      %1764 = vmatpush1.msra.mxu0 0.0
      %1765 = vmatprep.subr.mxu0 0.0
      %1766 = vmatpush1.msra.mxu0 0.0
      %1767 = vmatprep.subr.mxu0 0.0
      %1768 = vmatpush1.msra.mxu0 0.0
      %1769 = vmatprep.subr.mxu0 0.0
      %1770 = vmatpush1.msra.mxu0 0.0
      %1771 = vmatprep.subr.mxu0 0.0
      %1772 = vmatpush1.msra.mxu0 0.0
      %1773 = vmatprep.subr.mxu0 0.0
      %1774 = vmatpush1.msra.mxu0 0.0
      %1775 = vmatprep.subr.mxu0 0.0
      %1776 = vmatpush1.msra.mxu0 0.0
      %1777 = vmatprep.subr.mxu0 0.0
      %1778 = vmatpush1.msra.mxu0 0.0
      %1779 = vmatprep.subr.mxu0 0.0
      %1780 = vmatpush1.msra.mxu0 0.0
      %1781 = vmatprep.subr.mxu0 0.0
      %1782 = vmatpush1.msra.mxu0 0.0
      %1783 = vmatprep.subr.mxu0 0.0
      %1784 = vmatpush1.msra.mxu0 0.0
      %1785 = vmatprep.subr.mxu0 0.0
      %1786 = vmatpush1.msra.mxu0 0.0
      %1787 = vmatprep.subr.mxu0 0.0
      %1788 = vmatpush1.msra.mxu0 0.0
      %1789 = vmatprep.subr.mxu0 0.0
      %1790 = vmatpush1.msra.mxu0 0.0
      %1791 = vmatprep.subr.mxu0 0.0
      %1792 = vmatpush1.msra.mxu0 0.0
      %1793 = vmatprep.subr.mxu0 0.0
      %1794 = vmatpush1.msra.mxu0 0.0
      %1795 = vmatprep.subr.mxu0 0.0
      %1796 = vmatpush1.msra.mxu0 0.0
      %1797 = vmatprep.subr.mxu0 0.0
      %1798 = vmatpush1.msra.mxu0 0.0
      %1799 = vmatprep.mubr.f32.mxu0 0.0
      %1800 = vmatmul.mubr.f32.gmra.mrb[0].mxu0 %v1733
      %v1801 = vpop.f32.mrb[0].mxu0
      %v1802 = vadd.f32 0.0, %v1801
      %v1803 = vpop.f32.mrb[0].mxu0
      %1804 = vdwg.mxu0
      %v1806 = vsel %vm266, %v1645, 0
      %1808 = vmatprep.subr.mxu0 0.0
      %1809 = vmatpush1.msra.mxu0 %v252
      %1810 = vmatprep.subr.mxu0 0.0
      %1811 = vmatpush1.msra.mxu0 0.0
      %1812 = vmatprep.subr.mxu0 0.0
      %1813 = vmatpush1.msra.mxu0 0.0
      %1814 = vmatprep.subr.mxu0 0.0
      %1815 = vmatpush1.msra.mxu0 0.0
      %1816 = vmatprep.subr.mxu0 0.0
      %1817 = vmatpush1.msra.mxu0 0.0
      %1818 = vmatprep.subr.mxu0 0.0
      %1819 = vmatpush1.msra.mxu0 0.0
      %1820 = vmatprep.subr.mxu0 0.0
      %1821 = vmatpush1.msra.mxu0 0.0
      %1822 = vmatprep.subr.mxu0 0.0
      %1823 = vmatpush1.msra.mxu0 0.0
      %1824 = vmatprep.subr.mxu0 0.0
      %1825 = vmatpush1.msra.mxu0 0.0
      %1826 = vmatprep.subr.mxu0 0.0
      %1827 = vmatpush1.msra.mxu0 0.0
      %1828 = vmatprep.subr.mxu0 0.0
      %1829 = vmatpush1.msra.mxu0 0.0
      %1830 = vmatprep.subr.mxu0 0.0
      %1831 = vmatpush1.msra.mxu0 0.0
      %1832 = vmatprep.subr.mxu0 0.0
      %1833 = vmatpush1.msra.mxu0 0.0
      %1834 = vmatprep.subr.mxu0 0.0
      %1835 = vmatpush1.msra.mxu0 0.0
      %1836 = vmatprep.subr.mxu0 0.0
      %1837 = vmatpush1.msra.mxu0 0.0
      %1838 = vmatprep.subr.mxu0 0.0
      %1839 = vmatpush1.msra.mxu0 0.0
      %1840 = vmatprep.subr.mxu0 0.0
      %1841 = vmatpush1.msra.mxu0 0.0
      %1842 = vmatprep.subr.mxu0 0.0
      %1843 = vmatpush1.msra.mxu0 0.0
      %1844 = vmatprep.subr.mxu0 0.0
      %1845 = vmatpush1.msra.mxu0 0.0
      %1846 = vmatprep.subr.mxu0 0.0
      %1847 = vmatpush1.msra.mxu0 0.0
      %1848 = vmatprep.subr.mxu0 0.0
      %1849 = vmatpush1.msra.mxu0 0.0
      %1850 = vmatprep.subr.mxu0 0.0
      %1851 = vmatpush1.msra.mxu0 0.0
      %1852 = vmatprep.subr.mxu0 0.0
      %1853 = vmatpush1.msra.mxu0 0.0
      %1854 = vmatprep.subr.mxu0 0.0
      %1855 = vmatpush1.msra.mxu0 0.0
      %1856 = vmatprep.subr.mxu0 0.0
      %1857 = vmatpush1.msra.mxu0 0.0
      %1858 = vmatprep.subr.mxu0 0.0
      %1859 = vmatpush1.msra.mxu0 0.0
      %1860 = vmatprep.subr.mxu0 0.0
      %1861 = vmatpush1.msra.mxu0 0.0
      %1862 = vmatprep.subr.mxu0 0.0
      %1863 = vmatpush1.msra.mxu0 0.0
      %1864 = vmatprep.subr.mxu0 0.0
      %1865 = vmatpush1.msra.mxu0 0.0
      %1866 = vmatprep.subr.mxu0 0.0
      %1867 = vmatpush1.msra.mxu0 0.0
      %1868 = vmatprep.subr.mxu0 0.0
      %1869 = vmatpush1.msra.mxu0 0.0
      %1870 = vmatprep.subr.mxu0 0.0
      %1871 = vmatpush1.msra.mxu0 0.0
      %1872 = vmatprep.mubr.f32.mxu0 0.0
      %1873 = vmatmul.mubr.f32.gmra.mrb[0].mxu0 %v1806
      %v1874 = vpop.f32.mrb[0].mxu0
      %v1875 = vadd.f32 0.0, %v1874
      %v1876 = vpop.f32.mrb[0].mxu0
      %1877 = vdwg.mxu0
      %v1879 = vsel %vm266, %v1646, 0
      %1881 = vmatprep.subr.mxu0 0.0
      %1882 = vmatpush1.msra.mxu0 %v253
      %1883 = vmatprep.subr.mxu0 0.0
      %1884 = vmatpush1.msra.mxu0 0.0
      %1885 = vmatprep.subr.mxu0 0.0
      %1886 = vmatpush1.msra.mxu0 0.0
      %1887 = vmatprep.subr.mxu0 0.0
      %1888 = vmatpush1.msra.mxu0 0.0
      %1889 = vmatprep.subr.mxu0 0.0
      %1890 = vmatpush1.msra.mxu0 0.0
      %1891 = vmatprep.subr.mxu0 0.0
      %1892 = vmatpush1.msra.mxu0 0.0
      %1893 = vmatprep.subr.mxu0 0.0
      %1894 = vmatpush1.msra.mxu0 0.0
      %1895 = vmatprep.subr.mxu0 0.0
      %1896 = vmatpush1.msra.mxu0 0.0
      %1897 = vmatprep.subr.mxu0 0.0
      %1898 = vmatpush1.msra.mxu0 0.0
      %1899 = vmatprep.subr.mxu0 0.0
      %1900 = vmatpush1.msra.mxu0 0.0
      %1901 = vmatprep.subr.mxu0 0.0
      %1902 = vmatpush1.msra.mxu0 0.0
      %1903 = vmatprep.subr.mxu0 0.0
      %1904 = vmatpush1.msra.mxu0 0.0
      %1905 = vmatprep.subr.mxu0 0.0
      %1906 = vmatpush1.msra.mxu0 0.0
      %1907 = vmatprep.subr.mxu0 0.0
      %1908 = vmatpush1.msra.mxu0 0.0
      %1909 = vmatprep.subr.mxu0 0.0
      %1910 = vmatpush1.msra.mxu0 0.0
      %1911 = vmatprep.subr.mxu0 0.0
      %1912 = vmatpush1.msra.mxu0 0.0
      %1913 = vmatprep.subr.mxu0 0.0
      %1914 = vmatpush1.msra.mxu0 0.0
      %1915 = vmatprep.subr.mxu0 0.0
      %1916 = vmatpush1.msra.mxu0 0.0
      %1917 = vmatprep.subr.mxu0 0.0
      %1918 = vmatpush1.msra.mxu0 0.0
      %1919 = vmatprep.subr.mxu0 0.0
      %1920 = vmatpush1.msra.mxu0 0.0
      %1921 = vmatprep.subr.mxu0 0.0
      %1922 = vmatpush1.msra.mxu0 0.0
      %1923 = vmatprep.subr.mxu0 0.0
      %1924 = vmatpush1.msra.mxu0 0.0
      %1925 = vmatprep.subr.mxu0 0.0
      %1926 = vmatpush1.msra.mxu0 0.0
      %1927 = vmatprep.subr.mxu0 0.0
      %1928 = vmatpush1.msra.mxu0 0.0
      %1929 = vmatprep.subr.mxu0 0.0
      %1930 = vmatpush1.msra.mxu0 0.0
      %1931 = vmatprep.subr.mxu0 0.0
      %1932 = vmatpush1.msra.mxu0 0.0
      %1933 = vmatprep.subr.mxu0 0.0
      %1934 = vmatpush1.msra.mxu0 0.0
      %1935 = vmatprep.subr.mxu0 0.0
      %1936 = vmatpush1.msra.mxu0 0.0
      %1937 = vmatprep.subr.mxu0 0.0
      %1938 = vmatpush1.msra.mxu0 0.0
      %1939 = vmatprep.subr.mxu0 0.0
      %1940 = vmatpush1.msra.mxu0 0.0
      %1941 = vmatprep.subr.mxu0 0.0
      %1942 = vmatpush1.msra.mxu0 0.0
      %1943 = vmatprep.subr.mxu0 0.0
      %1944 = vmatpush1.msra.mxu0 0.0
      %1945 = vmatprep.mubr.f32.mxu0 0.0
      %1946 = vmatmul.mubr.f32.gmra.mrb[0].mxu0 %v1879
      %v1947 = vpop.f32.mrb[0].mxu0
      %v1948 = vadd.f32 0.0, %v1947
      %v1949 = vpop.f32.mrb[0].mxu0
      %1950 = vdwg.mxu0
      %v1952 = vsel %vm266, %v1647, 0
      %1954 = vmatprep.subr.mxu0 0.0
      %1955 = vmatpush1.msra.mxu0 %v254
      %1956 = vmatprep.subr.mxu0 0.0
      %1957 = vmatpush1.msra.mxu0 0.0
      %1958 = vmatprep.subr.mxu0 0.0
      %1959 = vmatpush1.msra.mxu0 0.0
      %1960 = vmatprep.subr.mxu0 0.0
      %1961 = vmatpush1.msra.mxu0 0.0
      %1962 = vmatprep.subr.mxu0 0.0
      %1963 = vmatpush1.msra.mxu0 0.0
      %1964 = vmatprep.subr.mxu0 0.0
      %1965 = vmatpush1.msra.mxu0 0.0
      %1966 = vmatprep.subr.mxu0 0.0
      %1967 = vmatpush1.msra.mxu0 0.0
      %1968 = vmatprep.subr.mxu0 0.0
      %1969 = vmatpush1.msra.mxu0 0.0
      %1970 = vmatprep.subr.mxu0 0.0
      %1971 = vmatpush1.msra.mxu0 0.0
      %1972 = vmatprep.subr.mxu0 0.0
      %1973 = vmatpush1.msra.mxu0 0.0
      %1974 = vmatprep.subr.mxu0 0.0
      %1975 = vmatpush1.msra.mxu0 0.0
      %1976 = vmatprep.subr.mxu0 0.0
      %1977 = vmatpush1.msra.mxu0 0.0
      %1978 = vmatprep.subr.mxu0 0.0
      %1979 = vmatpush1.msra.mxu0 0.0
      %1980 = vmatprep.subr.mxu0 0.0
      %1981 = vmatpush1.msra.mxu0 0.0
      %1982 = vmatprep.subr.mxu0 0.0
      %1983 = vmatpush1.msra.mxu0 0.0
      %1984 = vmatprep.subr.mxu0 0.0
      %1985 = vmatpush1.msra.mxu0 0.0
      %1986 = vmatprep.subr.mxu0 0.0
      %1987 = vmatpush1.msra.mxu0 0.0
      %1988 = vmatprep.subr.mxu0 0.0
      %1989 = vmatpush1.msra.mxu0 0.0
      %1990 = vmatprep.subr.mxu0 0.0
      %1991 = vmatpush1.msra.mxu0 0.0
      %1992 = vmatprep.subr.mxu0 0.0
      %1993 = vmatpush1.msra.mxu0 0.0
      %1994 = vmatprep.subr.mxu0 0.0
      %1995 = vmatpush1.msra.mxu0 0.0
      %1996 = vmatprep.subr.mxu0 0.0
      %1997 = vmatpush1.msra.mxu0 0.0
      %1998 = vmatprep.subr.mxu0 0.0
      %1999 = vmatpush1.msra.mxu0 0.0
      %2000 = vmatprep.subr.mxu0 0.0
      %2001 = vmatpush1.msra.mxu0 0.0
      %2002 = vmatprep.subr.mxu0 0.0
      %2003 = vmatpush1.msra.mxu0 0.0
      %2004 = vmatprep.subr.mxu0 0.0
      %2005 = vmatpush1.msra.mxu0 0.0
      %2006 = vmatprep.subr.mxu0 0.0
      %2007 = vmatpush1.msra.mxu0 0.0
      %2008 = vmatprep.subr.mxu0 0.0
      %2009 = vmatpush1.msra.mxu0 0.0
      %2010 = vmatprep.subr.mxu0 0.0
      %2011 = vmatpush1.msra.mxu0 0.0
      %2012 = vmatprep.subr.mxu0 0.0
      %2013 = vmatpush1.msra.mxu0 0.0
      %2014 = vmatprep.subr.mxu0 0.0
      %2015 = vmatpush1.msra.mxu0 0.0
      %2016 = vmatprep.subr.mxu0 0.0
      %2017 = vmatpush1.msra.mxu0 0.0
      %2018 = vmatprep.mubr.f32.mxu0 0.0
      %2019 = vmatmul.mubr.f32.gmra.mrb[0].mxu0 %v1952
      %v2020 = vpop.f32.mrb[0].mxu0
      %v2021 = vadd.f32 0.0, %v2020
      %v2022 = vpop.f32.mrb[0].mxu0
      %2023 = vdwg.mxu0
      %v2025 = vsel %vm266, %v1648, 0
      %2027 = vmatprep.subr.mxu0 0.0
      %2028 = vmatpush1.msra.mxu0 %v255
      %2029 = vmatprep.subr.mxu0 0.0
      %2030 = vmatpush1.msra.mxu0 0.0
      %2031 = vmatprep.subr.mxu0 0.0
      %2032 = vmatpush1.msra.mxu0 0.0
      %2033 = vmatprep.subr.mxu0 0.0
      %2034 = vmatpush1.msra.mxu0 0.0
      %2035 = vmatprep.subr.mxu0 0.0
      %2036 = vmatpush1.msra.mxu0 0.0
      %2037 = vmatprep.subr.mxu0 0.0
      %2038 = vmatpush1.msra.mxu0 0.0
      %2039 = vmatprep.subr.mxu0 0.0
      %2040 = vmatpush1.msra.mxu0 0.0
      %2041 = vmatprep.subr.mxu0 0.0
      %2042 = vmatpush1.msra.mxu0 0.0
      %2043 = vmatprep.subr.mxu0 0.0
      %2044 = vmatpush1.msra.mxu0 0.0
      %2045 = vmatprep.subr.mxu0 0.0
      %2046 = vmatpush1.msra.mxu0 0.0
      %2047 = vmatprep.subr.mxu0 0.0
      %2048 = vmatpush1.msra.mxu0 0.0
      %2049 = vmatprep.subr.mxu0 0.0
      %2050 = vmatpush1.msra.mxu0 0.0
      %2051 = vmatprep.subr.mxu0 0.0
      %2052 = vmatpush1.msra.mxu0 0.0
      %2053 = vmatprep.subr.mxu0 0.0
      %2054 = vmatpush1.msra.mxu0 0.0
      %2055 = vmatprep.subr.mxu0 0.0
      %2056 = vmatpush1.msra.mxu0 0.0
      %2057 = vmatprep.subr.mxu0 0.0
      %2058 = vmatpush1.msra.mxu0 0.0
      %2059 = vmatprep.subr.mxu0 0.0
      %2060 = vmatpush1.msra.mxu0 0.0
      %2061 = vmatprep.subr.mxu0 0.0
      %2062 = vmatpush1.msra.mxu0 0.0
      %2063 = vmatprep.subr.mxu0 0.0
      %2064 = vmatpush1.msra.mxu0 0.0
      %2065 = vmatprep.subr.mxu0 0.0
      %2066 = vmatpush1.msra.mxu0 0.0
      %2067 = vmatprep.subr.mxu0 0.0
      %2068 = vmatpush1.msra.mxu0 0.0
      %2069 = vmatprep.subr.mxu0 0.0
      %2070 = vmatpush1.msra.mxu0 0.0
      %2071 = vmatprep.subr.mxu0 0.0
      %2072 = vmatpush1.msra.mxu0 0.0
      %2073 = vmatprep.subr.mxu0 0.0
      %2074 = vmatpush1.msra.mxu0 0.0
      %2075 = vmatprep.subr.mxu0 0.0
      %2076 = vmatpush1.msra.mxu0 0.0
      %2077 = vmatprep.subr.mxu0 0.0
      %2078 = vmatpush1.msra.mxu0 0.0
      %2079 = vmatprep.subr.mxu0 0.0
      %2080 = vmatpush1.msra.mxu0 0.0
      %2081 = vmatprep.subr.mxu0 0.0
      %2082 = vmatpush1.msra.mxu0 0.0
      %2083 = vmatprep.subr.mxu0 0.0
      %2084 = vmatpush1.msra.mxu0 0.0
      %2085 = vmatprep.subr.mxu0 0.0
      %2086 = vmatpush1.msra.mxu0 0.0
      %2087 = vmatprep.subr.mxu0 0.0
      %2088 = vmatpush1.msra.mxu0 0.0
      %2089 = vmatprep.subr.mxu0 0.0
      %2090 = vmatpush1.msra.mxu0 0.0
      %2091 = vmatprep.mubr.f32.mxu0 0.0
      %2092 = vmatmul.mubr.f32.gmra.mrb[0].mxu0 %v2025
      %v2093 = vpop.f32.mrb[0].mxu0
      %v2094 = vadd.f32 0.0, %v2093
      %v2095 = vpop.f32.mrb[0].mxu0
      %2096 = vdwg.mxu0
      %v2098 = vsel %vm266, %v1649, 0
      %2100 = vmatprep.subr.mxu0 0.0
      %2101 = vmatpush1.msra.mxu0 %v256
      %2102 = vmatprep.subr.mxu0 0.0
      %2103 = vmatpush1.msra.mxu0 0.0
      %2104 = vmatprep.subr.mxu0 0.0
      %2105 = vmatpush1.msra.mxu0 0.0
      %2106 = vmatprep.subr.mxu0 0.0
      %2107 = vmatpush1.msra.mxu0 0.0
      %2108 = vmatprep.subr.mxu0 0.0
      %2109 = vmatpush1.msra.mxu0 0.0
      %2110 = vmatprep.subr.mxu0 0.0
      %2111 = vmatpush1.msra.mxu0 0.0
      %2112 = vmatprep.subr.mxu0 0.0
      %2113 = vmatpush1.msra.mxu0 0.0
      %2114 = vmatprep.subr.mxu0 0.0
      %2115 = vmatpush1.msra.mxu0 0.0
      %2116 = vmatprep.subr.mxu0 0.0
      %2117 = vmatpush1.msra.mxu0 0.0
      %2118 = vmatprep.subr.mxu0 0.0
      %2119 = vmatpush1.msra.mxu0 0.0
      %2120 = vmatprep.subr.mxu0 0.0
      %2121 = vmatpush1.msra.mxu0 0.0
      %2122 = vmatprep.subr.mxu0 0.0
      %2123 = vmatpush1.msra.mxu0 0.0
      %2124 = vmatprep.subr.mxu0 0.0
      %2125 = vmatpush1.msra.mxu0 0.0
      %2126 = vmatprep.subr.mxu0 0.0
      %2127 = vmatpush1.msra.mxu0 0.0
      %2128 = vmatprep.subr.mxu0 0.0
      %2129 = vmatpush1.msra.mxu0 0.0
      %2130 = vmatprep.subr.mxu0 0.0
      %2131 = vmatpush1.msra.mxu0 0.0
      %2132 = vmatprep.subr.mxu0 0.0
      %2133 = vmatpush1.msra.mxu0 0.0
      %2134 = vmatprep.subr.mxu0 0.0
      %2135 = vmatpush1.msra.mxu0 0.0
      %2136 = vmatprep.subr.mxu0 0.0
      %2137 = vmatpush1.msra.mxu0 0.0
      %2138 = vmatprep.subr.mxu0 0.0
      %2139 = vmatpush1.msra.mxu0 0.0
      %2140 = vmatprep.subr.mxu0 0.0
      %2141 = vmatpush1.msra.mxu0 0.0
      %2142 = vmatprep.subr.mxu0 0.0
      %2143 = vmatpush1.msra.mxu0 0.0
      %2144 = vmatprep.subr.mxu0 0.0
      %2145 = vmatpush1.msra.mxu0 0.0
      %2146 = vmatprep.subr.mxu0 0.0
      %2147 = vmatpush1.msra.mxu0 0.0
      %2148 = vmatprep.subr.mxu0 0.0
      %2149 = vmatpush1.msra.mxu0 0.0
      %2150 = vmatprep.subr.mxu0 0.0
      %2151 = vmatpush1.msra.mxu0 0.0
      %2152 = vmatprep.subr.mxu0 0.0
      %2153 = vmatpush1.msra.mxu0 0.0
      %2154 = vmatprep.subr.mxu0 0.0
      %2155 = vmatpush1.msra.mxu0 0.0
      %2156 = vmatprep.subr.mxu0 0.0
      %2157 = vmatpush1.msra.mxu0 0.0
      %2158 = vmatprep.subr.mxu0 0.0
      %2159 = vmatpush1.msra.mxu0 0.0
      %2160 = vmatprep.subr.mxu0 0.0
      %2161 = vmatpush1.msra.mxu0 0.0
      %2162 = vmatprep.subr.mxu0 0.0
      %2163 = vmatpush1.msra.mxu0 0.0
      %2164 = vmatprep.mubr.f32.mxu0 0.0
      %2165 = vmatmul.mubr.f32.gmra.mrb[0].mxu0 %v2098
      %v2166 = vpop.f32.mrb[0].mxu0
      %v2167 = vadd.f32 0.0, %v2166
      %v2168 = vpop.f32.mrb[0].mxu0
      %2169 = vdwg.mxu0
      %v2171 = vsel %vm266, %v1650, 0
      %2173 = vmatprep.subr.mxu0 0.0
      %2174 = vmatpush1.msra.mxu0 %v257
      %2175 = vmatprep.subr.mxu0 0.0
      %2176 = vmatpush1.msra.mxu0 0.0
      %2177 = vmatprep.subr.mxu0 0.0
      %2178 = vmatpush1.msra.mxu0 0.0
      %2179 = vmatprep.subr.mxu0 0.0
      %2180 = vmatpush1.msra.mxu0 0.0
      %2181 = vmatprep.subr.mxu0 0.0
      %2182 = vmatpush1.msra.mxu0 0.0
      %2183 = vmatprep.subr.mxu0 0.0
      %2184 = vmatpush1.msra.mxu0 0.0
      %2185 = vmatprep.subr.mxu0 0.0
      %2186 = vmatpush1.msra.mxu0 0.0
      %2187 = vmatprep.subr.mxu0 0.0
      %2188 = vmatpush1.msra.mxu0 0.0
      %2189 = vmatprep.subr.mxu0 0.0
      %2190 = vmatpush1.msra.mxu0 0.0
      %2191 = vmatprep.subr.mxu0 0.0
      %2192 = vmatpush1.msra.mxu0 0.0
      %2193 = vmatprep.subr.mxu0 0.0
      %2194 = vmatpush1.msra.mxu0 0.0
      %2195 = vmatprep.subr.mxu0 0.0
      %2196 = vmatpush1.msra.mxu0 0.0
      %2197 = vmatprep.subr.mxu0 0.0
      %2198 = vmatpush1.msra.mxu0 0.0
      %2199 = vmatprep.subr.mxu0 0.0
      %2200 = vmatpush1.msra.mxu0 0.0
      %2201 = vmatprep.subr.mxu0 0.0
      %2202 = vmatpush1.msra.mxu0 0.0
      %2203 = vmatprep.subr.mxu0 0.0
      %2204 = vmatpush1.msra.mxu0 0.0
      %2205 = vmatprep.subr.mxu0 0.0
      %2206 = vmatpush1.msra.mxu0 0.0
      %2207 = vmatprep.subr.mxu0 0.0
      %2208 = vmatpush1.msra.mxu0 0.0
      %2209 = vmatprep.subr.mxu0 0.0
      %2210 = vmatpush1.msra.mxu0 0.0
      %2211 = vmatprep.subr.mxu0 0.0
      %2212 = vmatpush1.msra.mxu0 0.0
      %2213 = vmatprep.subr.mxu0 0.0
      %2214 = vmatpush1.msra.mxu0 0.0
      %2215 = vmatprep.subr.mxu0 0.0
      %2216 = vmatpush1.msra.mxu0 0.0
      %2217 = vmatprep.subr.mxu0 0.0
      %2218 = vmatpush1.msra.mxu0 0.0
      %2219 = vmatprep.subr.mxu0 0.0
      %2220 = vmatpush1.msra.mxu0 0.0
      %2221 = vmatprep.subr.mxu0 0.0
      %2222 = vmatpush1.msra.mxu0 0.0
      %2223 = vmatprep.subr.mxu0 0.0
      %2224 = vmatpush1.msra.mxu0 0.0
      %2225 = vmatprep.subr.mxu0 0.0
      %2226 = vmatpush1.msra.mxu0 0.0
      %2227 = vmatprep.subr.mxu0 0.0
      %2228 = vmatpush1.msra.mxu0 0.0
      %2229 = vmatprep.subr.mxu0 0.0
      %2230 = vmatpush1.msra.mxu0 0.0
      %2231 = vmatprep.subr.mxu0 0.0
      %2232 = vmatpush1.msra.mxu0 0.0
      %2233 = vmatprep.subr.mxu0 0.0
      %2234 = vmatpush1.msra.mxu0 0.0
      %2235 = vmatprep.subr.mxu0 0.0
      %2236 = vmatpush1.msra.mxu0 0.0
      %2237 = vmatprep.mubr.f32.mxu0 0.0
      %2238 = vmatmul.mubr.f32.gmra.mrb[0].mxu0 %v2171
      %v2239 = vpop.f32.mrb[0].mxu0
      %v2240 = vadd.f32 0.0, %v2239
      %v2241 = vpop.f32.mrb[0].mxu0
      %2242 = vdwg.mxu0
      %v2244 = vsel %vm266, %v1651, 0
      %2246 = vmatprep.subr.mxu0 0.0
      %2247 = vmatpush1.msra.mxu0 %v258
      %2248 = vmatprep.subr.mxu0 0.0
      %2249 = vmatpush1.msra.mxu0 0.0
      %2250 = vmatprep.subr.mxu0 0.0
      %2251 = vmatpush1.msra.mxu0 0.0
      %2252 = vmatprep.subr.mxu0 0.0
      %2253 = vmatpush1.msra.mxu0 0.0
      %2254 = vmatprep.subr.mxu0 0.0
      %2255 = vmatpush1.msra.mxu0 0.0
      %2256 = vmatprep.subr.mxu0 0.0
      %2257 = vmatpush1.msra.mxu0 0.0
      %2258 = vmatprep.subr.mxu0 0.0
      %2259 = vmatpush1.msra.mxu0 0.0
      %2260 = vmatprep.subr.mxu0 0.0
      %2261 = vmatpush1.msra.mxu0 0.0
      %2262 = vmatprep.subr.mxu0 0.0
      %2263 = vmatpush1.msra.mxu0 0.0
      %2264 = vmatprep.subr.mxu0 0.0
      %2265 = vmatpush1.msra.mxu0 0.0
      %2266 = vmatprep.subr.mxu0 0.0
      %2267 = vmatpush1.msra.mxu0 0.0
      %2268 = vmatprep.subr.mxu0 0.0
      %2269 = vmatpush1.msra.mxu0 0.0
      %2270 = vmatprep.subr.mxu0 0.0
      %2271 = vmatpush1.msra.mxu0 0.0
      %2272 = vmatprep.subr.mxu0 0.0
      %2273 = vmatpush1.msra.mxu0 0.0
      %2274 = vmatprep.subr.mxu0 0.0
      %2275 = vmatpush1.msra.mxu0 0.0
      %2276 = vmatprep.subr.mxu0 0.0
      %2277 = vmatpush1.msra.mxu0 0.0
      %2278 = vmatprep.subr.mxu0 0.0
      %2279 = vmatpush1.msra.mxu0 0.0
      %2280 = vmatprep.subr.mxu0 0.0
      %2281 = vmatpush1.msra.mxu0 0.0
      %2282 = vmatprep.subr.mxu0 0.0
      %2283 = vmatpush1.msra.mxu0 0.0
      %2284 = vmatprep.subr.mxu0 0.0
      %2285 = vmatpush1.msra.mxu0 0.0
      %2286 = vmatprep.subr.mxu0 0.0
      %2287 = vmatpush1.msra.mxu0 0.0
      %2288 = vmatprep.subr.mxu0 0.0
      %2289 = vmatpush1.msra.mxu0 0.0
      %2290 = vmatprep.subr.mxu0 0.0
      %2291 = vmatpush1.msra.mxu0 0.0
      %2292 = vmatprep.subr.mxu0 0.0
      %2293 = vmatpush1.msra.mxu0 0.0
      %2294 = vmatprep.subr.mxu0 0.0
      %2295 = vmatpush1.msra.mxu0 0.0
      %2296 = vmatprep.subr.mxu0 0.0
      %2297 = vmatpush1.msra.mxu0 0.0
      %2298 = vmatprep.subr.mxu0 0.0
      %2299 = vmatpush1.msra.mxu0 0.0
      %2300 = vmatprep.subr.mxu0 0.0
      %2301 = vmatpush1.msra.mxu0 0.0
      %2302 = vmatprep.subr.mxu0 0.0
      %2303 = vmatpush1.msra.mxu0 0.0
      %2304 = vmatprep.subr.mxu0 0.0
      %2305 = vmatpush1.msra.mxu0 0.0
      %2306 = vmatprep.subr.mxu0 0.0
      %2307 = vmatpush1.msra.mxu0 0.0
      %2308 = vmatprep.subr.mxu0 0.0
      %2309 = vmatpush1.msra.mxu0 0.0
      %2310 = vmatprep.mubr.f32.mxu0 0.0
      %2311 = vmatmul.mubr.f32.gmra.mrb[0].mxu0 %v2244
      %v2312 = vpop.f32.mrb[0].mxu0
      %v2313 = vadd.f32 0.0, %v2312
      %v2314 = vpop.f32.mrb[0].mxu0
      %2315 = vdwg.mxu0
      %v2317 = vsel %vm266, %v1652, 0
      %2319 = vmatprep.subr.mxu0 0.0
      %2320 = vmatpush1.msra.mxu0 %v259
      %2321 = vmatprep.subr.mxu0 0.0
      %2322 = vmatpush1.msra.mxu0 0.0
      %2323 = vmatprep.subr.mxu0 0.0
      %2324 = vmatpush1.msra.mxu0 0.0
      %2325 = vmatprep.subr.mxu0 0.0
      %2326 = vmatpush1.msra.mxu0 0.0
      %2327 = vmatprep.subr.mxu0 0.0
      %2328 = vmatpush1.msra.mxu0 0.0
      %2329 = vmatprep.subr.mxu0 0.0
      %2330 = vmatpush1.msra.mxu0 0.0
      %2331 = vmatprep.subr.mxu0 0.0
      %2332 = vmatpush1.msra.mxu0 0.0
      %2333 = vmatprep.subr.mxu0 0.0
      %2334 = vmatpush1.msra.mxu0 0.0
      %2335 = vmatprep.subr.mxu0 0.0
      %2336 = vmatpush1.msra.mxu0 0.0
      %2337 = vmatprep.subr.mxu0 0.0
      %2338 = vmatpush1.msra.mxu0 0.0
      %2339 = vmatprep.subr.mxu0 0.0
      %2340 = vmatpush1.msra.mxu0 0.0
      %2341 = vmatprep.subr.mxu0 0.0
      %2342 = vmatpush1.msra.mxu0 0.0
      %2343 = vmatprep.subr.mxu0 0.0
      %2344 = vmatpush1.msra.mxu0 0.0
      %2345 = vmatprep.subr.mxu0 0.0
      %2346 = vmatpush1.msra.mxu0 0.0
      %2347 = vmatprep.subr.mxu0 0.0
      %2348 = vmatpush1.msra.mxu0 0.0
      %2349 = vmatprep.subr.mxu0 0.0
      %2350 = vmatpush1.msra.mxu0 0.0
      %2351 = vmatprep.subr.mxu0 0.0
      %2352 = vmatpush1.msra.mxu0 0.0
      %2353 = vmatprep.subr.mxu0 0.0
      %2354 = vmatpush1.msra.mxu0 0.0
      %2355 = vmatprep.subr.mxu0 0.0
      %2356 = vmatpush1.msra.mxu0 0.0
      %2357 = vmatprep.subr.mxu0 0.0
      %2358 = vmatpush1.msra.mxu0 0.0
      %2359 = vmatprep.subr.mxu0 0.0
      %2360 = vmatpush1.msra.mxu0 0.0
      %2361 = vmatprep.subr.mxu0 0.0
      %2362 = vmatpush1.msra.mxu0 0.0
      %2363 = vmatprep.subr.mxu0 0.0
      %2364 = vmatpush1.msra.mxu0 0.0
      %2365 = vmatprep.subr.mxu0 0.0
      %2366 = vmatpush1.msra.mxu0 0.0
      %2367 = vmatprep.subr.mxu0 0.0
      %2368 = vmatpush1.msra.mxu0 0.0
      %2369 = vmatprep.subr.mxu0 0.0
      %2370 = vmatpush1.msra.mxu0 0.0
      %2371 = vmatprep.subr.mxu0 0.0
      %2372 = vmatpush1.msra.mxu0 0.0
      %2373 = vmatprep.subr.mxu0 0.0
      %2374 = vmatpush1.msra.mxu0 0.0
      %2375 = vmatprep.subr.mxu0 0.0
      %2376 = vmatpush1.msra.mxu0 0.0
      %2377 = vmatprep.subr.mxu0 0.0
      %2378 = vmatpush1.msra.mxu0 0.0
      %2379 = vmatprep.subr.mxu0 0.0
      %2380 = vmatpush1.msra.mxu0 0.0
      %2381 = vmatprep.subr.mxu0 0.0
      %2382 = vmatpush1.msra.mxu0 0.0
      %2383 = vmatprep.mubr.f32.mxu0 0.0
      %2384 = vmatmul.mubr.f32.gmra.mrb[0].mxu0 %v2317
      %v2385 = vpop.f32.mrb[0].mxu0
      %v2386 = vadd.f32 0.0, %v2385
      %v2387 = vpop.f32.mrb[0].mxu0
      %2388 = vdwg.mxu0
      %v2390 = vsel %vm266, %v1653, 0
      %2392 = vmatprep.subr.mxu0 0.0
      %2393 = vmatpush1.msra.mxu0 %v260
      %2394 = vmatprep.subr.mxu0 0.0
      %2395 = vmatpush1.msra.mxu0 0.0
      %2396 = vmatprep.subr.mxu0 0.0
      %2397 = vmatpush1.msra.mxu0 0.0
      %2398 = vmatprep.subr.mxu0 0.0
      %2399 = vmatpush1.msra.mxu0 0.0
      %2400 = vmatprep.subr.mxu0 0.0
      %2401 = vmatpush1.msra.mxu0 0.0
      %2402 = vmatprep.subr.mxu0 0.0
      %2403 = vmatpush1.msra.mxu0 0.0
      %2404 = vmatprep.subr.mxu0 0.0
      %2405 = vmatpush1.msra.mxu0 0.0
      %2406 = vmatprep.subr.mxu0 0.0
      %2407 = vmatpush1.msra.mxu0 0.0
      %2408 = vmatprep.subr.mxu0 0.0
      %2409 = vmatpush1.msra.mxu0 0.0
      %2410 = vmatprep.subr.mxu0 0.0
      %2411 = vmatpush1.msra.mxu0 0.0
      %2412 = vmatprep.subr.mxu0 0.0
      %2413 = vmatpush1.msra.mxu0 0.0
      %2414 = vmatprep.subr.mxu0 0.0
      %2415 = vmatpush1.msra.mxu0 0.0
      %2416 = vmatprep.subr.mxu0 0.0
      %2417 = vmatpush1.msra.mxu0 0.0
      %2418 = vmatprep.subr.mxu0 0.0
      %2419 = vmatpush1.msra.mxu0 0.0
      %2420 = vmatprep.subr.mxu0 0.0
      %2421 = vmatpush1.msra.mxu0 0.0
      %2422 = vmatprep.subr.mxu0 0.0
      %2423 = vmatpush1.msra.mxu0 0.0
      %2424 = vmatprep.subr.mxu0 0.0
      %2425 = vmatpush1.msra.mxu0 0.0
      %2426 = vmatprep.subr.mxu0 0.0
      %2427 = vmatpush1.msra.mxu0 0.0
      %2428 = vmatprep.subr.mxu0 0.0
      %2429 = vmatpush1.msra.mxu0 0.0
      %2430 = vmatprep.subr.mxu0 0.0
      %2431 = vmatpush1.msra.mxu0 0.0
      %2432 = vmatprep.subr.mxu0 0.0
      %2433 = vmatpush1.msra.mxu0 0.0
      %2434 = vmatprep.subr.mxu0 0.0
      %2435 = vmatpush1.msra.mxu0 0.0
      %2436 = vmatprep.subr.mxu0 0.0
      %2437 = vmatpush1.msra.mxu0 0.0
      %2438 = vmatprep.subr.mxu0 0.0
      %2439 = vmatpush1.msra.mxu0 0.0
      %2440 = vmatprep.subr.mxu0 0.0
      %2441 = vmatpush1.msra.mxu0 0.0
      %2442 = vmatprep.subr.mxu0 0.0
      %2443 = vmatpush1.msra.mxu0 0.0
      %2444 = vmatprep.subr.mxu0 0.0
      %2445 = vmatpush1.msra.mxu0 0.0
      %2446 = vmatprep.subr.mxu0 0.0
      %2447 = vmatpush1.msra.mxu0 0.0
      %2448 = vmatprep.subr.mxu0 0.0
      %2449 = vmatpush1.msra.mxu0 0.0
      %2450 = vmatprep.subr.mxu0 0.0
      %2451 = vmatpush1.msra.mxu0 0.0
      %2452 = vmatprep.subr.mxu0 0.0
      %2453 = vmatpush1.msra.mxu0 0.0
      %2454 = vmatprep.subr.mxu0 0.0
      %2455 = vmatpush1.msra.mxu0 0.0
      %2456 = vmatprep.mubr.f32.mxu0 0.0
      %2457 = vmatmul.mubr.f32.gmra.mrb[0].mxu0 %v2390
      %v2458 = vpop.f32.mrb[0].mxu0
      %v2459 = vadd.f32 0.0, %v2458
      %v2460 = vpop.f32.mrb[0].mxu0
      %2461 = vdwg.mxu0
      %v2463 = vsel %vm266, %v1654, 0
      %2465 = vmatprep.subr.mxu0 0.0
      %2466 = vmatpush1.msra.mxu0 %v261
      %2467 = vmatprep.subr.mxu0 0.0
      %2468 = vmatpush1.msra.mxu0 0.0
      %2469 = vmatprep.subr.mxu0 0.0
      %2470 = vmatpush1.msra.mxu0 0.0
      %2471 = vmatprep.subr.mxu0 0.0
      %2472 = vmatpush1.msra.mxu0 0.0
      %2473 = vmatprep.subr.mxu0 0.0
      %2474 = vmatpush1.msra.mxu0 0.0
      %2475 = vmatprep.subr.mxu0 0.0
      %2476 = vmatpush1.msra.mxu0 0.0
      %2477 = vmatprep.subr.mxu0 0.0
      %2478 = vmatpush1.msra.mxu0 0.0
      %2479 = vmatprep.subr.mxu0 0.0
      %2480 = vmatpush1.msra.mxu0 0.0
      %2481 = vmatprep.subr.mxu0 0.0
      %2482 = vmatpush1.msra.mxu0 0.0
      %2483 = vmatprep.subr.mxu0 0.0
      %2484 = vmatpush1.msra.mxu0 0.0
      %2485 = vmatprep.subr.mxu0 0.0
      %2486 = vmatpush1.msra.mxu0 0.0
      %2487 = vmatprep.subr.mxu0 0.0
      %2488 = vmatpush1.msra.mxu0 0.0
      %2489 = vmatprep.subr.mxu0 0.0
      %2490 = vmatpush1.msra.mxu0 0.0
      %2491 = vmatprep.subr.mxu0 0.0
      %2492 = vmatpush1.msra.mxu0 0.0
      %2493 = vmatprep.subr.mxu0 0.0
      %2494 = vmatpush1.msra.mxu0 0.0
      %2495 = vmatprep.subr.mxu0 0.0
      %2496 = vmatpush1.msra.mxu0 0.0
      %2497 = vmatprep.subr.mxu0 0.0
      %2498 = vmatpush1.msra.mxu0 0.0
      %2499 = vmatprep.subr.mxu0 0.0
      %2500 = vmatpush1.msra.mxu0 0.0
      %2501 = vmatprep.subr.mxu0 0.0
      %2502 = vmatpush1.msra.mxu0 0.0
      %2503 = vmatprep.subr.mxu0 0.0
      %2504 = vmatpush1.msra.mxu0 0.0
      %2505 = vmatprep.subr.mxu0 0.0
      %2506 = vmatpush1.msra.mxu0 0.0
      %2507 = vmatprep.subr.mxu0 0.0
      %2508 = vmatpush1.msra.mxu0 0.0
      %2509 = vmatprep.subr.mxu0 0.0
      %2510 = vmatpush1.msra.mxu0 0.0
      %2511 = vmatprep.subr.mxu0 0.0
      %2512 = vmatpush1.msra.mxu0 0.0
      %2513 = vmatprep.subr.mxu0 0.0
      %2514 = vmatpush1.msra.mxu0 0.0
      %2515 = vmatprep.subr.mxu0 0.0
      %2516 = vmatpush1.msra.mxu0 0.0
      %2517 = vmatprep.subr.mxu0 0.0
      %2518 = vmatpush1.msra.mxu0 0.0
      %2519 = vmatprep.subr.mxu0 0.0
      %2520 = vmatpush1.msra.mxu0 0.0
      %2521 = vmatprep.subr.mxu0 0.0
      %2522 = vmatpush1.msra.mxu0 0.0
      %2523 = vmatprep.subr.mxu0 0.0
      %2524 = vmatpush1.msra.mxu0 0.0
      %2525 = vmatprep.subr.mxu0 0.0
      %2526 = vmatpush1.msra.mxu0 0.0
      %2527 = vmatprep.subr.mxu0 0.0
      %2528 = vmatpush1.msra.mxu0 0.0
      %2529 = vmatprep.mubr.f32.mxu0 0.0
      %2530 = vmatmul.mubr.f32.gmra.mrb[0].mxu0 %v2463
      %v2531 = vpop.f32.mrb[0].mxu0
      %v2532 = vadd.f32 0.0, %v2531
      %v2533 = vpop.f32.mrb[0].mxu0
      %2534 = vdwg.mxu0
      %v2536 = vsel %vm266, %v1655, 0
      %2538 = vmatprep.subr.mxu0 0.0
      %2539 = vmatpush1.msra.mxu0 %v262
      %2540 = vmatprep.subr.mxu0 0.0
      %2541 = vmatpush1.msra.mxu0 0.0
      %2542 = vmatprep.subr.mxu0 0.0
      %2543 = vmatpush1.msra.mxu0 0.0
      %2544 = vmatprep.subr.mxu0 0.0
      %2545 = vmatpush1.msra.mxu0 0.0
      %2546 = vmatprep.subr.mxu0 0.0
      %2547 = vmatpush1.msra.mxu0 0.0
      %2548 = vmatprep.subr.mxu0 0.0
      %2549 = vmatpush1.msra.mxu0 0.0
      %2550 = vmatprep.subr.mxu0 0.0
      %2551 = vmatpush1.msra.mxu0 0.0
      %2552 = vmatprep.subr.mxu0 0.0
      %2553 = vmatpush1.msra.mxu0 0.0
      %2554 = vmatprep.subr.mxu0 0.0
      %2555 = vmatpush1.msra.mxu0 0.0
      %2556 = vmatprep.subr.mxu0 0.0
      %2557 = vmatpush1.msra.mxu0 0.0
      %2558 = vmatprep.subr.mxu0 0.0
      %2559 = vmatpush1.msra.mxu0 0.0
      %2560 = vmatprep.subr.mxu0 0.0
      %2561 = vmatpush1.msra.mxu0 0.0
      %2562 = vmatprep.subr.mxu0 0.0
      %2563 = vmatpush1.msra.mxu0 0.0
      %2564 = vmatprep.subr.mxu0 0.0
      %2565 = vmatpush1.msra.mxu0 0.0
      %2566 = vmatprep.subr.mxu0 0.0
      %2567 = vmatpush1.msra.mxu0 0.0
      %2568 = vmatprep.subr.mxu0 0.0
      %2569 = vmatpush1.msra.mxu0 0.0
      %2570 = vmatprep.subr.mxu0 0.0
      %2571 = vmatpush1.msra.mxu0 0.0
      %2572 = vmatprep.subr.mxu0 0.0
      %2573 = vmatpush1.msra.mxu0 0.0
      %2574 = vmatprep.subr.mxu0 0.0
      %2575 = vmatpush1.msra.mxu0 0.0
      %2576 = vmatprep.subr.mxu0 0.0
      %2577 = vmatpush1.msra.mxu0 0.0
      %2578 = vmatprep.subr.mxu0 0.0
      %2579 = vmatpush1.msra.mxu0 0.0
      %2580 = vmatprep.subr.mxu0 0.0
      %2581 = vmatpush1.msra.mxu0 0.0
      %2582 = vmatprep.subr.mxu0 0.0
      %2583 = vmatpush1.msra.mxu0 0.0
      %2584 = vmatprep.subr.mxu0 0.0
      %2585 = vmatpush1.msra.mxu0 0.0
      %2586 = vmatprep.subr.mxu0 0.0
      %2587 = vmatpush1.msra.mxu0 0.0
      %2588 = vmatprep.subr.mxu0 0.0
      %2589 = vmatpush1.msra.mxu0 0.0
      %2590 = vmatprep.subr.mxu0 0.0
      %2591 = vmatpush1.msra.mxu0 0.0
      %2592 = vmatprep.subr.mxu0 0.0
      %2593 = vmatpush1.msra.mxu0 0.0
      %2594 = vmatprep.subr.mxu0 0.0
      %2595 = vmatpush1.msra.mxu0 0.0
      %2596 = vmatprep.subr.mxu0 0.0
      %2597 = vmatpush1.msra.mxu0 0.0
      %2598 = vmatprep.subr.mxu0 0.0
      %2599 = vmatpush1.msra.mxu0 0.0
      %2600 = vmatprep.subr.mxu0 0.0
      %2601 = vmatpush1.msra.mxu0 0.0
      %2602 = vmatprep.mubr.f32.mxu0 0.0
      %2603 = vmatmul.mubr.f32.gmra.mrb[0].mxu0 %v2536
      %v2604 = vpop.f32.mrb[0].mxu0
      %v2605 = vadd.f32 0.0, %v2604
      %v2606 = vpop.f32.mrb[0].mxu0
      %2607 = vdwg.mxu0
      %v2609 = vsel %vm266, %v1656, 0
      %2611 = vmatprep.subr.mxu0 0.0
      %2612 = vmatpush1.msra.mxu0 %v263
      %2613 = vmatprep.subr.mxu0 0.0
      %2614 = vmatpush1.msra.mxu0 0.0
      %2615 = vmatprep.subr.mxu0 0.0
      %2616 = vmatpush1.msra.mxu0 0.0
      %2617 = vmatprep.subr.mxu0 0.0
      %2618 = vmatpush1.msra.mxu0 0.0
      %2619 = vmatprep.subr.mxu0 0.0
      %2620 = vmatpush1.msra.mxu0 0.0
      %2621 = vmatprep.subr.mxu0 0.0
      %2622 = vmatpush1.msra.mxu0 0.0
      %2623 = vmatprep.subr.mxu0 0.0
      %2624 = vmatpush1.msra.mxu0 0.0
      %2625 = vmatprep.subr.mxu0 0.0
      %2626 = vmatpush1.msra.mxu0 0.0
      %2627 = vmatprep.subr.mxu0 0.0
      %2628 = vmatpush1.msra.mxu0 0.0
      %2629 = vmatprep.subr.mxu0 0.0
      %2630 = vmatpush1.msra.mxu0 0.0
      %2631 = vmatprep.subr.mxu0 0.0
      %2632 = vmatpush1.msra.mxu0 0.0
      %2633 = vmatprep.subr.mxu0 0.0
      %2634 = vmatpush1.msra.mxu0 0.0
      %2635 = vmatprep.subr.mxu0 0.0
      %2636 = vmatpush1.msra.mxu0 0.0
      %2637 = vmatprep.subr.mxu0 0.0
      %2638 = vmatpush1.msra.mxu0 0.0
      %2639 = vmatprep.subr.mxu0 0.0
      %2640 = vmatpush1.msra.mxu0 0.0
      %2641 = vmatprep.subr.mxu0 0.0
      %2642 = vmatpush1.msra.mxu0 0.0
      %2643 = vmatprep.subr.mxu0 0.0
      %2644 = vmatpush1.msra.mxu0 0.0
      %2645 = vmatprep.subr.mxu0 0.0
      %2646 = vmatpush1.msra.mxu0 0.0
      %2647 = vmatprep.subr.mxu0 0.0
      %2648 = vmatpush1.msra.mxu0 0.0
      %2649 = vmatprep.subr.mxu0 0.0
      %2650 = vmatpush1.msra.mxu0 0.0
      %2651 = vmatprep.subr.mxu0 0.0
      %2652 = vmatpush1.msra.mxu0 0.0
      %2653 = vmatprep.subr.mxu0 0.0
      %2654 = vmatpush1.msra.mxu0 0.0
      %2655 = vmatprep.subr.mxu0 0.0
      %2656 = vmatpush1.msra.mxu0 0.0
      %2657 = vmatprep.subr.mxu0 0.0
      %2658 = vmatpush1.msra.mxu0 0.0
      %2659 = vmatprep.subr.mxu0 0.0
      %2660 = vmatpush1.msra.mxu0 0.0
      %2661 = vmatprep.subr.mxu0 0.0
      %2662 = vmatpush1.msra.mxu0 0.0
      %2663 = vmatprep.subr.mxu0 0.0
      %2664 = vmatpush1.msra.mxu0 0.0
      %2665 = vmatprep.subr.mxu0 0.0
      %2666 = vmatpush1.msra.mxu0 0.0
      %2667 = vmatprep.subr.mxu0 0.0
      %2668 = vmatpush1.msra.mxu0 0.0
      %2669 = vmatprep.subr.mxu0 0.0
      %2670 = vmatpush1.msra.mxu0 0.0
      %2671 = vmatprep.subr.mxu0 0.0
      %2672 = vmatpush1.msra.mxu0 0.0
      %2673 = vmatprep.subr.mxu0 0.0
      %2674 = vmatpush1.msra.mxu0 0.0
      %2675 = vmatprep.mubr.f32.mxu0 0.0
      %2676 = vmatmul.mubr.f32.gmra.mrb[0].mxu0 %v2609
      %v2677 = vpop.f32.mrb[0].mxu0
      %v2678 = vadd.f32 0.0, %v2677
      %v2679 = vpop.f32.mrb[0].mxu0
      %2680 = vdwg.mxu0
      %v2682 = vsel %vm266, %v1657, 0
      %2684 = vmatprep.subr.mxu0 0.0
      %2685 = vmatpush1.msra.mxu0 %v264
      %2686 = vmatprep.subr.mxu0 0.0
      %2687 = vmatpush1.msra.mxu0 0.0
      %2688 = vmatprep.subr.mxu0 0.0
      %2689 = vmatpush1.msra.mxu0 0.0
      %2690 = vmatprep.subr.mxu0 0.0
      %2691 = vmatpush1.msra.mxu0 0.0
      %2692 = vmatprep.subr.mxu0 0.0
      %2693 = vmatpush1.msra.mxu0 0.0
      %2694 = vmatprep.subr.mxu0 0.0
      %2695 = vmatpush1.msra.mxu0 0.0
      %2696 = vmatprep.subr.mxu0 0.0
      %2697 = vmatpush1.msra.mxu0 0.0
      %2698 = vmatprep.subr.mxu0 0.0
      %2699 = vmatpush1.msra.mxu0 0.0
      %2700 = vmatprep.subr.mxu0 0.0
      %2701 = vmatpush1.msra.mxu0 0.0
      %2702 = vmatprep.subr.mxu0 0.0
      %2703 = vmatpush1.msra.mxu0 0.0
      %2704 = vmatprep.subr.mxu0 0.0
      %2705 = vmatpush1.msra.mxu0 0.0
      %2706 = vmatprep.subr.mxu0 0.0
      %2707 = vmatpush1.msra.mxu0 0.0
      %2708 = vmatprep.subr.mxu0 0.0
      %2709 = vmatpush1.msra.mxu0 0.0
      %2710 = vmatprep.subr.mxu0 0.0
      %2711 = vmatpush1.msra.mxu0 0.0
      %2712 = vmatprep.subr.mxu0 0.0
      %2713 = vmatpush1.msra.mxu0 0.0
      %2714 = vmatprep.subr.mxu0 0.0
      %2715 = vmatpush1.msra.mxu0 0.0
      %2716 = vmatprep.subr.mxu0 0.0
      %2717 = vmatpush1.msra.mxu0 0.0
      %2718 = vmatprep.subr.mxu0 0.0
      %2719 = vmatpush1.msra.mxu0 0.0
      %2720 = vmatprep.subr.mxu0 0.0
      %2721 = vmatpush1.msra.mxu0 0.0
      %2722 = vmatprep.subr.mxu0 0.0
      %2723 = vmatpush1.msra.mxu0 0.0
      %2724 = vmatprep.subr.mxu0 0.0
      %2725 = vmatpush1.msra.mxu0 0.0
      %2726 = vmatprep.subr.mxu0 0.0
      %2727 = vmatpush1.msra.mxu0 0.0
      %2728 = vmatprep.subr.mxu0 0.0
      %2729 = vmatpush1.msra.mxu0 0.0
      %2730 = vmatprep.subr.mxu0 0.0
      %2731 = vmatpush1.msra.mxu0 0.0
      %2732 = vmatprep.subr.mxu0 0.0
      %2733 = vmatpush1.msra.mxu0 0.0
      %2734 = vmatprep.subr.mxu0 0.0
      %2735 = vmatpush1.msra.mxu0 0.0
      %2736 = vmatprep.subr.mxu0 0.0
      %2737 = vmatpush1.msra.mxu0 0.0
      %2738 = vmatprep.subr.mxu0 0.0
      %2739 = vmatpush1.msra.mxu0 0.0
      %2740 = vmatprep.subr.mxu0 0.0
      %2741 = vmatpush1.msra.mxu0 0.0
      %2742 = vmatprep.subr.mxu0 0.0
      %2743 = vmatpush1.msra.mxu0 0.0
      %2744 = vmatprep.subr.mxu0 0.0
      %2745 = vmatpush1.msra.mxu0 0.0
      %2746 = vmatprep.subr.mxu0 0.0
      %2747 = vmatpush1.msra.mxu0 0.0
      %2748 = vmatprep.mubr.f32.mxu0 0.0
      %2749 = vmatmul.mubr.f32.gmra.mrb[0].mxu0 %v2682
      %v2750 = vpop.f32.mrb[0].mxu0
      %v2751 = vadd.f32 0.0, %v2750
      %v2752 = vpop.f32.mrb[0].mxu0
      %2753 = vdwg.mxu0
      %v2755 = vsel %vm266, %v1658, 0
      %2757 = vmatprep.subr.mxu0 0.0
      %2758 = vmatpush1.msra.mxu0 %v265
      %2759 = vmatprep.subr.mxu0 0.0
      %2760 = vmatpush1.msra.mxu0 0.0
      %2761 = vmatprep.subr.mxu0 0.0
      %2762 = vmatpush1.msra.mxu0 0.0
      %2763 = vmatprep.subr.mxu0 0.0
      %2764 = vmatpush1.msra.mxu0 0.0
      %2765 = vmatprep.subr.mxu0 0.0
      %2766 = vmatpush1.msra.mxu0 0.0
      %2767 = vmatprep.subr.mxu0 0.0
      %2768 = vmatpush1.msra.mxu0 0.0
      %2769 = vmatprep.subr.mxu0 0.0
      %2770 = vmatpush1.msra.mxu0 0.0
      %2771 = vmatprep.subr.mxu0 0.0
      %2772 = vmatpush1.msra.mxu0 0.0
      %2773 = vmatprep.subr.mxu0 0.0
      %2774 = vmatpush1.msra.mxu0 0.0
      %2775 = vmatprep.subr.mxu0 0.0
      %2776 = vmatpush1.msra.mxu0 0.0
      %2777 = vmatprep.subr.mxu0 0.0
      %2778 = vmatpush1.msra.mxu0 0.0
      %2779 = vmatprep.subr.mxu0 0.0
      %2780 = vmatpush1.msra.mxu0 0.0
      %2781 = vmatprep.subr.mxu0 0.0
      %2782 = vmatpush1.msra.mxu0 0.0
      %2783 = vmatprep.subr.mxu0 0.0
      %2784 = vmatpush1.msra.mxu0 0.0
      %2785 = vmatprep.subr.mxu0 0.0
      %2786 = vmatpush1.msra.mxu0 0.0
      %2787 = vmatprep.subr.mxu0 0.0
      %2788 = vmatpush1.msra.mxu0 0.0
      %2789 = vmatprep.subr.mxu0 0.0
      %2790 = vmatpush1.msra.mxu0 0.0
      %2791 = vmatprep.subr.mxu0 0.0
      %2792 = vmatpush1.msra.mxu0 0.0
      %2793 = vmatprep.subr.mxu0 0.0
      %2794 = vmatpush1.msra.mxu0 0.0
      %2795 = vmatprep.subr.mxu0 0.0
      %2796 = vmatpush1.msra.mxu0 0.0
      %2797 = vmatprep.subr.mxu0 0.0
      %2798 = vmatpush1.msra.mxu0 0.0
      %2799 = vmatprep.subr.mxu0 0.0
      %2800 = vmatpush1.msra.mxu0 0.0
      %2801 = vmatprep.subr.mxu0 0.0
      %2802 = vmatpush1.msra.mxu0 0.0
      %2803 = vmatprep.subr.mxu0 0.0
      %2804 = vmatpush1.msra.mxu0 0.0
      %2805 = vmatprep.subr.mxu0 0.0
      %2806 = vmatpush1.msra.mxu0 0.0
      %2807 = vmatprep.subr.mxu0 0.0
      %2808 = vmatpush1.msra.mxu0 0.0
      %2809 = vmatprep.subr.mxu0 0.0
      %2810 = vmatpush1.msra.mxu0 0.0
      %2811 = vmatprep.subr.mxu0 0.0
      %2812 = vmatpush1.msra.mxu0 0.0
      %2813 = vmatprep.subr.mxu0 0.0
      %2814 = vmatpush1.msra.mxu0 0.0
      %2815 = vmatprep.subr.mxu0 0.0
      %2816 = vmatpush1.msra.mxu0 0.0
      %2817 = vmatprep.subr.mxu0 0.0
      %2818 = vmatpush1.msra.mxu0 0.0
      %2819 = vmatprep.subr.mxu0 0.0
      %2820 = vmatpush1.msra.mxu0 0.0
      %2821 = vmatprep.mubr.f32.mxu0 0.0
      %2822 = vmatmul.mubr.f32.gmra.mrb[0].mxu0 %v2755
      %v2823 = vpop.f32.mrb[0].mxu0
      %v2824 = vadd.f32 0.0, %v2823
      %v2825 = vpop.f32.mrb[0].mxu0
      %2826 = vdwg.mxu0
      %2827 = vst.msk [vmem:[%s216] sm:$0xff] %vm266, %v1729
      %2828 = vst.msk [vmem:[%s216 + $0x8] sm:$0xff] %vm266, %v1802
      %2829 = vst.msk [vmem:[%s216 + $0x10] sm:$0xff] %vm266, %v1875
      %2830 = vst.msk [vmem:[%s216 + $0x18] sm:$0xff] %vm266, %v1948
      %2831 = vst.msk [vmem:[%s216 + $0x20] sm:$0xff] %vm266, %v2021
      %2832 = vst.msk [vmem:[%s216 + $0x28] sm:$0xff] %vm266, %v2094
      %2833 = vst.msk [vmem:[%s216 + $0x30] sm:$0xff] %vm266, %v2167
      %2834 = vst.msk [vmem:[%s216 + $0x38] sm:$0xff] %vm266, %v2240
      %2835 = vst.msk [vmem:[%s216 + $0x40] sm:$0xff] %vm266, %v2313
      %2836 = vst.msk [vmem:[%s216 + $0x48] sm:$0xff] %vm266, %v2386
      %2837 = vst.msk [vmem:[%s216 + $0x50] sm:$0xff] %vm266, %v2459
      %2838 = vst.msk [vmem:[%s216 + $0x58] sm:$0xff] %vm266, %v2532
      %2839 = vst.msk [vmem:[%s216 + $0x60] sm:$0xff] %vm266, %v2605
      %2840 = vst.msk [vmem:[%s216 + $0x68] sm:$0xff] %vm266, %v2678
      %2841 = vst.msk [vmem:[%s216 + $0x70] sm:$0xff] %vm266, %v2751
      %2842 = vst.msk [vmem:[%s216 + $0x78] sm:$0xff] %vm266, %v2824
      %s2843 = smul.u32 16, %s14
      %p2844 = scmp.lt.s32.totalorder %s2843, 31
      %s2845 = scalar_select %p2844, %s2843, 31
      %s2846 = smul.addr %s2845, 8
      %s2847 = scalar_lea.vmem %s3, %s2846
      // Predicated region
      $region33: #{encoder_forward.4} parent=31 // pred_check
        %p2848 = pneg %p110
      $region34: #{encoder_forward.4} parent=31 // pred_check_branch
        %2850 = sbr.rel (%p2848) target = $region36
      $region35: #{encoder_forward.4} parent=31 // pred_region
        %s2851 = smul.u32 16, %s14
      $region36: #{encoder_forward.4} parent=31 // pred_fallthru
        _
    $region32: #{encoder_forward.4} parent=5 // pred_fallthru
      _
    %p2852 = scmp.le.s32.totalorder 2, %s9
    // Predicated region
    $region37: #{encoder_forward.4} parent=5 // pred_check
      %p2853 = pneg %p2852
    $region38: #{encoder_forward.4} parent=5 // pred_check_branch
      %2855 = sbr.rel (%p2853) target = $region40
    $region39: #{encoder_forward.4} parent=5 // pred_region
      %s2856 = ssub.s32 %s9, 2
      // Predicated region
      $region41: #{encoder_forward.4} parent=39 // pred_check
        %p2857 = pneg %p116
      $region42: #{encoder_forward.4} parent=39 // pred_check_branch
        %2859 = sbr.rel (%p2857) target = $region44
      $region43: #{encoder_forward.4} parent=39 // pred_region
        %s2860 = smul.u32 16, %s15
        %p2861 = scmp.lt.s32.totalorder %s2860, 31
        %s2862 = scalar_select %p2861, %s2860, 31
        %s2863 = smul.addr %s2862, 8
        %s2864 = scalar_lea.vmem %s3, %s2863
      $region44: #{encoder_forward.4} parent=39 // pred_fallthru
        _
    $region40: #{encoder_forward.4} parent=5 // pred_fallthru
      _
  $region6: #{encoder_forward.4} parent=0 // loop_footer
    %s13 = sadd.s32 1, %s9
  $region7: #{encoder_forward.4} parent=0 // loop_footer_branch
    %8 = sbr.rel target = $region3
  $region8: #{encoder_forward.4} parent=0 // loop_exit
    _

</llo_original>
